<compile_context>
chip_gen: v7x
topology: tpu7x:2x2x1
jax: 0.10.0
libtpu: 0.0.40
codegen_flags: <defaults>
</compile_context>

<pallas_src>
import functools

import jax
import jax.numpy as jnp
from jax import lax
from jax.experimental import pallas as pl
from jax.experimental.pallas import tpu as pltpu


def _round_up(x, m):
    return (x + m - 1) // m * m


def _pad2d(a, rows, cols):
    return jnp.pad(a, ((0, rows - a.shape[0]), (0, cols - a.shape[1])))


def gru_recurrence_kernel(xg_ref, whh_ref, bhn_ref, ann_ref, hfin_ref, h_scr,
                          *, t_chunk, t_total, n_sub, unroll_steps, mask_tail):
    """One grid step == `t_chunk` GRU time steps for one batch block.

    xg_ref  : (t_chunk, B_BLK, 3H) precomputed x@W_ih + (b_ih + [b_hr|b_hz|0]), gate order r,z,n
    whh_ref : (H, 3H)  fused hidden->hidden weights (pre-transposed, grid-invariant)
    bhn_ref : (1, H)   b_hn (the only hidden bias that cannot be folded)
    ann_ref : (t_chunk, B_BLK, H) annotations for this chunk
    hfin_ref: (B_BLK, H) final hidden state (resident across chunks; written once)
    h_scr   : (B_BLK, H) f32 VMEM scratch carrying the hidden state across chunks
    """
    tc = pl.program_id(1)
    n_chunks = pl.num_programs(1)

    @pl.when(tc == 0)
    def _init():
        h_scr[...] = jnp.zeros_like(h_scr)

    # Hoist invariant loads / broadcasts out of the unrolled time loop.
    whh = whh_ref[...]                       # (H, 3H)
    mat_dtype = whh.dtype
    b_blk, hdim = h_scr.shape
    bs = b_blk // n_sub
    bhn = jnp.broadcast_to(bhn_ref[...].astype(jnp.float32), (bs, hdim))

    # TODO(synk): hold W_hh weight-stationary in the MXU (pltpu.matmul_push_rhs
    # once per chunk + matmul_acc_lhs/matmul_pop per step) to cut per-step latency.
    def make_step(masked):
        def step(i, carry):
            xg_all = xg_ref[i].astype(jnp.float32)          # (B_BLK, 3H)
            new = []
            for s in range(n_sub):                          # independent batch chains
                h = carry[s]                                # (bs, H) f32
                xg = xg_all[s * bs:(s + 1) * bs, :]
                hg = jnp.dot(h.astype(mat_dtype), whh,
                             preferred_element_type=jnp.float32)   # (bs, 3H)
                rz = jax.nn.sigmoid(xg[:, :2 * hdim] + hg[:, :2 * hdim])
                r = rz[:, :hdim]
                z = rz[:, hdim:]
                n = jnp.tanh(xg[:, 2 * hdim:] + r * (hg[:, 2 * hdim:] + bhn))
                h_new = (1.0 - z) * n + z * h
                if masked:
                    # Freeze the hidden state on padded tail steps (t >= t_total).
                    h_new = jnp.where(tc * t_chunk + i < t_total, h_new, h)
                new.append(h_new)
            h_cat = new[0] if n_sub == 1 else jnp.concatenate(new, axis=0)
            ann_ref[i] = h_cat.astype(ann_ref.dtype)
            return tuple(new)
        return step

    def run_chunk(masked):
        h_full = h_scr[...]
        carry0 = tuple(h_full[s * bs:(s + 1) * bs, :] for s in range(n_sub))
        carry = lax.fori_loop(0, t_chunk, make_step(masked), carry0,
                              unroll=unroll_steps)
        h_scr[...] = carry[0] if n_sub == 1 else jnp.concatenate(carry, axis=0)

    if mask_tail:
        # Only the last chunk pays for the tail-freeze select.
        @pl.when(tc < n_chunks - 1)
        def _full_chunks():
            run_chunk(False)

        @pl.when(tc == n_chunks - 1)
        def _tail_chunk():
            run_chunk(True)
    else:
        run_chunk(False)

    @pl.when(tc == n_chunks - 1)
    def _finalize():
        hfin_ref[...] = h_scr[...].astype(hfin_ref.dtype)


def gru_encoder_forward(inputs, embedding, w_ih, w_hh, b_ih, b_hh, *,
                        matmul_dtype=jnp.float32, stream_dtype=None,
                        t_chunk=32, b_block=None, batch_interleave=2,
                        unroll=None):
    """inputs: (B, T) int32 token ids. Returns (annotations (B,T,H), hidden (B,H)).

    w_ih, w_hh: (3, H, H) per-gate weights, pre-transposed (x @ w[k]); order r,z,n.
    b_ih, b_hh: (3, 1, H) per-gate biases.
    matmul_dtype / stream_dtype: jnp.bfloat16 recommended on v6e/v7x (f32
    accumulation and f32 carried hidden state either way).
    """
    if stream_dtype is None:
        stream_dtype = matmul_dtype
    B, T = inputs.shape
    V, H = embedding.shape
    H_pad = _round_up(H, 128)            # lane-dense slices & unmasked stores

    # --- Zero-pad parameters to H_pad (padded lanes provably stay zero). ------
    emb_p = _pad2d(embedding, V, H_pad)
    w_ih_p = [_pad2d(w_ih[k], H_pad, H_pad) for k in range(3)]
    w_hh_p = [_pad2d(w_hh[k], H_pad, H_pad) for k in range(3)]
    b_ih_p = [_pad2d(b_ih[k], 1, H_pad) for k in range(3)]
    b_hh_p = [_pad2d(b_hh[k], 1, H_pad) for k in range(3)]

    # Fuse gates; fold b_hr / b_hz into the hoisted input path (they add linearly
    # before the sigmoid). b_hn must stay inside r * (h @ W_hn + b_hn).
    w_ih_f = jnp.concatenate(w_ih_p, axis=1)                     # (H_pad, 3H_pad)
    w_hh_f = jnp.concatenate(w_hh_p, axis=1)                     # (H_pad, 3H_pad)
    b_in_f = jnp.concatenate([b_ih_p[0] + b_hh_p[0],
                              b_ih_p[1] + b_hh_p[1],
                              b_ih_p[2]], axis=1)                # (1, 3H_pad)
    b_hn = b_hh_p[2]                                             # (1, H_pad)

    # --- Hoisted input path: one big time-major MXU matmul for all T steps. ---
    # TODO(synk): for HBM-bound configs on v5e, fuse this projection into the
    # kernel (stream bf16 embeddings, ~6x fewer streamed bytes).
    encoded_tm = jnp.take(emb_p, inputs.T, axis=0)               # (T, B, H_pad)
    xproj = (jnp.dot(encoded_tm.astype(matmul_dtype),
                     w_ih_f.astype(matmul_dtype),
                     preferred_element_type=jnp.float32)
             + b_in_f).astype(stream_dtype)                      # (T, B, 3H_pad)

    # --- Tiling / VMEM sizing. -------------------------------------------------
    B_pad = _round_up(B, 8)
    if b_block is None:
        b_block = min(B_pad, 128)        # leading "parallel" batch-block axis
    B_pad = _round_up(B_pad, b_block)
    n_bblk = B_pad // b_block

    n_sub = 1
    if (batch_interleave > 1 and b_block % batch_interleave == 0
            and b_block // batch_interleave >= 8):
        n_sub = batch_interleave

    stream_bytes = jnp.dtype(stream_dtype).itemsize
    mat_bytes = jnp.dtype(matmul_dtype).itemsize
    try:
        vmem_cap = int(getattr(pltpu.get_tpu_info(), "vmem_capacity_bytes",
                               64 << 20))
    except Exception:
        vmem_cap = 64 << 20              # conservative (v7x per-TC)

    # Single-buffered invariants + f32 scratch + resident final-hidden output.
    fixed_bytes = (H_pad * 3 * H_pad * mat_bytes + H_pad * 4
                   + 3 * b_block * H_pad * 4)
    # Double-buffered streamed xg block + ann block, per time step.
    per_step_bytes = 2 * b_block * (3 * H_pad + H_pad) * stream_bytes
    budget = max(int(0.75 * vmem_cap) - fixed_bytes, per_step_bytes)
    t_chunk = max(1, min(t_chunk, T, budget // per_step_bytes))
    T_pad = _round_up(T, t_chunk)
    n_chunks = T_pad // t_chunk
    mask_tail = (T_pad != T)

    if unroll is None:                   # vreg-pressure guard for large H
        live_bytes = (b_block // n_sub) * 3 * H_pad * 4
        unroll = t_chunk if live_bytes <= (64 << 10) else min(t_chunk, 8)

    footprint = fixed_bytes + per_step_bytes * t_chunk
    vmem_limit = int(min(vmem_cap, max(footprint + footprint // 4, 32 << 20)))

    xproj = jnp.pad(xproj, ((0, T_pad - T), (0, B_pad - B), (0, 0)))

    kernel = functools.partial(
        gru_recurrence_kernel, t_chunk=t_chunk, t_total=T, n_sub=n_sub,
        unroll_steps=unroll, mask_tail=mask_tail)

    def build(single_buffer_invariants):
        inv = (dict(pipeline_mode=pl.Buffered(1))
               if single_buffer_invariants else {})
        grid_spec = pltpu.PrefetchScalarGridSpec(
            num_scalar_prefetch=0,
            grid=(n_bblk, n_chunks),
            in_specs=[
                pl.BlockSpec((t_chunk, b_block, 3 * H_pad),
                             lambda b, c: (c, b, 0)),
                pl.BlockSpec((H_pad, 3 * H_pad), lambda b, c: (0, 0), **inv),
                pl.BlockSpec((1, H_pad), lambda b, c: (0, 0), **inv),
            ],
            out_specs=[
                pl.BlockSpec((t_chunk, b_block, H_pad), lambda b, c: (c, b, 0)),
                pl.BlockSpec((b_block, H_pad), lambda b, c: (b, 0)),
            ],
            scratch_shapes=[pltpu.VMEM((b_block, H_pad), jnp.float32)],
        )
        return pl.pallas_call(
            kernel,
            out_shape=(
                jax.ShapeDtypeStruct((T_pad, B_pad, H_pad), stream_dtype),
                jax.ShapeDtypeStruct((B_pad, H_pad), jnp.float32),
            ),
            grid_spec=grid_spec,
            compiler_params=pltpu.CompilerParams(
                dimension_semantics=("parallel", "arbitrary"),
                vmem_limit_bytes=vmem_limit),
        )

    args = (xproj, w_hh_f.astype(matmul_dtype), b_hn)
    try:
        ann_tm, hidden = build(True)(*args)
    except Exception:
        # Fallback: default double-buffered invariants if pipeline_mode=Buffered(1)
        # is not accepted by this jax build.
        ann_tm, hidden = build(False)(*args)

    annotations = jnp.transpose(ann_tm[:T, :B, :H], (1, 0, 2))   # (B, T, H)
    return annotations, hidden[:B, :H]


def gru_encoder_reference(inputs, embedding, w_ih, w_hh, b_ih, b_hh):
    """Pure-JAX reference matching PyTorch GRUCell semantics."""
    B, T = inputs.shape
    H = embedding.shape[1]
    encoded = jnp.take(embedding, inputs, axis=0)                # (B, T, H)

    def step(h, x):
        i_r = x @ w_ih[0] + b_ih[0]
        i_z = x @ w_ih[1] + b_ih[1]
        i_n = x @ w_ih[2] + b_ih[2]
        h_r = h @ w_hh[0] + b_hh[0]
        h_z = h @ w_hh[1] + b_hh[1]
        h_n = h @ w_hh[2] + b_hh[2]
        r = jax.nn.sigmoid(i_r + h_r)
        z = jax.nn.sigmoid(i_z + h_z)
        n = jnp.tanh(i_n + r * h_n)
        h_new = (1.0 - z) * n + z * h
        return h_new, h_new

    h0 = jnp.zeros((B, H), jnp.float32)
    h_last, anns = lax.scan(step, h0, jnp.transpose(encoded, (1, 0, 2)))
    return jnp.transpose(anns, (1, 0, 2)), h_last


if __name__ == "__main__":
    key = jax.random.PRNGKey(0)

    def make_params(k, vocab_size, hidden_size):
        k_emb, k_wih, k_whh, k_bih, k_bhh = jax.random.split(k, 5)
        scale = 1.0 / jnp.sqrt(jnp.float32(hidden_size))
        embedding = jax.random.normal(k_emb, (vocab_size, hidden_size),
                                      jnp.float32)
        w_ih = jax.random.uniform(k_wih, (3, hidden_size, hidden_size),
                                  jnp.float32, -scale, scale)
        w_hh = jax.random.uniform(k_whh, (3, hidden_size, hidden_size),
                                  jnp.float32, -scale, scale)
        b_ih = jax.random.uniform(k_bih, (3, 1, hidden_size), jnp.float32,
                                  -scale, scale)
        b_hh = jax.random.uniform(k_bhh, (3, 1, hidden_size), jnp.float32,
                                  -scale, scale)
        return embedding, w_ih, w_hh, b_ih, b_hh

    # --- Test 1: exact f32 path (matches module default shapes). -------------
    k1, k2, key = jax.random.split(key, 3)
    vocab, H, B, T = 16, 32, 2, 8
    emb, w_ih, w_hh, b_ih, b_hh = make_params(k1, vocab, H)
    inputs = jax.random.randint(k2, (B, T), 0, vocab, dtype=jnp.int32)

    ann, hid = jax.block_until_ready(
        gru_encoder_forward(inputs, emb, w_ih, w_hh, b_ih, b_hh))
    ann_ref, hid_ref = gru_encoder_reference(inputs, emb, w_ih, w_hh, b_ih, b_hh)
    assert ann.shape == (B, T, H) and hid.shape == (B, H)
    assert jnp.allclose(ann, ann_ref, atol=1e-4, rtol=1e-4)
    assert jnp.allclose(hid, hid_ref, atol=1e-4, rtol=1e-4)

    # --- Test 2: bf16 streaming + batch interleave + ragged time tail. -------
    k3, k4 = jax.random.split(key)
    vocab2, H2, B2, T2 = 32, 64, 16, 12
    emb2, w_ih2, w_hh2, b_ih2, b_hh2 = make_params(k3, vocab2, H2)
    inputs2 = jax.random.randint(k4, (B2, T2), 0, vocab2, dtype=jnp.int32)

    ann2, hid2 = jax.block_until_ready(
        gru_encoder_forward(inputs2, emb2, w_ih2, w_hh2, b_ih2, b_hh2,
                            matmul_dtype=jnp.bfloat16,
                            stream_dtype=jnp.bfloat16, t_chunk=8))
    ann2_ref, hid2_ref = gru_encoder_reference(inputs2, emb2, w_ih2, w_hh2,
                                               b_ih2, b_hh2)
    assert ann2.shape == (B2, T2, H2) and hid2.shape == (B2, H2)
    assert jnp.allclose(ann2.astype(jnp.float32), ann2_ref, atol=5e-2, rtol=5e-2)
    assert jnp.allclose(hid2, hid2_ref, atol=5e-2, rtol=5e-2)

    print("KERNEL_OK")
</pallas_src>

<mosaic_0001>
module attributes {stable_mosaic.version = 11 : i64} {
  func.func @gru_recurrence_kernel(%arg0: i32, %arg1: i32, %arg2: memref<8x8x384xf32, #tpu.memory_space<vmem>>, %arg3: memref<128x384xf32, #tpu.memory_space<vmem>>, %arg4: memref<1x128xf32, #tpu.memory_space<vmem>>, %arg5: memref<8x8x128xf32, #tpu.memory_space<vmem>>, %arg6: memref<8x128xf32, #tpu.memory_space<vmem>>, %arg7: memref<8x128xf32, #tpu.memory_space<vmem>>) attributes {dimension_semantics = [#tpu.dimension_semantics<parallel>, #tpu.dimension_semantics<arbitrary>], iteration_bounds = array<i64: 1, 1>, scalar_prefetch = 0 : i64, scratch_operands = 1 : i64, tpu.core_type = #tpu.core_type<tc>, window_params = [{transform_indices = @transform_0, window_bounds = array<i64: 8, 8, 384>}, {pipeline_mode = #tpu.pipeline_mode<synchronous>, transform_indices = @transform_1, window_bounds = array<i64: 128, 384>}, {pipeline_mode = #tpu.pipeline_mode<synchronous>, transform_indices = @transform_2, window_bounds = array<i64: 1, 128>}, {transform_indices = @transform_3, window_bounds = array<i64: 8, 8, 128>}, {transform_indices = @transform_4, window_bounds = array<i64: 8, 128>}]} {
    %c0_i32 = arith.constant 0 : i32
    %0 = arith.cmpi eq, %arg1, %c0_i32 : i32
    %1 = arith.extui %0 : i1 to i32
    %c0_i32_0 = arith.constant 0 : i32
    %2 = arith.cmpi ne, %1, %c0_i32_0 : i32
    scf.if %2 {
      %cst_66 = arith.constant 0.000000e+00 : f32
      %244 = vector.broadcast %cst_66 : f32 to vector<8x128xf32>
      %c0_67 = arith.constant 0 : index
      %c0_68 = arith.constant 0 : index
      %245 = vector.load %arg7[%c0_67, %c0_68] : memref<8x128xf32, #tpu.memory_space<vmem>>, vector<8x128xf32>
      tpu.vector_store %arg7[%c0_67, %c0_68], %244 {strides = array<i32>} : memref<8x128xf32, #tpu.memory_space<vmem>>, vector<8x128xf32>,
    } else {
    }
    %c0 = arith.constant 0 : index
    %c0_1 = arith.constant 0 : index
    %3 = vector.load %arg3[%c0, %c0_1] : memref<128x384xf32, #tpu.memory_space<vmem>>, vector<128x384xf32>
    %c0_2 = arith.constant 0 : index
    %c0_3 = arith.constant 0 : index
    %4 = vector.load %arg4[%c0_2, %c0_3] : memref<1x128xf32, #tpu.memory_space<vmem>>, vector<1x128xf32>
    %5 = vector.shape_cast %4 : vector<1x128xf32> to vector<1x128xf32>
    %6 = vector.broadcast %5 : vector<1x128xf32> to vector<8x128xf32>
    %c0_4 = arith.constant 0 : index
    %c0_5 = arith.constant 0 : index
    %7 = vector.load %arg7[%c0_4, %c0_5] : memref<8x128xf32, #tpu.memory_space<vmem>>, vector<8x128xf32>
    %c0_i32_6 = arith.constant 0 : i32
    %8 = arith.index_cast %c0_i32_6 : i32 to index
    %c0_7 = arith.constant 0 : index
    %c0_8 = arith.constant 0 : index
    %9 = vector.load %arg2[%8, %c0_7, %c0_8] : memref<8x8x384xf32, #tpu.memory_space<vmem>>, vector<1x8x384xf32>
    %10 = vector.shape_cast %9 : vector<1x8x384xf32> to vector<8x384xf32>
    %cst = arith.constant dense<0.000000e+00> : vector<8x384xf32>
    %11 = tpu.matmul %7, %3, %cst {dimension_numbers = #tpu.dot_dimension_numbers<[1], [0], [0], [1], [0, 0, 1, 1], [], []>} : vector<8x128xf32>, vector<128x384xf32>, vector<8x384xf32> -> vector<8x384xf32>
    %12 = vector.extract_strided_slice %10 {offsets = [0, 0], sizes = [8, 256], strides = [1, 1]} : vector<8x384xf32> to vector<8x256xf32>
    %13 = vector.extract_strided_slice %11 {offsets = [0, 0], sizes = [8, 256], strides = [1, 1]} : vector<8x384xf32> to vector<8x256xf32>
    %14 = arith.addf %12, %13 : vector<8x256xf32>
    %15 = arith.negf %14 : vector<8x256xf32>
    %16 = math.exp %15 : vector<8x256xf32>
    %cst_9 = arith.constant 1.000000e+00 : f32
    %17 = vector.broadcast %cst_9 : f32 to vector<8x256xf32>
    %18 = arith.addf %17, %16 : vector<8x256xf32>
    %19 = arith.divf %17, %18 : vector<8x256xf32>
    %20 = vector.extract_strided_slice %19 {offsets = [0, 0], sizes = [8, 128], strides = [1, 1]} : vector<8x256xf32> to vector<8x128xf32>
    %21 = vector.extract_strided_slice %19 {offsets = [0, 128], sizes = [8, 128], strides = [1, 1]} : vector<8x256xf32> to vector<8x128xf32>
    %22 = vector.extract_strided_slice %10 {offsets = [0, 256], sizes = [8, 128], strides = [1, 1]} : vector<8x384xf32> to vector<8x128xf32>
    %23 = vector.extract_strided_slice %11 {offsets = [0, 256], sizes = [8, 128], strides = [1, 1]} : vector<8x384xf32> to vector<8x128xf32>
    %24 = arith.addf %23, %6 : vector<8x128xf32>
    %25 = arith.mulf %20, %24 : vector<8x128xf32>
    %26 = arith.addf %22, %25 : vector<8x128xf32>
    %27 = math.tanh %26 : vector<8x128xf32>
    %cst_10 = arith.constant 1.000000e+00 : f32
    %28 = vector.broadcast %cst_10 : f32 to vector<8x128xf32>
    %29 = arith.subf %28, %21 : vector<8x128xf32>
    %30 = arith.mulf %29, %27 : vector<8x128xf32>
    %31 = arith.mulf %21, %7 : vector<8x128xf32>
    %32 = arith.addf %30, %31 : vector<8x128xf32>
    %33 = arith.index_cast %c0_i32_6 : i32 to index
    %c0_11 = arith.constant 0 : index
    %c0_12 = arith.constant 0 : index
    %34 = vector.load %arg5[%33, %c0_11, %c0_12] : memref<8x8x128xf32, #tpu.memory_space<vmem>>, vector<1x8x128xf32>
    %35 = vector.shape_cast %34 : vector<1x8x128xf32> to vector<8x128xf32>
    %36 = vector.shape_cast %32 : vector<8x128xf32> to vector<1x8x128xf32>
    tpu.vector_store %arg5[%33, %c0_11, %c0_12], %36 {strides = array<i32>} : memref<8x8x128xf32, #tpu.memory_space<vmem>>, vector<1x8x128xf32>,
    %c1_i32 = arith.constant 1 : i32
    %37 = arith.index_cast %c1_i32 : i32 to index
    %c0_13 = arith.constant 0 : index
    %c0_14 = arith.constant 0 : index
    %38 = vector.load %arg2[%37, %c0_13, %c0_14] : memref<8x8x384xf32, #tpu.memory_space<vmem>>, vector<1x8x384xf32>
    %39 = vector.shape_cast %38 : vector<1x8x384xf32> to vector<8x384xf32>
    %cst_15 = arith.constant dense<0.000000e+00> : vector<8x384xf32>
    %40 = tpu.matmul %32, %3, %cst_15 {dimension_numbers = #tpu.dot_dimension_numbers<[1], [0], [0], [1], [0, 0, 1, 1], [], []>} : vector<8x128xf32>, vector<128x384xf32>, vector<8x384xf32> -> vector<8x384xf32>
    %41 = vector.extract_strided_slice %39 {offsets = [0, 0], sizes = [8, 256], strides = [1, 1]} : vector<8x384xf32> to vector<8x256xf32>
    %42 = vector.extract_strided_slice %40 {offsets = [0, 0], sizes = [8, 256], strides = [1, 1]} : vector<8x384xf32> to vector<8x256xf32>
    %43 = arith.addf %41, %42 : vector<8x256xf32>
    %44 = arith.negf %43 : vector<8x256xf32>
    %45 = math.exp %44 : vector<8x256xf32>
    %cst_16 = arith.constant 1.000000e+00 : f32
    %46 = vector.broadcast %cst_16 : f32 to vector<8x256xf32>
    %47 = arith.addf %46, %45 : vector<8x256xf32>
    %48 = arith.divf %46, %47 : vector<8x256xf32>
    %49 = vector.extract_strided_slice %48 {offsets = [0, 0], sizes = [8, 128], strides = [1, 1]} : vector<8x256xf32> to vector<8x128xf32>
    %50 = vector.extract_strided_slice %48 {offsets = [0, 128], sizes = [8, 128], strides = [1, 1]} : vector<8x256xf32> to vector<8x128xf32>
    %51 = vector.extract_strided_slice %39 {offsets = [0, 256], sizes = [8, 128], strides = [1, 1]} : vector<8x384xf32> to vector<8x128xf32>
    %52 = vector.extract_strided_slice %40 {offsets = [0, 256], sizes = [8, 128], strides = [1, 1]} : vector<8x384xf32> to vector<8x128xf32>
    %53 = arith.addf %52, %6 : vector<8x128xf32>
    %54 = arith.mulf %49, %53 : vector<8x128xf32>
    %55 = arith.addf %51, %54 : vector<8x128xf32>
    %56 = math.tanh %55 : vector<8x128xf32>
    %cst_17 = arith.constant 1.000000e+00 : f32
    %57 = vector.broadcast %cst_17 : f32 to vector<8x128xf32>
    %58 = arith.subf %57, %50 : vector<8x128xf32>
    %59 = arith.mulf %58, %56 : vector<8x128xf32>
    %60 = arith.mulf %50, %32 : vector<8x128xf32>
    %61 = arith.addf %59, %60 : vector<8x128xf32>
    %62 = arith.index_cast %c1_i32 : i32 to index
    %c0_18 = arith.constant 0 : index
    %c0_19 = arith.constant 0 : index
    %63 = vector.load %arg5[%62, %c0_18, %c0_19] : memref<8x8x128xf32, #tpu.memory_space<vmem>>, vector<1x8x128xf32>
    %64 = vector.shape_cast %63 : vector<1x8x128xf32> to vector<8x128xf32>
    %65 = vector.shape_cast %61 : vector<8x128xf32> to vector<1x8x128xf32>
    tpu.vector_store %arg5[%62, %c0_18, %c0_19], %65 {strides = array<i32>} : memref<8x8x128xf32, #tpu.memory_space<vmem>>, vector<1x8x128xf32>,
    %c2_i32 = arith.constant 2 : i32
    %66 = arith.index_cast %c2_i32 : i32 to index
    %c0_20 = arith.constant 0 : index
    %c0_21 = arith.constant 0 : index
    %67 = vector.load %arg2[%66, %c0_20, %c0_21] : memref<8x8x384xf32, #tpu.memory_space<vmem>>, vector<1x8x384xf32>
    %68 = vector.shape_cast %67 : vector<1x8x384xf32> to vector<8x384xf32>
    %cst_22 = arith.constant dense<0.000000e+00> : vector<8x384xf32>
    %69 = tpu.matmul %61, %3, %cst_22 {dimension_numbers = #tpu.dot_dimension_numbers<[1], [0], [0], [1], [0, 0, 1, 1], [], []>} : vector<8x128xf32>, vector<128x384xf32>, vector<8x384xf32> -> vector<8x384xf32>
    %70 = vector.extract_strided_slice %68 {offsets = [0, 0], sizes = [8, 256], strides = [1, 1]} : vector<8x384xf32> to vector<8x256xf32>
    %71 = vector.extract_strided_slice %69 {offsets = [0, 0], sizes = [8, 256], strides = [1, 1]} : vector<8x384xf32> to vector<8x256xf32>
    %72 = arith.addf %70, %71 : vector<8x256xf32>
    %73 = arith.negf %72 : vector<8x256xf32>
    %74 = math.exp %73 : vector<8x256xf32>
    %cst_23 = arith.constant 1.000000e+00 : f32
    %75 = vector.broadcast %cst_23 : f32 to vector<8x256xf32>
    %76 = arith.addf %75, %74 : vector<8x256xf32>
    %77 = arith.divf %75, %76 : vector<8x256xf32>
    %78 = vector.extract_strided_slice %77 {offsets = [0, 0], sizes = [8, 128], strides = [1, 1]} : vector<8x256xf32> to vector<8x128xf32>
    %79 = vector.extract_strided_slice %77 {offsets = [0, 128], sizes = [8, 128], strides = [1, 1]} : vector<8x256xf32> to vector<8x128xf32>
    %80 = vector.extract_strided_slice %68 {offsets = [0, 256], sizes = [8, 128], strides = [1, 1]} : vector<8x384xf32> to vector<8x128xf32>
    %81 = vector.extract_strided_slice %69 {offsets = [0, 256], sizes = [8, 128], strides = [1, 1]} : vector<8x384xf32> to vector<8x128xf32>
    %82 = arith.addf %81, %6 : vector<8x128xf32>
    %83 = arith.mulf %78, %82 : vector<8x128xf32>
    %84 = arith.addf %80, %83 : vector<8x128xf32>
    %85 = math.tanh %84 : vector<8x128xf32>
    %cst_24 = arith.constant 1.000000e+00 : f32
    %86 = vector.broadcast %cst_24 : f32 to vector<8x128xf32>
    %87 = arith.subf %86, %79 : vector<8x128xf32>
    %88 = arith.mulf %87, %85 : vector<8x128xf32>
    %89 = arith.mulf %79, %61 : vector<8x128xf32>
    %90 = arith.addf %88, %89 : vector<8x128xf32>
    %91 = arith.index_cast %c2_i32 : i32 to index
    %c0_25 = arith.constant 0 : index
    %c0_26 = arith.constant 0 : index
    %92 = vector.load %arg5[%91, %c0_25, %c0_26] : memref<8x8x128xf32, #tpu.memory_space<vmem>>, vector<1x8x128xf32>
    %93 = vector.shape_cast %92 : vector<1x8x128xf32> to vector<8x128xf32>
    %94 = vector.shape_cast %90 : vector<8x128xf32> to vector<1x8x128xf32>
    tpu.vector_store %arg5[%91, %c0_25, %c0_26], %94 {strides = array<i32>} : memref<8x8x128xf32, #tpu.memory_space<vmem>>, vector<1x8x128xf32>,
    %c3_i32 = arith.constant 3 : i32
    %95 = arith.index_cast %c3_i32 : i32 to index
    %c0_27 = arith.constant 0 : index
    %c0_28 = arith.constant 0 : index
    %96 = vector.load %arg2[%95, %c0_27, %c0_28] : memref<8x8x384xf32, #tpu.memory_space<vmem>>, vector<1x8x384xf32>
    %97 = vector.shape_cast %96 : vector<1x8x384xf32> to vector<8x384xf32>
    %cst_29 = arith.constant dense<0.000000e+00> : vector<8x384xf32>
    %98 = tpu.matmul %90, %3, %cst_29 {dimension_numbers = #tpu.dot_dimension_numbers<[1], [0], [0], [1], [0, 0, 1, 1], [], []>} : vector<8x128xf32>, vector<128x384xf32>, vector<8x384xf32> -> vector<8x384xf32>
    %99 = vector.extract_strided_slice %97 {offsets = [0, 0], sizes = [8, 256], strides = [1, 1]} : vector<8x384xf32> to vector<8x256xf32>
    %100 = vector.extract_strided_slice %98 {offsets = [0, 0], sizes = [8, 256], strides = [1, 1]} : vector<8x384xf32> to vector<8x256xf32>
    %101 = arith.addf %99, %100 : vector<8x256xf32>
    %102 = arith.negf %101 : vector<8x256xf32>
    %103 = math.exp %102 : vector<8x256xf32>
    %cst_30 = arith.constant 1.000000e+00 : f32
    %104 = vector.broadcast %cst_30 : f32 to vector<8x256xf32>
    %105 = arith.addf %104, %103 : vector<8x256xf32>
    %106 = arith.divf %104, %105 : vector<8x256xf32>
    %107 = vector.extract_strided_slice %106 {offsets = [0, 0], sizes = [8, 128], strides = [1, 1]} : vector<8x256xf32> to vector<8x128xf32>
    %108 = vector.extract_strided_slice %106 {offsets = [0, 128], sizes = [8, 128], strides = [1, 1]} : vector<8x256xf32> to vector<8x128xf32>
    %109 = vector.extract_strided_slice %97 {offsets = [0, 256], sizes = [8, 128], strides = [1, 1]} : vector<8x384xf32> to vector<8x128xf32>
    %110 = vector.extract_strided_slice %98 {offsets = [0, 256], sizes = [8, 128], strides = [1, 1]} : vector<8x384xf32> to vector<8x128xf32>
    %111 = arith.addf %110, %6 : vector<8x128xf32>
    %112 = arith.mulf %107, %111 : vector<8x128xf32>
    %113 = arith.addf %109, %112 : vector<8x128xf32>
    %114 = math.tanh %113 : vector<8x128xf32>
    %cst_31 = arith.constant 1.000000e+00 : f32
    %115 = vector.broadcast %cst_31 : f32 to vector<8x128xf32>
    %116 = arith.subf %115, %108 : vector<8x128xf32>
    %117 = arith.mulf %116, %114 : vector<8x128xf32>
    %118 = arith.mulf %108, %90 : vector<8x128xf32>
    %119 = arith.addf %117, %118 : vector<8x128xf32>
    %120 = arith.index_cast %c3_i32 : i32 to index
    %c0_32 = arith.constant 0 : index
    %c0_33 = arith.constant 0 : index
    %121 = vector.load %arg5[%120, %c0_32, %c0_33] : memref<8x8x128xf32, #tpu.memory_space<vmem>>, vector<1x8x128xf32>
    %122 = vector.shape_cast %121 : vector<1x8x128xf32> to vector<8x128xf32>
    %123 = vector.shape_cast %119 : vector<8x128xf32> to vector<1x8x128xf32>
    tpu.vector_store %arg5[%120, %c0_32, %c0_33], %123 {strides = array<i32>} : memref<8x8x128xf32, #tpu.memory_space<vmem>>, vector<1x8x128xf32>,
    %c4_i32 = arith.constant 4 : i32
    %124 = arith.index_cast %c4_i32 : i32 to index
    %c0_34 = arith.constant 0 : index
    %c0_35 = arith.constant 0 : index
    %125 = vector.load %arg2[%124, %c0_34, %c0_35] : memref<8x8x384xf32, #tpu.memory_space<vmem>>, vector<1x8x384xf32>
    %126 = vector.shape_cast %125 : vector<1x8x384xf32> to vector<8x384xf32>
    %cst_36 = arith.constant dense<0.000000e+00> : vector<8x384xf32>
    %127 = tpu.matmul %119, %3, %cst_36 {dimension_numbers = #tpu.dot_dimension_numbers<[1], [0], [0], [1], [0, 0, 1, 1], [], []>} : vector<8x128xf32>, vector<128x384xf32>, vector<8x384xf32> -> vector<8x384xf32>
    %128 = vector.extract_strided_slice %126 {offsets = [0, 0], sizes = [8, 256], strides = [1, 1]} : vector<8x384xf32> to vector<8x256xf32>
    %129 = vector.extract_strided_slice %127 {offsets = [0, 0], sizes = [8, 256], strides = [1, 1]} : vector<8x384xf32> to vector<8x256xf32>
    %130 = arith.addf %128, %129 : vector<8x256xf32>
    %131 = arith.negf %130 : vector<8x256xf32>
    %132 = math.exp %131 : vector<8x256xf32>
    %cst_37 = arith.constant 1.000000e+00 : f32
    %133 = vector.broadcast %cst_37 : f32 to vector<8x256xf32>
    %134 = arith.addf %133, %132 : vector<8x256xf32>
    %135 = arith.divf %133, %134 : vector<8x256xf32>
    %136 = vector.extract_strided_slice %135 {offsets = [0, 0], sizes = [8, 128], strides = [1, 1]} : vector<8x256xf32> to vector<8x128xf32>
    %137 = vector.extract_strided_slice %135 {offsets = [0, 128], sizes = [8, 128], strides = [1, 1]} : vector<8x256xf32> to vector<8x128xf32>
    %138 = vector.extract_strided_slice %126 {offsets = [0, 256], sizes = [8, 128], strides = [1, 1]} : vector<8x384xf32> to vector<8x128xf32>
    %139 = vector.extract_strided_slice %127 {offsets = [0, 256], sizes = [8, 128], strides = [1, 1]} : vector<8x384xf32> to vector<8x128xf32>
    %140 = arith.addf %139, %6 : vector<8x128xf32>
    %141 = arith.mulf %136, %140 : vector<8x128xf32>
    %142 = arith.addf %138, %141 : vector<8x128xf32>
    %143 = math.tanh %142 : vector<8x128xf32>
    %cst_38 = arith.constant 1.000000e+00 : f32
    %144 = vector.broadcast %cst_38 : f32 to vector<8x128xf32>
    %145 = arith.subf %144, %137 : vector<8x128xf32>
    %146 = arith.mulf %145, %143 : vector<8x128xf32>
    %147 = arith.mulf %137, %119 : vector<8x128xf32>
    %148 = arith.addf %146, %147 : vector<8x128xf32>
    %149 = arith.index_cast %c4_i32 : i32 to index
    %c0_39 = arith.constant 0 : index
    %c0_40 = arith.constant 0 : index
    %150 = vector.load %arg5[%149, %c0_39, %c0_40] : memref<8x8x128xf32, #tpu.memory_space<vmem>>, vector<1x8x128xf32>
    %151 = vector.shape_cast %150 : vector<1x8x128xf32> to vector<8x128xf32>
    %152 = vector.shape_cast %148 : vector<8x128xf32> to vector<1x8x128xf32>
    tpu.vector_store %arg5[%149, %c0_39, %c0_40], %152 {strides = array<i32>} : memref<8x8x128xf32, #tpu.memory_space<vmem>>, vector<1x8x128xf32>,
    %c5_i32 = arith.constant 5 : i32
    %153 = arith.index_cast %c5_i32 : i32 to index
    %c0_41 = arith.constant 0 : index
    %c0_42 = arith.constant 0 : index
    %154 = vector.load %arg2[%153, %c0_41, %c0_42] : memref<8x8x384xf32, #tpu.memory_space<vmem>>, vector<1x8x384xf32>
    %155 = vector.shape_cast %154 : vector<1x8x384xf32> to vector<8x384xf32>
    %cst_43 = arith.constant dense<0.000000e+00> : vector<8x384xf32>
    %156 = tpu.matmul %148, %3, %cst_43 {dimension_numbers = #tpu.dot_dimension_numbers<[1], [0], [0], [1], [0, 0, 1, 1], [], []>} : vector<8x128xf32>, vector<128x384xf32>, vector<8x384xf32> -> vector<8x384xf32>
    %157 = vector.extract_strided_slice %155 {offsets = [0, 0], sizes = [8, 256], strides = [1, 1]} : vector<8x384xf32> to vector<8x256xf32>
    %158 = vector.extract_strided_slice %156 {offsets = [0, 0], sizes = [8, 256], strides = [1, 1]} : vector<8x384xf32> to vector<8x256xf32>
    %159 = arith.addf %157, %158 : vector<8x256xf32>
    %160 = arith.negf %159 : vector<8x256xf32>
    %161 = math.exp %160 : vector<8x256xf32>
    %cst_44 = arith.constant 1.000000e+00 : f32
    %162 = vector.broadcast %cst_44 : f32 to vector<8x256xf32>
    %163 = arith.addf %162, %161 : vector<8x256xf32>
    %164 = arith.divf %162, %163 : vector<8x256xf32>
    %165 = vector.extract_strided_slice %164 {offsets = [0, 0], sizes = [8, 128], strides = [1, 1]} : vector<8x256xf32> to vector<8x128xf32>
    %166 = vector.extract_strided_slice %164 {offsets = [0, 128], sizes = [8, 128], strides = [1, 1]} : vector<8x256xf32> to vector<8x128xf32>
    %167 = vector.extract_strided_slice %155 {offsets = [0, 256], sizes = [8, 128], strides = [1, 1]} : vector<8x384xf32> to vector<8x128xf32>
    %168 = vector.extract_strided_slice %156 {offsets = [0, 256], sizes = [8, 128], strides = [1, 1]} : vector<8x384xf32> to vector<8x128xf32>
    %169 = arith.addf %168, %6 : vector<8x128xf32>
    %170 = arith.mulf %165, %169 : vector<8x128xf32>
    %171 = arith.addf %167, %170 : vector<8x128xf32>
    %172 = math.tanh %171 : vector<8x128xf32>
    %cst_45 = arith.constant 1.000000e+00 : f32
    %173 = vector.broadcast %cst_45 : f32 to vector<8x128xf32>
    %174 = arith.subf %173, %166 : vector<8x128xf32>
    %175 = arith.mulf %174, %172 : vector<8x128xf32>
    %176 = arith.mulf %166, %148 : vector<8x128xf32>
    %177 = arith.addf %175, %176 : vector<8x128xf32>
    %178 = arith.index_cast %c5_i32 : i32 to index
    %c0_46 = arith.constant 0 : index
    %c0_47 = arith.constant 0 : index
    %179 = vector.load %arg5[%178, %c0_46, %c0_47] : memref<8x8x128xf32, #tpu.memory_space<vmem>>, vector<1x8x128xf32>
    %180 = vector.shape_cast %179 : vector<1x8x128xf32> to vector<8x128xf32>
    %181 = vector.shape_cast %177 : vector<8x128xf32> to vector<1x8x128xf32>
    tpu.vector_store %arg5[%178, %c0_46, %c0_47], %181 {strides = array<i32>} : memref<8x8x128xf32, #tpu.memory_space<vmem>>, vector<1x8x128xf32>,
    %c6_i32 = arith.constant 6 : i32
    %182 = arith.index_cast %c6_i32 : i32 to index
    %c0_48 = arith.constant 0 : index
    %c0_49 = arith.constant 0 : index
    %183 = vector.load %arg2[%182, %c0_48, %c0_49] : memref<8x8x384xf32, #tpu.memory_space<vmem>>, vector<1x8x384xf32>
    %184 = vector.shape_cast %183 : vector<1x8x384xf32> to vector<8x384xf32>
    %cst_50 = arith.constant dense<0.000000e+00> : vector<8x384xf32>
    %185 = tpu.matmul %177, %3, %cst_50 {dimension_numbers = #tpu.dot_dimension_numbers<[1], [0], [0], [1], [0, 0, 1, 1], [], []>} : vector<8x128xf32>, vector<128x384xf32>, vector<8x384xf32> -> vector<8x384xf32>
    %186 = vector.extract_strided_slice %184 {offsets = [0, 0], sizes = [8, 256], strides = [1, 1]} : vector<8x384xf32> to vector<8x256xf32>
    %187 = vector.extract_strided_slice %185 {offsets = [0, 0], sizes = [8, 256], strides = [1, 1]} : vector<8x384xf32> to vector<8x256xf32>
    %188 = arith.addf %186, %187 : vector<8x256xf32>
    %189 = arith.negf %188 : vector<8x256xf32>
    %190 = math.exp %189 : vector<8x256xf32>
    %cst_51 = arith.constant 1.000000e+00 : f32
    %191 = vector.broadcast %cst_51 : f32 to vector<8x256xf32>
    %192 = arith.addf %191, %190 : vector<8x256xf32>
    %193 = arith.divf %191, %192 : vector<8x256xf32>
    %194 = vector.extract_strided_slice %193 {offsets = [0, 0], sizes = [8, 128], strides = [1, 1]} : vector<8x256xf32> to vector<8x128xf32>
    %195 = vector.extract_strided_slice %193 {offsets = [0, 128], sizes = [8, 128], strides = [1, 1]} : vector<8x256xf32> to vector<8x128xf32>
    %196 = vector.extract_strided_slice %184 {offsets = [0, 256], sizes = [8, 128], strides = [1, 1]} : vector<8x384xf32> to vector<8x128xf32>
    %197 = vector.extract_strided_slice %185 {offsets = [0, 256], sizes = [8, 128], strides = [1, 1]} : vector<8x384xf32> to vector<8x128xf32>
    %198 = arith.addf %197, %6 : vector<8x128xf32>
    %199 = arith.mulf %194, %198 : vector<8x128xf32>
    %200 = arith.addf %196, %199 : vector<8x128xf32>
    %201 = math.tanh %200 : vector<8x128xf32>
    %cst_52 = arith.constant 1.000000e+00 : f32
    %202 = vector.broadcast %cst_52 : f32 to vector<8x128xf32>
    %203 = arith.subf %202, %195 : vector<8x128xf32>
    %204 = arith.mulf %203, %201 : vector<8x128xf32>
    %205 = arith.mulf %195, %177 : vector<8x128xf32>
    %206 = arith.addf %204, %205 : vector<8x128xf32>
    %207 = arith.index_cast %c6_i32 : i32 to index
    %c0_53 = arith.constant 0 : index
    %c0_54 = arith.constant 0 : index
    %208 = vector.load %arg5[%207, %c0_53, %c0_54] : memref<8x8x128xf32, #tpu.memory_space<vmem>>, vector<1x8x128xf32>
    %209 = vector.shape_cast %208 : vector<1x8x128xf32> to vector<8x128xf32>
    %210 = vector.shape_cast %206 : vector<8x128xf32> to vector<1x8x128xf32>
    tpu.vector_store %arg5[%207, %c0_53, %c0_54], %210 {strides = array<i32>} : memref<8x8x128xf32, #tpu.memory_space<vmem>>, vector<1x8x128xf32>,
    %c7_i32 = arith.constant 7 : i32
    %211 = arith.index_cast %c7_i32 : i32 to index
    %c0_55 = arith.constant 0 : index
    %c0_56 = arith.constant 0 : index
    %212 = vector.load %arg2[%211, %c0_55, %c0_56] : memref<8x8x384xf32, #tpu.memory_space<vmem>>, vector<1x8x384xf32>
    %213 = vector.shape_cast %212 : vector<1x8x384xf32> to vector<8x384xf32>
    %cst_57 = arith.constant dense<0.000000e+00> : vector<8x384xf32>
    %214 = tpu.matmul %206, %3, %cst_57 {dimension_numbers = #tpu.dot_dimension_numbers<[1], [0], [0], [1], [0, 0, 1, 1], [], []>} : vector<8x128xf32>, vector<128x384xf32>, vector<8x384xf32> -> vector<8x384xf32>
    %215 = vector.extract_strided_slice %213 {offsets = [0, 0], sizes = [8, 256], strides = [1, 1]} : vector<8x384xf32> to vector<8x256xf32>
    %216 = vector.extract_strided_slice %214 {offsets = [0, 0], sizes = [8, 256], strides = [1, 1]} : vector<8x384xf32> to vector<8x256xf32>
    %217 = arith.addf %215, %216 : vector<8x256xf32>
    %218 = arith.negf %217 : vector<8x256xf32>
    %219 = math.exp %218 : vector<8x256xf32>
    %cst_58 = arith.constant 1.000000e+00 : f32
    %220 = vector.broadcast %cst_58 : f32 to vector<8x256xf32>
    %221 = arith.addf %220, %219 : vector<8x256xf32>
    %222 = arith.divf %220, %221 : vector<8x256xf32>
    %223 = vector.extract_strided_slice %222 {offsets = [0, 0], sizes = [8, 128], strides = [1, 1]} : vector<8x256xf32> to vector<8x128xf32>
    %224 = vector.extract_strided_slice %222 {offsets = [0, 128], sizes = [8, 128], strides = [1, 1]} : vector<8x256xf32> to vector<8x128xf32>
    %225 = vector.extract_strided_slice %213 {offsets = [0, 256], sizes = [8, 128], strides = [1, 1]} : vector<8x384xf32> to vector<8x128xf32>
    %226 = vector.extract_strided_slice %214 {offsets = [0, 256], sizes = [8, 128], strides = [1, 1]} : vector<8x384xf32> to vector<8x128xf32>
    %227 = arith.addf %226, %6 : vector<8x128xf32>
    %228 = arith.mulf %223, %227 : vector<8x128xf32>
    %229 = arith.addf %225, %228 : vector<8x128xf32>
    %230 = math.tanh %229 : vector<8x128xf32>
    %cst_59 = arith.constant 1.000000e+00 : f32
    %231 = vector.broadcast %cst_59 : f32 to vector<8x128xf32>
    %232 = arith.subf %231, %224 : vector<8x128xf32>
    %233 = arith.mulf %232, %230 : vector<8x128xf32>
    %234 = arith.mulf %224, %206 : vector<8x128xf32>
    %235 = arith.addf %233, %234 : vector<8x128xf32>
    %236 = arith.index_cast %c7_i32 : i32 to index
    %c0_60 = arith.constant 0 : index
    %c0_61 = arith.constant 0 : index
    %237 = vector.load %arg5[%236, %c0_60, %c0_61] : memref<8x8x128xf32, #tpu.memory_space<vmem>>, vector<1x8x128xf32>
    %238 = vector.shape_cast %237 : vector<1x8x128xf32> to vector<8x128xf32>
    %239 = vector.shape_cast %235 : vector<8x128xf32> to vector<1x8x128xf32>
    tpu.vector_store %arg5[%236, %c0_60, %c0_61], %239 {strides = array<i32>} : memref<8x8x128xf32, #tpu.memory_space<vmem>>, vector<1x8x128xf32>,
    %c8_i32 = arith.constant 8 : i32
    %c0_62 = arith.constant 0 : index
    %c0_63 = arith.constant 0 : index
    %240 = vector.load %arg7[%c0_62, %c0_63] : memref<8x128xf32, #tpu.memory_space<vmem>>, vector<8x128xf32>
    tpu.vector_store %arg7[%c0_62, %c0_63], %235 {strides = array<i32>} : memref<8x128xf32, #tpu.memory_space<vmem>>, vector<8x128xf32>,
    %c0_i32_64 = arith.constant 0 : i32
    %241 = arith.cmpi eq, %arg1, %c0_i32_64 : i32
    %242 = arith.extui %241 : i1 to i32
    %c0_i32_65 = arith.constant 0 : i32
    %243 = arith.cmpi ne, %242, %c0_i32_65 : i32
    scf.if %243 {
      %c0_66 = arith.constant 0 : index
      %c0_67 = arith.constant 0 : index
      %244 = vector.load %arg7[%c0_66, %c0_67] : memref<8x128xf32, #tpu.memory_space<vmem>>, vector<8x128xf32>
      %c0_68 = arith.constant 0 : index
      %c0_69 = arith.constant 0 : index
      %245 = vector.load %arg6[%c0_68, %c0_69] : memref<8x128xf32, #tpu.memory_space<vmem>>, vector<8x128xf32>
      tpu.vector_store %arg6[%c0_68, %c0_69], %244 {strides = array<i32>} : memref<8x128xf32, #tpu.memory_space<vmem>>, vector<8x128xf32>,
    } else {
    }
    return
  }
  func.func @transform_0(%arg0: i32, %arg1: i32) -> (i32, i32, i32) {
    %c0_i32 = arith.constant 0 : i32
    %c0_i32_0 = arith.constant 0 : i32
    return %arg1, %arg0, %c0_i32 : i32, i32, i32
  }
  func.func @transform_1(%arg0: i32, %arg1: i32) -> (i32, i32) {
    %c0_i32 = arith.constant 0 : i32
    %c0_i32_0 = arith.constant 0 : i32
    %c0_i32_1 = arith.constant 0 : i32
    return %c0_i32, %c0_i32_0 : i32, i32
  }
  func.func @transform_2(%arg0: i32, %arg1: i32) -> (i32, i32) {
    %c0_i32 = arith.constant 0 : i32
    %c0_i32_0 = arith.constant 0 : i32
    %c0_i32_1 = arith.constant 0 : i32
    return %c0_i32, %c0_i32_0 : i32, i32
  }
  func.func @transform_3(%arg0: i32, %arg1: i32) -> (i32, i32, i32) {
    %c0_i32 = arith.constant 0 : i32
    %c0_i32_0 = arith.constant 0 : i32
    return %arg1, %arg0, %c0_i32 : i32, i32, i32
  }
  func.func @transform_4(%arg0: i32, %arg1: i32) -> (i32, i32) {
    %c0_i32 = arith.constant 0 : i32
    %c0_i32_0 = arith.constant 0 : i32
    return %arg0, %c0_i32 : i32, i32
  }
}

module attributes {stable_mosaic.version = 11 : i64} {
  func.func @gru_recurrence_kernel(%arg0: i32, %arg1: i32, %arg2: memref<8x8x384xf32, #tpu.memory_space<vmem>>, %arg3: memref<128x384xf32, #tpu.memory_space<vmem>>, %arg4: memref<1x128xf32, #tpu.memory_space<vmem>>, %arg5: memref<8x8x128xf32, #tpu.memory_space<vmem>>, %arg6: memref<8x128xf32, #tpu.memory_space<vmem>>, %arg7: memref<8x128xf32, #tpu.memory_space<vmem>>) attributes {dimension_semantics = [#tpu.dimension_semantics<parallel>, #tpu.dimension_semantics<arbitrary>], iteration_bounds = array<i64: 1, 1>, scalar_prefetch = 0 : i64, scratch_operands = 1 : i64, tpu.core_type = #tpu.core_type<tc>, window_params = [{transform_indices = @transform_0, window_bounds = array<i64: 8, 8, 384>}, {pipeline_mode = #tpu.pipeline_mode<synchronous>, transform_indices = @transform_1, window_bounds = array<i64: 128, 384>}, {pipeline_mode = #tpu.pipeline_mode<synchronous>, transform_indices = @transform_2, window_bounds = array<i64: 1, 128>}, {transform_indices = @transform_3, window_bounds = array<i64: 8, 8, 128>}, {transform_indices = @transform_4, window_bounds = array<i64: 8, 128>}]} {
    %c0_i32 = arith.constant 0 : i32
    %0 = arith.cmpi eq, %arg1, %c0_i32 : i32
    %1 = arith.extui %0 : i1 to i32
    %c0_i32_0 = arith.constant 0 : i32
    %2 = arith.cmpi ne, %1, %c0_i32_0 : i32
    scf.if %2 {
      %cst_66 = arith.constant 0.000000e+00 : f32
      %244 = vector.broadcast %cst_66 : f32 to vector<8x128xf32>
      %c0_67 = arith.constant 0 : index
      %c0_68 = arith.constant 0 : index
      %245 = vector.load %arg7[%c0_67, %c0_68] : memref<8x128xf32, #tpu.memory_space<vmem>>, vector<8x128xf32>
      tpu.vector_store %arg7[%c0_67, %c0_68], %244 {strides = array<i32>} : memref<8x128xf32, #tpu.memory_space<vmem>>, vector<8x128xf32>,
    } else {
    }
    %c0 = arith.constant 0 : index
    %c0_1 = arith.constant 0 : index
    %3 = vector.load %arg3[%c0, %c0_1] : memref<128x384xf32, #tpu.memory_space<vmem>>, vector<128x384xf32>
    %c0_2 = arith.constant 0 : index
    %c0_3 = arith.constant 0 : index
    %4 = vector.load %arg4[%c0_2, %c0_3] : memref<1x128xf32, #tpu.memory_space<vmem>>, vector<1x128xf32>
    %5 = vector.shape_cast %4 : vector<1x128xf32> to vector<1x128xf32>
    %6 = vector.broadcast %5 : vector<1x128xf32> to vector<8x128xf32>
    %c0_4 = arith.constant 0 : index
    %c0_5 = arith.constant 0 : index
    %7 = vector.load %arg7[%c0_4, %c0_5] : memref<8x128xf32, #tpu.memory_space<vmem>>, vector<8x128xf32>
    %c0_i32_6 = arith.constant 0 : i32
    %8 = arith.index_cast %c0_i32_6 : i32 to index
    %c0_7 = arith.constant 0 : index
    %c0_8 = arith.constant 0 : index
    %9 = vector.load %arg2[%8, %c0_7, %c0_8] : memref<8x8x384xf32, #tpu.memory_space<vmem>>, vector<1x8x384xf32>
    %10 = vector.shape_cast %9 : vector<1x8x384xf32> to vector<8x384xf32>
    %cst = arith.constant dense<0.000000e+00> : vector<8x384xf32>
    %11 = tpu.matmul %7, %3, %cst {dimension_numbers = #tpu.dot_dimension_numbers<[1], [0], [0], [1], [0, 0, 1, 1], [], []>} : vector<8x128xf32>, vector<128x384xf32>, vector<8x384xf32> -> vector<8x384xf32>
    %12 = vector.extract_strided_slice %10 {offsets = [0, 0], sizes = [8, 256], strides = [1, 1]} : vector<8x384xf32> to vector<8x256xf32>
    %13 = vector.extract_strided_slice %11 {offsets = [0, 0], sizes = [8, 256], strides = [1, 1]} : vector<8x384xf32> to vector<8x256xf32>
    %14 = arith.addf %12, %13 : vector<8x256xf32>
    %15 = arith.negf %14 : vector<8x256xf32>
    %16 = math.exp %15 : vector<8x256xf32>
    %cst_9 = arith.constant 1.000000e+00 : f32
    %17 = vector.broadcast %cst_9 : f32 to vector<8x256xf32>
    %18 = arith.addf %17, %16 : vector<8x256xf32>
    %19 = arith.divf %17, %18 : vector<8x256xf32>
    %20 = vector.extract_strided_slice %19 {offsets = [0, 0], sizes = [8, 128], strides = [1, 1]} : vector<8x256xf32> to vector<8x128xf32>
    %21 = vector.extract_strided_slice %19 {offsets = [0, 128], sizes = [8, 128], strides = [1, 1]} : vector<8x256xf32> to vector<8x128xf32>
    %22 = vector.extract_strided_slice %10 {offsets = [0, 256], sizes = [8, 128], strides = [1, 1]} : vector<8x384xf32> to vector<8x128xf32>
    %23 = vector.extract_strided_slice %11 {offsets = [0, 256], sizes = [8, 128], strides = [1, 1]} : vector<8x384xf32> to vector<8x128xf32>
    %24 = arith.addf %23, %6 : vector<8x128xf32>
    %25 = arith.mulf %20, %24 : vector<8x128xf32>
    %26 = arith.addf %22, %25 : vector<8x128xf32>
    %27 = math.tanh %26 : vector<8x128xf32>
    %cst_10 = arith.constant 1.000000e+00 : f32
    %28 = vector.broadcast %cst_10 : f32 to vector<8x128xf32>
    %29 = arith.subf %28, %21 : vector<8x128xf32>
    %30 = arith.mulf %29, %27 : vector<8x128xf32>
    %31 = arith.mulf %21, %7 : vector<8x128xf32>
    %32 = arith.addf %30, %31 : vector<8x128xf32>
    %33 = arith.index_cast %c0_i32_6 : i32 to index
    %c0_11 = arith.constant 0 : index
    %c0_12 = arith.constant 0 : index
    %34 = vector.load %arg5[%33, %c0_11, %c0_12] : memref<8x8x128xf32, #tpu.memory_space<vmem>>, vector<1x8x128xf32>
    %35 = vector.shape_cast %34 : vector<1x8x128xf32> to vector<8x128xf32>
    %36 = vector.shape_cast %32 : vector<8x128xf32> to vector<1x8x128xf32>
    tpu.vector_store %arg5[%33, %c0_11, %c0_12], %36 {strides = array<i32>} : memref<8x8x128xf32, #tpu.memory_space<vmem>>, vector<1x8x128xf32>,
    %c1_i32 = arith.constant 1 : i32
    %37 = arith.index_cast %c1_i32 : i32 to index
    %c0_13 = arith.constant 0 : index
    %c0_14 = arith.constant 0 : index
    %38 = vector.load %arg2[%37, %c0_13, %c0_14] : memref<8x8x384xf32, #tpu.memory_space<vmem>>, vector<1x8x384xf32>
    %39 = vector.shape_cast %38 : vector<1x8x384xf32> to vector<8x384xf32>
    %cst_15 = arith.constant dense<0.000000e+00> : vector<8x384xf32>
    %40 = tpu.matmul %32, %3, %cst_15 {dimension_numbers = #tpu.dot_dimension_numbers<[1], [0], [0], [1], [0, 0, 1, 1], [], []>} : vector<8x128xf32>, vector<128x384xf32>, vector<8x384xf32> -> vector<8x384xf32>
    %41 = vector.extract_strided_slice %39 {offsets = [0, 0], sizes = [8, 256], strides = [1, 1]} : vector<8x384xf32> to vector<8x256xf32>
    %42 = vector.extract_strided_slice %40 {offsets = [0, 0], sizes = [8, 256], strides = [1, 1]} : vector<8x384xf32> to vector<8x256xf32>
    %43 = arith.addf %41, %42 : vector<8x256xf32>
    %44 = arith.negf %43 : vector<8x256xf32>
    %45 = math.exp %44 : vector<8x256xf32>
    %cst_16 = arith.constant 1.000000e+00 : f32
    %46 = vector.broadcast %cst_16 : f32 to vector<8x256xf32>
    %47 = arith.addf %46, %45 : vector<8x256xf32>
    %48 = arith.divf %46, %47 : vector<8x256xf32>
    %49 = vector.extract_strided_slice %48 {offsets = [0, 0], sizes = [8, 128], strides = [1, 1]} : vector<8x256xf32> to vector<8x128xf32>
    %50 = vector.extract_strided_slice %48 {offsets = [0, 128], sizes = [8, 128], strides = [1, 1]} : vector<8x256xf32> to vector<8x128xf32>
    %51 = vector.extract_strided_slice %39 {offsets = [0, 256], sizes = [8, 128], strides = [1, 1]} : vector<8x384xf32> to vector<8x128xf32>
    %52 = vector.extract_strided_slice %40 {offsets = [0, 256], sizes = [8, 128], strides = [1, 1]} : vector<8x384xf32> to vector<8x128xf32>
    %53 = arith.addf %52, %6 : vector<8x128xf32>
    %54 = arith.mulf %49, %53 : vector<8x128xf32>
    %55 = arith.addf %51, %54 : vector<8x128xf32>
    %56 = math.tanh %55 : vector<8x128xf32>
    %cst_17 = arith.constant 1.000000e+00 : f32
    %57 = vector.broadcast %cst_17 : f32 to vector<8x128xf32>
    %58 = arith.subf %57, %50 : vector<8x128xf32>
    %59 = arith.mulf %58, %56 : vector<8x128xf32>
    %60 = arith.mulf %50, %32 : vector<8x128xf32>
    %61 = arith.addf %59, %60 : vector<8x128xf32>
    %62 = arith.index_cast %c1_i32 : i32 to index
    %c0_18 = arith.constant 0 : index
    %c0_19 = arith.constant 0 : index
    %63 = vector.load %arg5[%62, %c0_18, %c0_19] : memref<8x8x128xf32, #tpu.memory_space<vmem>>, vector<1x8x128xf32>
    %64 = vector.shape_cast %63 : vector<1x8x128xf32> to vector<8x128xf32>
    %65 = vector.shape_cast %61 : vector<8x128xf32> to vector<1x8x128xf32>
    tpu.vector_store %arg5[%62, %c0_18, %c0_19], %65 {strides = array<i32>} : memref<8x8x128xf32, #tpu.memory_space<vmem>>, vector<1x8x128xf32>,
    %c2_i32 = arith.constant 2 : i32
    %66 = arith.index_cast %c2_i32 : i32 to index
    %c0_20 = arith.constant 0 : index
    %c0_21 = arith.constant 0 : index
    %67 = vector.load %arg2[%66, %c0_20, %c0_21] : memref<8x8x384xf32, #tpu.memory_space<vmem>>, vector<1x8x384xf32>
    %68 = vector.shape_cast %67 : vector<1x8x384xf32> to vector<8x384xf32>
    %cst_22 = arith.constant dense<0.000000e+00> : vector<8x384xf32>
    %69 = tpu.matmul %61, %3, %cst_22 {dimension_numbers = #tpu.dot_dimension_numbers<[1], [0], [0], [1], [0, 0, 1, 1], [], []>} : vector<8x128xf32>, vector<128x384xf32>, vector<8x384xf32> -> vector<8x384xf32>
    %70 = vector.extract_strided_slice %68 {offsets = [0, 0], sizes = [8, 256], strides = [1, 1]} : vector<8x384xf32> to vector<8x256xf32>
    %71 = vector.extract_strided_slice %69 {offsets = [0, 0], sizes = [8, 256], strides = [1, 1]} : vector<8x384xf32> to vector<8x256xf32>
    %72 = arith.addf %70, %71 : vector<8x256xf32>
    %73 = arith.negf %72 : vector<8x256xf32>
    %74 = math.exp %73 : vector<8x256xf32>
    %cst_23 = arith.constant 1.000000e+00 : f32
    %75 = vector.broadcast %cst_23 : f32 to vector<8x256xf32>
    %76 = arith.addf %75, %74 : vector<8x256xf32>
    %77 = arith.divf %75, %76 : vector<8x256xf32>
    %78 = vector.extract_strided_slice %77 {offsets = [0, 0], sizes = [8, 128], strides = [1, 1]} : vector<8x256xf32> to vector<8x128xf32>
    %79 = vector.extract_strided_slice %77 {offsets = [0, 128], sizes = [8, 128], strides = [1, 1]} : vector<8x256xf32> to vector<8x128xf32>
    %80 = vector.extract_strided_slice %68 {offsets = [0, 256], sizes = [8, 128], strides = [1, 1]} : vector<8x384xf32> to vector<8x128xf32>
    %81 = vector.extract_strided_slice %69 {offsets = [0, 256], sizes = [8, 128], strides = [1, 1]} : vector<8x384xf32> to vector<8x128xf32>
    %82 = arith.addf %81, %6 : vector<8x128xf32>
    %83 = arith.mulf %78, %82 : vector<8x128xf32>
    %84 = arith.addf %80, %83 : vector<8x128xf32>
    %85 = math.tanh %84 : vector<8x128xf32>
    %cst_24 = arith.constant 1.000000e+00 : f32
    %86 = vector.broadcast %cst_24 : f32 to vector<8x128xf32>
    %87 = arith.subf %86, %79 : vector<8x128xf32>
    %88 = arith.mulf %87, %85 : vector<8x128xf32>
    %89 = arith.mulf %79, %61 : vector<8x128xf32>
    %90 = arith.addf %88, %89 : vector<8x128xf32>
    %91 = arith.index_cast %c2_i32 : i32 to index
    %c0_25 = arith.constant 0 : index
    %c0_26 = arith.constant 0 : index
    %92 = vector.load %arg5[%91, %c0_25, %c0_26] : memref<8x8x128xf32, #tpu.memory_space<vmem>>, vector<1x8x128xf32>
    %93 = vector.shape_cast %92 : vector<1x8x128xf32> to vector<8x128xf32>
    %94 = vector.shape_cast %90 : vector<8x128xf32> to vector<1x8x128xf32>
    tpu.vector_store %arg5[%91, %c0_25, %c0_26], %94 {strides = array<i32>} : memref<8x8x128xf32, #tpu.memory_space<vmem>>, vector<1x8x128xf32>,
    %c3_i32 = arith.constant 3 : i32
    %95 = arith.index_cast %c3_i32 : i32 to index
    %c0_27 = arith.constant 0 : index
    %c0_28 = arith.constant 0 : index
    %96 = vector.load %arg2[%95, %c0_27, %c0_28] : memref<8x8x384xf32, #tpu.memory_space<vmem>>, vector<1x8x384xf32>
    %97 = vector.shape_cast %96 : vector<1x8x384xf32> to vector<8x384xf32>
    %cst_29 = arith.constant dense<0.000000e+00> : vector<8x384xf32>
    %98 = tpu.matmul %90, %3, %cst_29 {dimension_numbers = #tpu.dot_dimension_numbers<[1], [0], [0], [1], [0, 0, 1, 1], [], []>} : vector<8x128xf32>, vector<128x384xf32>, vector<8x384xf32> -> vector<8x384xf32>
    %99 = vector.extract_strided_slice %97 {offsets = [0, 0], sizes = [8, 256], strides = [1, 1]} : vector<8x384xf32> to vector<8x256xf32>
    %100 = vector.extract_strided_slice %98 {offsets = [0, 0], sizes = [8, 256], strides = [1, 1]} : vector<8x384xf32> to vector<8x256xf32>
    %101 = arith.addf %99, %100 : vector<8x256xf32>
    %102 = arith.negf %101 : vector<8x256xf32>
    %103 = math.exp %102 : vector<8x256xf32>
    %cst_30 = arith.constant 1.000000e+00 : f32
    %104 = vector.broadcast %cst_30 : f32 to vector<8x256xf32>
    %105 = arith.addf %104, %103 : vector<8x256xf32>
    %106 = arith.divf %104, %105 : vector<8x256xf32>
    %107 = vector.extract_strided_slice %106 {offsets = [0, 0], sizes = [8, 128], strides = [1, 1]} : vector<8x256xf32> to vector<8x128xf32>
    %108 = vector.extract_strided_slice %106 {offsets = [0, 128], sizes = [8, 128], strides = [1, 1]} : vector<8x256xf32> to vector<8x128xf32>
    %109 = vector.extract_strided_slice %97 {offsets = [0, 256], sizes = [8, 128], strides = [1, 1]} : vector<8x384xf32> to vector<8x128xf32>
    %110 = vector.extract_strided_slice %98 {offsets = [0, 256], sizes = [8, 128], strides = [1, 1]} : vector<8x384xf32> to vector<8x128xf32>
    %111 = arith.addf %110, %6 : vector<8x128xf32>
    %112 = arith.mulf %107, %111 : vector<8x128xf32>
    %113 = arith.addf %109, %112 : vector<8x128xf32>
    %114 = math.tanh %113 : vector<8x128xf32>
    %cst_31 = arith.constant 1.000000e+00 : f32
    %115 = vector.broadcast %cst_31 : f32 to vector<8x128xf32>
    %116 = arith.subf %115, %108 : vector<8x128xf32>
    %117 = arith.mulf %116, %114 : vector<8x128xf32>
    %118 = arith.mulf %108, %90 : vector<8x128xf32>
    %119 = arith.addf %117, %118 : vector<8x128xf32>
    %120 = arith.index_cast %c3_i32 : i32 to index
    %c0_32 = arith.constant 0 : index
    %c0_33 = arith.constant 0 : index
    %121 = vector.load %arg5[%120, %c0_32, %c0_33] : memref<8x8x128xf32, #tpu.memory_space<vmem>>, vector<1x8x128xf32>
    %122 = vector.shape_cast %121 : vector<1x8x128xf32> to vector<8x128xf32>
    %123 = vector.shape_cast %119 : vector<8x128xf32> to vector<1x8x128xf32>
    tpu.vector_store %arg5[%120, %c0_32, %c0_33], %123 {strides = array<i32>} : memref<8x8x128xf32, #tpu.memory_space<vmem>>, vector<1x8x128xf32>,
    %c4_i32 = arith.constant 4 : i32
    %124 = arith.index_cast %c4_i32 : i32 to index
    %c0_34 = arith.constant 0 : index
    %c0_35 = arith.constant 0 : index
    %125 = vector.load %arg2[%124, %c0_34, %c0_35] : memref<8x8x384xf32, #tpu.memory_space<vmem>>, vector<1x8x384xf32>
    %126 = vector.shape_cast %125 : vector<1x8x384xf32> to vector<8x384xf32>
    %cst_36 = arith.constant dense<0.000000e+00> : vector<8x384xf32>
    %127 = tpu.matmul %119, %3, %cst_36 {dimension_numbers = #tpu.dot_dimension_numbers<[1], [0], [0], [1], [0, 0, 1, 1], [], []>} : vector<8x128xf32>, vector<128x384xf32>, vector<8x384xf32> -> vector<8x384xf32>
    %128 = vector.extract_strided_slice %126 {offsets = [0, 0], sizes = [8, 256], strides = [1, 1]} : vector<8x384xf32> to vector<8x256xf32>
    %129 = vector.extract_strided_slice %127 {offsets = [0, 0], sizes = [8, 256], strides = [1, 1]} : vector<8x384xf32> to vector<8x256xf32>
    %130 = arith.addf %128, %129 : vector<8x256xf32>
    %131 = arith.negf %130 : vector<8x256xf32>
    %132 = math.exp %131 : vector<8x256xf32>
    %cst_37 = arith.constant 1.000000e+00 : f32
    %133 = vector.broadcast %cst_37 : f32 to vector<8x256xf32>
    %134 = arith.addf %133, %132 : vector<8x256xf32>
    %135 = arith.divf %133, %134 : vector<8x256xf32>
    %136 = vector.extract_strided_slice %135 {offsets = [0, 0], sizes = [8, 128], strides = [1, 1]} : vector<8x256xf32> to vector<8x128xf32>
    %137 = vector.extract_strided_slice %135 {offsets = [0, 128], sizes = [8, 128], strides = [1, 1]} : vector<8x256xf32> to vector<8x128xf32>
    %138 = vector.extract_strided_slice %126 {offsets = [0, 256], sizes = [8, 128], strides = [1, 1]} : vector<8x384xf32> to vector<8x128xf32>
    %139 = vector.extract_strided_slice %127 {offsets = [0, 256], sizes = [8, 128], strides = [1, 1]} : vector<8x384xf32> to vector<8x128xf32>
    %140 = arith.addf %139, %6 : vector<8x128xf32>
    %141 = arith.mulf %136, %140 : vector<8x128xf32>
    %142 = arith.addf %138, %141 : vector<8x128xf32>
    %143 = math.tanh %142 : vector<8x128xf32>
    %cst_38 = arith.constant 1.000000e+00 : f32
    %144 = vector.broadcast %cst_38 : f32 to vector<8x128xf32>
    %145 = arith.subf %144, %137 : vector<8x128xf32>
    %146 = arith.mulf %145, %143 : vector<8x128xf32>
    %147 = arith.mulf %137, %119 : vector<8x128xf32>
    %148 = arith.addf %146, %147 : vector<8x128xf32>
    %149 = arith.index_cast %c4_i32 : i32 to index
    %c0_39 = arith.constant 0 : index
    %c0_40 = arith.constant 0 : index
    %150 = vector.load %arg5[%149, %c0_39, %c0_40] : memref<8x8x128xf32, #tpu.memory_space<vmem>>, vector<1x8x128xf32>
    %151 = vector.shape_cast %150 : vector<1x8x128xf32> to vector<8x128xf32>
    %152 = vector.shape_cast %148 : vector<8x128xf32> to vector<1x8x128xf32>
    tpu.vector_store %arg5[%149, %c0_39, %c0_40], %152 {strides = array<i32>} : memref<8x8x128xf32, #tpu.memory_space<vmem>>, vector<1x8x128xf32>,
    %c5_i32 = arith.constant 5 : i32
    %153 = arith.index_cast %c5_i32 : i32 to index
    %c0_41 = arith.constant 0 : index
    %c0_42 = arith.constant 0 : index
    %154 = vector.load %arg2[%153, %c0_41, %c0_42] : memref<8x8x384xf32, #tpu.memory_space<vmem>>, vector<1x8x384xf32>
    %155 = vector.shape_cast %154 : vector<1x8x384xf32> to vector<8x384xf32>
    %cst_43 = arith.constant dense<0.000000e+00> : vector<8x384xf32>
    %156 = tpu.matmul %148, %3, %cst_43 {dimension_numbers = #tpu.dot_dimension_numbers<[1], [0], [0], [1], [0, 0, 1, 1], [], []>} : vector<8x128xf32>, vector<128x384xf32>, vector<8x384xf32> -> vector<8x384xf32>
    %157 = vector.extract_strided_slice %155 {offsets = [0, 0], sizes = [8, 256], strides = [1, 1]} : vector<8x384xf32> to vector<8x256xf32>
    %158 = vector.extract_strided_slice %156 {offsets = [0, 0], sizes = [8, 256], strides = [1, 1]} : vector<8x384xf32> to vector<8x256xf32>
    %159 = arith.addf %157, %158 : vector<8x256xf32>
    %160 = arith.negf %159 : vector<8x256xf32>
    %161 = math.exp %160 : vector<8x256xf32>
    %cst_44 = arith.constant 1.000000e+00 : f32
    %162 = vector.broadcast %cst_44 : f32 to vector<8x256xf32>
    %163 = arith.addf %162, %161 : vector<8x256xf32>
    %164 = arith.divf %162, %163 : vector<8x256xf32>
    %165 = vector.extract_strided_slice %164 {offsets = [0, 0], sizes = [8, 128], strides = [1, 1]} : vector<8x256xf32> to vector<8x128xf32>
    %166 = vector.extract_strided_slice %164 {offsets = [0, 128], sizes = [8, 128], strides = [1, 1]} : vector<8x256xf32> to vector<8x128xf32>
    %167 = vector.extract_strided_slice %155 {offsets = [0, 256], sizes = [8, 128], strides = [1, 1]} : vector<8x384xf32> to vector<8x128xf32>
    %168 = vector.extract_strided_slice %156 {offsets = [0, 256], sizes = [8, 128], strides = [1, 1]} : vector<8x384xf32> to vector<8x128xf32>
    %169 = arith.addf %168, %6 : vector<8x128xf32>
    %170 = arith.mulf %165, %169 : vector<8x128xf32>
    %171 = arith.addf %167, %170 : vector<8x128xf32>
    %172 = math.tanh %171 : vector<8x128xf32>
    %cst_45 = arith.constant 1.000000e+00 : f32
    %173 = vector.broadcast %cst_45 : f32 to vector<8x128xf32>
    %174 = arith.subf %173, %166 : vector<8x128xf32>
    %175 = arith.mulf %174, %172 : vector<8x128xf32>
    %176 = arith.mulf %166, %148 : vector<8x128xf32>
    %177 = arith.addf %175, %176 : vector<8x128xf32>
    %178 = arith.index_cast %c5_i32 : i32 to index
    %c0_46 = arith.constant 0 : index
    %c0_47 = arith.constant 0 : index
    %179 = vector.load %arg5[%178, %c0_46, %c0_47] : memref<8x8x128xf32, #tpu.memory_space<vmem>>, vector<1x8x128xf32>
    %180 = vector.shape_cast %179 : vector<1x8x128xf32> to vector<8x128xf32>
    %181 = vector.shape_cast %177 : vector<8x128xf32> to vector<1x8x128xf32>
    tpu.vector_store %arg5[%178, %c0_46, %c0_47], %181 {strides = array<i32>} : memref<8x8x128xf32, #tpu.memory_space<vmem>>, vector<1x8x128xf32>,
    %c6_i32 = arith.constant 6 : i32
    %182 = arith.index_cast %c6_i32 : i32 to index
    %c0_48 = arith.constant 0 : index
    %c0_49 = arith.constant 0 : index
    %183 = vector.load %arg2[%182, %c0_48, %c0_49] : memref<8x8x384xf32, #tpu.memory_space<vmem>>, vector<1x8x384xf32>
    %184 = vector.shape_cast %183 : vector<1x8x384xf32> to vector<8x384xf32>
    %cst_50 = arith.constant dense<0.000000e+00> : vector<8x384xf32>
    %185 = tpu.matmul %177, %3, %cst_50 {dimension_numbers = #tpu.dot_dimension_numbers<[1], [0], [0], [1], [0, 0, 1, 1], [], []>} : vector<8x128xf32>, vector<128x384xf32>, vector<8x384xf32> -> vector<8x384xf32>
    %186 = vector.extract_strided_slice %184 {offsets = [0, 0], sizes = [8, 256], strides = [1, 1]} : vector<8x384xf32> to vector<8x256xf32>
    %187 = vector.extract_strided_slice %185 {offsets = [0, 0], sizes = [8, 256], strides = [1, 1]} : vector<8x384xf32> to vector<8x256xf32>
    %188 = arith.addf %186, %187 : vector<8x256xf32>
    %189 = arith.negf %188 : vector<8x256xf32>
    %190 = math.exp %189 : vector<8x256xf32>
    %cst_51 = arith.constant 1.000000e+00 : f32
    %191 = vector.broadcast %cst_51 : f32 to vector<8x256xf32>
    %192 = arith.addf %191, %190 : vector<8x256xf32>
    %193 = arith.divf %191, %192 : vector<8x256xf32>
    %194 = vector.extract_strided_slice %193 {offsets = [0, 0], sizes = [8, 128], strides = [1, 1]} : vector<8x256xf32> to vector<8x128xf32>
    %195 = vector.extract_strided_slice %193 {offsets = [0, 128], sizes = [8, 128], strides = [1, 1]} : vector<8x256xf32> to vector<8x128xf32>
    %196 = vector.extract_strided_slice %184 {offsets = [0, 256], sizes = [8, 128], strides = [1, 1]} : vector<8x384xf32> to vector<8x128xf32>
    %197 = vector.extract_strided_slice %185 {offsets = [0, 256], sizes = [8, 128], strides = [1, 1]} : vector<8x384xf32> to vector<8x128xf32>
    %198 = arith.addf %197, %6 : vector<8x128xf32>
    %199 = arith.mulf %194, %198 : vector<8x128xf32>
    %200 = arith.addf %196, %199 : vector<8x128xf32>
    %201 = math.tanh %200 : vector<8x128xf32>
    %cst_52 = arith.constant 1.000000e+00 : f32
    %202 = vector.broadcast %cst_52 : f32 to vector<8x128xf32>
    %203 = arith.subf %202, %195 : vector<8x128xf32>
    %204 = arith.mulf %203, %201 : vector<8x128xf32>
    %205 = arith.mulf %195, %177 : vector<8x128xf32>
    %206 = arith.addf %204, %205 : vector<8x128xf32>
    %207 = arith.index_cast %c6_i32 : i32 to index
    %c0_53 = arith.constant 0 : index
    %c0_54 = arith.constant 0 : index
    %208 = vector.load %arg5[%207, %c0_53, %c0_54] : memref<8x8x128xf32, #tpu.memory_space<vmem>>, vector<1x8x128xf32>
    %209 = vector.shape_cast %208 : vector<1x8x128xf32> to vector<8x128xf32>
    %210 = vector.shape_cast %206 : vector<8x128xf32> to vector<1x8x128xf32>
    tpu.vector_store %arg5[%207, %c0_53, %c0_54], %210 {strides = array<i32>} : memref<8x8x128xf32, #tpu.memory_space<vmem>>, vector<1x8x128xf32>,
    %c7_i32 = arith.constant 7 : i32
    %211 = arith.index_cast %c7_i32 : i32 to index
    %c0_55 = arith.constant 0 : index
    %c0_56 = arith.constant 0 : index
    %212 = vector.load %arg2[%211, %c0_55, %c0_56] : memref<8x8x384xf32, #tpu.memory_space<vmem>>, vector<1x8x384xf32>
    %213 = vector.shape_cast %212 : vector<1x8x384xf32> to vector<8x384xf32>
    %cst_57 = arith.constant dense<0.000000e+00> : vector<8x384xf32>
    %214 = tpu.matmul %206, %3, %cst_57 {dimension_numbers = #tpu.dot_dimension_numbers<[1], [0], [0], [1], [0, 0, 1, 1], [], []>} : vector<8x128xf32>, vector<128x384xf32>, vector<8x384xf32> -> vector<8x384xf32>
    %215 = vector.extract_strided_slice %213 {offsets = [0, 0], sizes = [8, 256], strides = [1, 1]} : vector<8x384xf32> to vector<8x256xf32>
    %216 = vector.extract_strided_slice %214 {offsets = [0, 0], sizes = [8, 256], strides = [1, 1]} : vector<8x384xf32> to vector<8x256xf32>
    %217 = arith.addf %215, %216 : vector<8x256xf32>
    %218 = arith.negf %217 : vector<8x256xf32>
    %219 = math.exp %218 : vector<8x256xf32>
    %cst_58 = arith.constant 1.000000e+00 : f32
    %220 = vector.broadcast %cst_58 : f32 to vector<8x256xf32>
    %221 = arith.addf %220, %219 : vector<8x256xf32>
    %222 = arith.divf %220, %221 : vector<8x256xf32>
    %223 = vector.extract_strided_slice %222 {offsets = [0, 0], sizes = [8, 128], strides = [1, 1]} : vector<8x256xf32> to vector<8x128xf32>
    %224 = vector.extract_strided_slice %222 {offsets = [0, 128], sizes = [8, 128], strides = [1, 1]} : vector<8x256xf32> to vector<8x128xf32>
    %225 = vector.extract_strided_slice %213 {offsets = [0, 256], sizes = [8, 128], strides = [1, 1]} : vector<8x384xf32> to vector<8x128xf32>
    %226 = vector.extract_strided_slice %214 {offsets = [0, 256], sizes = [8, 128], strides = [1, 1]} : vector<8x384xf32> to vector<8x128xf32>
    %227 = arith.addf %226, %6 : vector<8x128xf32>
    %228 = arith.mulf %223, %227 : vector<8x128xf32>
    %229 = arith.addf %225, %228 : vector<8x128xf32>
    %230 = math.tanh %229 : vector<8x128xf32>
    %cst_59 = arith.constant 1.000000e+00 : f32
    %231 = vector.broadcast %cst_59 : f32 to vector<8x128xf32>
    %232 = arith.subf %231, %224 : vector<8x128xf32>
    %233 = arith.mulf %232, %230 : vector<8x128xf32>
    %234 = arith.mulf %224, %206 : vector<8x128xf32>
    %235 = arith.addf %233, %234 : vector<8x128xf32>
    %236 = arith.index_cast %c7_i32 : i32 to index
    %c0_60 = arith.constant 0 : index
    %c0_61 = arith.constant 0 : index
    %237 = vector.load %arg5[%236, %c0_60, %c0_61] : memref<8x8x128xf32, #tpu.memory_space<vmem>>, vector<1x8x128xf32>
    %238 = vector.shape_cast %237 : vector<1x8x128xf32> to vector<8x128xf32>
    %239 = vector.shape_cast %235 : vector<8x128xf32> to vector<1x8x128xf32>
    tpu.vector_store %arg5[%236, %c0_60, %c0_61], %239 {strides = array<i32>} : memref<8x8x128xf32, #tpu.memory_space<vmem>>, vector<1x8x128xf32>,
    %c8_i32 = arith.constant 8 : i32
    %c0_62 = arith.constant 0 : index
    %c0_63 = arith.constant 0 : index
    %240 = vector.load %arg7[%c0_62, %c0_63] : memref<8x128xf32, #tpu.memory_space<vmem>>, vector<8x128xf32>
    tpu.vector_store %arg7[%c0_62, %c0_63], %235 {strides = array<i32>} : memref<8x128xf32, #tpu.memory_space<vmem>>, vector<8x128xf32>,
    %c0_i32_64 = arith.constant 0 : i32
    %241 = arith.cmpi eq, %arg1, %c0_i32_64 : i32
    %242 = arith.extui %241 : i1 to i32
    %c0_i32_65 = arith.constant 0 : i32
    %243 = arith.cmpi ne, %242, %c0_i32_65 : i32
    scf.if %243 {
      %c0_66 = arith.constant 0 : index
      %c0_67 = arith.constant 0 : index
      %244 = vector.load %arg7[%c0_66, %c0_67] : memref<8x128xf32, #tpu.memory_space<vmem>>, vector<8x128xf32>
      %c0_68 = arith.constant 0 : index
      %c0_69 = arith.constant 0 : index
      %245 = vector.load %arg6[%c0_68, %c0_69] : memref<8x128xf32, #tpu.memory_space<vmem>>, vector<8x128xf32>
      tpu.vector_store %arg6[%c0_68, %c0_69], %244 {strides = array<i32>} : memref<8x128xf32, #tpu.memory_space<vmem>>, vector<8x128xf32>,
    } else {
    }
    return
  }
  func.func @transform_0(%arg0: i32, %arg1: i32) -> (i32, i32, i32) {
    %c0_i32 = arith.constant 0 : i32
    %c0_i32_0 = arith.constant 0 : i32
    return %arg1, %arg0, %c0_i32 : i32, i32, i32
  }
  func.func @transform_1(%arg0: i32, %arg1: i32) -> (i32, i32) {
    %c0_i32 = arith.constant 0 : i32
    %c0_i32_0 = arith.constant 0 : i32
    %c0_i32_1 = arith.constant 0 : i32
    return %c0_i32, %c0_i32_0 : i32, i32
  }
  func.func @transform_2(%arg0: i32, %arg1: i32) -> (i32, i32) {
    %c0_i32 = arith.constant 0 : i32
    %c0_i32_0 = arith.constant 0 : i32
    %c0_i32_1 = arith.constant 0 : i32
    return %c0_i32, %c0_i32_0 : i32, i32
  }
  func.func @transform_3(%arg0: i32, %arg1: i32) -> (i32, i32, i32) {
    %c0_i32 = arith.constant 0 : i32
    %c0_i32_0 = arith.constant 0 : i32
    return %arg1, %arg0, %c0_i32 : i32, i32, i32
  }
  func.func @transform_4(%arg0: i32, %arg1: i32) -> (i32, i32) {
    %c0_i32 = arith.constant 0 : i32
    %c0_i32_0 = arith.constant 0 : i32
    return %arg0, %c0_i32 : i32, i32
  }
}

</mosaic_0001>

<llo_original>
// kernel: tpu_custom_call.1
$region0: #{tpu_custom_call.1}
  #allocation0 [shape = 'u32[]', space=smem, size = 0x4, offset = 0x4, fixed_abs, tag = 'smem constant byte address 0x4 - core index']
  #allocation1 [shape = 'u32[144,128]{1,0:T(1,128)}', space=vmem, size = 0x12000, scoped, tag = 'internal scratch']
  #allocation2 [shape = 'f32[8,128]{1,0:T(8,128)}', space=vmem, size = 0x1000, scoped, tag = 'scratch operand']
  %s0 = inlined_call_operand.hbm [shape: f32[8,8,384], index: 0, kind: input, shape index: {}]
  %s1 = inlined_call_operand.hbm [shape: f32[128,384], index: 1, kind: input, shape index: {}]
  %s2 = inlined_call_operand.vmem [shape: f32[1,128], index: 2, kind: input, shape index: {}]
  %s3 = inlined_call_operand.hbm [shape: f32[8,8,128], index: 3, kind: output, shape index: {0}]
  %s4 = inlined_call_operand.hbm [shape: f32[8,128], index: 4, kind: output, shape index: {1}]
  %5 = xla_tuple %s3, %s4
  %s6 = sld [smem:[#allocation0]]
  $region46: #{tpu_custom_call.1} parent=0
    _
  %s8 = ssub.s32 1, %s6
  %s9 = scalar_select 0, %s8, %s6
  $region1: #{tpu_custom_call.1} parent=0
    #allocation3 [shape = 'u8[98304]{0}', space=vmem, size = 0x18000, scoped, tag = 'input window, operand 0, single buffered']
    #allocation4 [shape = 's32[1]{0}', space=sflag, size = 0x4, scoped, tag = 'scoped memory for tpu_custom_call.1']
    #allocation5 [shape = 's32[1]{0}', space=sflag, size = 0x4, scoped, tag = 'scoped memory for tpu_custom_call.1']
    #allocation6 [shape = 'u8[196608]{0}', space=vmem, size = 0x30000, scoped, tag = 'input window, operand 1, single buffered']
    #allocation7 [shape = 's32[1]{0}', space=sflag, size = 0x4, scoped, tag = 'scoped memory for tpu_custom_call.1']
    #allocation8 [shape = 'u8[32768]{0}', space=vmem, size = 0x8000, scoped, tag = 'output window, operand 0, single buffered']
    #allocation9 [shape = 'u8[4096]{0}', space=vmem, size = 0x1000, scoped, tag = 'output window, operand 1, single buffered']
    #allocation10 [shape = 's32[1]{0}', space=sflag, size = 0x4, scoped, tag = 'scoped memory for tpu_custom_call.1']
    %10 = vsyncpa [#allocation4], 0
    %11 = vsyncpa [#allocation7], 0
    %12 = vsyncpa [#allocation5], 0
    %13 = vsyncpa [#allocation10], 0
    // Predicated region
    $region2: #{tpu_custom_call.1} parent=1 // pred_check
      _
    $region3: #{tpu_custom_call.1} parent=1 // pred_check_branch
      %15 = sbr.rel (0) target = $region5
    $region4: #{tpu_custom_call.1} parent=1 // pred_region
      %s17 = ssub.s32 3072, 3072
      %18 = vsyncadd [#allocation4], %s17
      %s19 = sshll.u32 [#allocation3], 4
      %s20 = int_to_ptr.vmem [resolvable:$true] %s19
      %25 = dma.hbm_to_vmem [thread:$0]  %s0, 3072, %s20, [#allocation4], 384, 384, 24
    $region5: #{tpu_custom_call.1} parent=1 // pred_fallthru
      _
    // Predicated region
    $region6: #{tpu_custom_call.1} parent=1 // pred_check
      _
    $region7: #{tpu_custom_call.1} parent=1 // pred_check_branch
      %27 = sbr.rel (0) target = $region9
    $region8: #{tpu_custom_call.1} parent=1 // pred_region
      %s29 = ssub.s32 6144, 6144
      %30 = vsyncadd [#allocation7], %s29
      %s31 = sshll.u32 [#allocation6], 4
      %s32 = int_to_ptr.vmem [resolvable:$true] %s31
      %37 = dma.hbm_to_vmem [thread:$0]  %s1, 6144, %s32, [#allocation7], 384, 384, 24
    $region9: #{tpu_custom_call.1} parent=1 // pred_fallthru
      _
    // Predicated region
    $region10: #{tpu_custom_call.1} parent=1 // pred_check
      _
    $region11: #{tpu_custom_call.1} parent=1 // pred_check_branch
      %39 = sbr.rel (0) target = $region13
    $region12: #{tpu_custom_call.1} parent=1 // pred_region
      _
    $region13: #{tpu_custom_call.1} parent=1 // pred_fallthru
      _
    // Predicated region
    $region14: #{tpu_custom_call.1} parent=1 // pred_check
      _
    $region15: #{tpu_custom_call.1} parent=1 // pred_check_branch
      %41 = sbr.rel (0) target = $region17
    $region16: #{tpu_custom_call.1} parent=1 // pred_region
      %42 = dma.done [#allocation4], 3072
    $region17: #{tpu_custom_call.1} parent=1 // pred_fallthru
      _
    // Predicated region
    $region18: #{tpu_custom_call.1} parent=1 // pred_check
      _
    $region19: #{tpu_custom_call.1} parent=1 // pred_check_branch
      %44 = sbr.rel (0) target = $region21
    $region20: #{tpu_custom_call.1} parent=1 // pred_region
      %45 = dma.done [#allocation7], 6144
    $region21: #{tpu_custom_call.1} parent=1 // pred_fallthru
      _
    %p46 = scmp.eq.s32.totalorder 0, 0
    // Predicated region
    $region22: #{tpu_custom_call.1} parent=1 // pred_check
      %p47 = pneg %p46
    $region23: #{tpu_custom_call.1} parent=1 // pred_check_branch
      %49 = sbr.rel (%p47) target = $region25
    $region24: #{tpu_custom_call.1} parent=1 // pred_region
      %50 = vst [vmem:[#allocation2] sm:$0xff] 0.0
    $region25: #{tpu_custom_call.1} parent=1 // pred_fallthru
      _
    %v51 = vld [vmem:[#allocation6] sm:$0xff]
    %v52 = vld [vmem:[#allocation6 + $0x8] sm:$0xff]
    %v53 = vld [vmem:[#allocation6 + $0x10] sm:$0xff]
    %v54 = vld [vmem:[#allocation6 + $0x18] sm:$0xff]
    %v55 = vld [vmem:[#allocation6 + $0x20] sm:$0xff]
    %v56 = vld [vmem:[#allocation6 + $0x28] sm:$0xff]
    %v57 = vld [vmem:[#allocation6 + $0x30] sm:$0xff]
    %v58 = vld [vmem:[#allocation6 + $0x38] sm:$0xff]
    %v59 = vld [vmem:[#allocation6 + $0x40] sm:$0xff]
    %v60 = vld [vmem:[#allocation6 + $0x48] sm:$0xff]
    %v61 = vld [vmem:[#allocation6 + $0x50] sm:$0xff]
    %v62 = vld [vmem:[#allocation6 + $0x58] sm:$0xff]
    %v63 = vld [vmem:[#allocation6 + $0x60] sm:$0xff]
    %v64 = vld [vmem:[#allocation6 + $0x68] sm:$0xff]
    %v65 = vld [vmem:[#allocation6 + $0x70] sm:$0xff]
    %v66 = vld [vmem:[#allocation6 + $0x78] sm:$0xff]
    %v67 = vld [vmem:[#allocation6 + $0x80] sm:$0xff]
    %v68 = vld [vmem:[#allocation6 + $0x88] sm:$0xff]
    %v69 = vld [vmem:[#allocation6 + $0x90] sm:$0xff]
    %v70 = vld [vmem:[#allocation6 + $0x98] sm:$0xff]
    %v71 = vld [vmem:[#allocation6 + $0xa0] sm:$0xff]
    %v72 = vld [vmem:[#allocation6 + $0xa8] sm:$0xff]
    %v73 = vld [vmem:[#allocation6 + $0xb0] sm:$0xff]
    %v74 = vld [vmem:[#allocation6 + $0xb8] sm:$0xff]
    %v75 = vld [vmem:[#allocation6 + $0xc0] sm:$0xff]
    %v76 = vld [vmem:[#allocation6 + $0xc8] sm:$0xff]
    %v77 = vld [vmem:[#allocation6 + $0xd0] sm:$0xff]
    %v78 = vld [vmem:[#allocation6 + $0xd8] sm:$0xff]
    %v79 = vld [vmem:[#allocation6 + $0xe0] sm:$0xff]
    %v80 = vld [vmem:[#allocation6 + $0xe8] sm:$0xff]
    %v81 = vld [vmem:[#allocation6 + $0xf0] sm:$0xff]
    %v82 = vld [vmem:[#allocation6 + $0xf8] sm:$0xff]
    %v83 = vld [vmem:[#allocation6 + $0x100] sm:$0xff]
    %v84 = vld [vmem:[#allocation6 + $0x108] sm:$0xff]
    %v85 = vld [vmem:[#allocation6 + $0x110] sm:$0xff]
    %v86 = vld [vmem:[#allocation6 + $0x118] sm:$0xff]
    %v87 = vld [vmem:[#allocation6 + $0x120] sm:$0xff]
    %v88 = vld [vmem:[#allocation6 + $0x128] sm:$0xff]
    %v89 = vld [vmem:[#allocation6 + $0x130] sm:$0xff]
    %v90 = vld [vmem:[#allocation6 + $0x138] sm:$0xff]
    %v91 = vld [vmem:[#allocation6 + $0x140] sm:$0xff]
    %v92 = vld [vmem:[#allocation6 + $0x148] sm:$0xff]
    %v93 = vld [vmem:[#allocation6 + $0x150] sm:$0xff]
    %v94 = vld [vmem:[#allocation6 + $0x158] sm:$0xff]
    %v95 = vld [vmem:[#allocation6 + $0x160] sm:$0xff]
    %v96 = vld [vmem:[#allocation6 + $0x168] sm:$0xff]
    %v97 = vld [vmem:[#allocation6 + $0x170] sm:$0xff]
    %v98 = vld [vmem:[#allocation6 + $0x178] sm:$0xff]
    %v99 = vld [vmem:[%s2] sm:$0x1]
    %v101 = vlaneseq
    %v102 = vshrl.u32 %v101, 7
    %v103 = vsub.s32 0, %v102
    %v104 = vrot.slane %v99, %v103
    %v106 = vld [vmem:[#allocation2] sm:$0xff]
    %v107 = vld [vmem:[#allocation3] sm:$0xff]
    %v108 = vld [vmem:[#allocation3 + $0x8] sm:$0xff]
    %v109 = vld [vmem:[#allocation3 + $0x10] sm:$0xff]
    %110 = vmatprep.subr.mxu0 %v52
    %111 = vmatpush1.msra.mxu0 %v51
    %112 = vmatprep.subr.mxu0 %v55
    %113 = vmatpush1.msra.mxu0 %v54
    %114 = vmatprep.subr.mxu0 %v58
    %115 = vmatpush1.msra.mxu0 %v57
    %116 = vmatprep.subr.mxu0 %v61
    %117 = vmatpush1.msra.mxu0 %v60
    %118 = vmatprep.subr.mxu0 %v64
    %119 = vmatpush1.msra.mxu0 %v63
    %120 = vmatprep.subr.mxu0 %v67
    %121 = vmatpush1.msra.mxu0 %v66
    %122 = vmatprep.subr.mxu0 %v70
    %123 = vmatpush1.msra.mxu0 %v69
    %124 = vmatprep.subr.mxu0 %v73
    %125 = vmatpush1.msra.mxu0 %v72
    %126 = vmatprep.subr.mxu0 %v76
    %127 = vmatpush1.msra.mxu0 %v75
    %128 = vmatprep.subr.mxu0 %v79
    %129 = vmatpush1.msra.mxu0 %v78
    %130 = vmatprep.subr.mxu0 %v82
    %131 = vmatpush1.msra.mxu0 %v81
    %132 = vmatprep.subr.mxu0 %v85
    %133 = vmatpush1.msra.mxu0 %v84
    %134 = vmatprep.subr.mxu0 %v88
    %135 = vmatpush1.msra.mxu0 %v87
    %136 = vmatprep.subr.mxu0 %v91
    %137 = vmatpush1.msra.mxu0 %v90
    %138 = vmatprep.subr.mxu0 %v94
    %139 = vmatpush1.msra.mxu0 %v93
    %140 = vmatprep.subr.mxu0 %v97
    %141 = vmatpush1.msra.mxu0 %v96
    %142 = vmatprep.subr.mxu0 0.0
    %143 = vmatpush1.msra.mxu0 0.0
    %144 = vmatprep.subr.mxu0 0.0
    %145 = vmatpush1.msra.mxu0 0.0
    %146 = vmatprep.subr.mxu0 0.0
    %147 = vmatpush1.msra.mxu0 0.0
    %148 = vmatprep.subr.mxu0 0.0
    %149 = vmatpush1.msra.mxu0 0.0
    %150 = vmatprep.subr.mxu0 0.0
    %151 = vmatpush1.msra.mxu0 0.0
    %152 = vmatprep.subr.mxu0 0.0
    %153 = vmatpush1.msra.mxu0 0.0
    %154 = vmatprep.subr.mxu0 0.0
    %155 = vmatpush1.msra.mxu0 0.0
    %156 = vmatprep.subr.mxu0 0.0
    %157 = vmatpush1.msra.mxu0 0.0
    %158 = vmatprep.subr.mxu0 0.0
    %159 = vmatpush1.msra.mxu0 0.0
    %160 = vmatprep.subr.mxu0 0.0
    %161 = vmatpush1.msra.mxu0 0.0
    %162 = vmatprep.subr.mxu0 0.0
    %163 = vmatpush1.msra.mxu0 0.0
    %164 = vmatprep.subr.mxu0 0.0
    %165 = vmatpush1.msra.mxu0 0.0
    %166 = vmatprep.subr.mxu0 0.0
    %167 = vmatpush1.msra.mxu0 0.0
    %168 = vmatprep.subr.mxu0 0.0
    %169 = vmatpush1.msra.mxu0 0.0
    %170 = vmatprep.subr.mxu0 0.0
    %171 = vmatpush1.msra.mxu0 0.0
    %172 = vmatprep.subr.mxu0 0.0
    %173 = vmatpush1.msra.mxu0 0.0
    %174 = vmatprep.mubr.f32.mxu0 0.0
    %175 = vmatmul.mubr.f32.gmra.mrb[0].mxu0 %v106
    %v176 = vpop.f32.mrb[0].mxu0
    %v177 = vadd.f32 0.0, %v176
    %v178 = vpop.f32.mrb[0].mxu0
    %v179 = vadd.f32 0.0, %v178
    %180 = vdwg.mxu0
    %181 = vmatprep.subr.mxu0 0.0
    %182 = vmatpush1.msra.mxu0 %v53
    %183 = vmatprep.subr.mxu0 0.0
    %184 = vmatpush1.msra.mxu0 %v56
    %185 = vmatprep.subr.mxu0 0.0
    %186 = vmatpush1.msra.mxu0 %v59
    %187 = vmatprep.subr.mxu0 0.0
    %188 = vmatpush1.msra.mxu0 %v62
    %189 = vmatprep.subr.mxu0 0.0
    %190 = vmatpush1.msra.mxu0 %v65
    %191 = vmatprep.subr.mxu0 0.0
    %192 = vmatpush1.msra.mxu0 %v68
    %193 = vmatprep.subr.mxu0 0.0
    %194 = vmatpush1.msra.mxu0 %v71
    %195 = vmatprep.subr.mxu0 0.0
    %196 = vmatpush1.msra.mxu0 %v74
    %197 = vmatprep.subr.mxu0 0.0
    %198 = vmatpush1.msra.mxu0 %v77
    %199 = vmatprep.subr.mxu0 0.0
    %200 = vmatpush1.msra.mxu0 %v80
    %201 = vmatprep.subr.mxu0 0.0
    %202 = vmatpush1.msra.mxu0 %v83
    %203 = vmatprep.subr.mxu0 0.0
    %204 = vmatpush1.msra.mxu0 %v86
    %205 = vmatprep.subr.mxu0 0.0
    %206 = vmatpush1.msra.mxu0 %v89
    %207 = vmatprep.subr.mxu0 0.0
    %208 = vmatpush1.msra.mxu0 %v92
    %209 = vmatprep.subr.mxu0 0.0
    %210 = vmatpush1.msra.mxu0 %v95
    %211 = vmatprep.subr.mxu0 0.0
    %212 = vmatpush1.msra.mxu0 %v98
    %213 = vmatprep.subr.mxu0 0.0
    %214 = vmatpush1.msra.mxu0 0.0
    %215 = vmatprep.subr.mxu0 0.0
    %216 = vmatpush1.msra.mxu0 0.0
    %217 = vmatprep.subr.mxu0 0.0
    %218 = vmatpush1.msra.mxu0 0.0
    %219 = vmatprep.subr.mxu0 0.0
    %220 = vmatpush1.msra.mxu0 0.0
    %221 = vmatprep.subr.mxu0 0.0
    %222 = vmatpush1.msra.mxu0 0.0
    %223 = vmatprep.subr.mxu0 0.0
    %224 = vmatpush1.msra.mxu0 0.0
    %225 = vmatprep.subr.mxu0 0.0
    %226 = vmatpush1.msra.mxu0 0.0
    %227 = vmatprep.subr.mxu0 0.0
    %228 = vmatpush1.msra.mxu0 0.0
    %229 = vmatprep.subr.mxu0 0.0
    %230 = vmatpush1.msra.mxu0 0.0
    %231 = vmatprep.subr.mxu0 0.0
    %232 = vmatpush1.msra.mxu0 0.0
    %233 = vmatprep.subr.mxu0 0.0
    %234 = vmatpush1.msra.mxu0 0.0
    %235 = vmatprep.subr.mxu0 0.0
    %236 = vmatpush1.msra.mxu0 0.0
    %237 = vmatprep.subr.mxu0 0.0
    %238 = vmatpush1.msra.mxu0 0.0
    %239 = vmatprep.subr.mxu0 0.0
    %240 = vmatpush1.msra.mxu0 0.0
    %241 = vmatprep.subr.mxu0 0.0
    %242 = vmatpush1.msra.mxu0 0.0
    %243 = vmatprep.subr.mxu0 0.0
    %244 = vmatpush1.msra.mxu0 0.0
    %245 = vmatprep.mubr.f32.mxu0 0.0
    %246 = vmatmul.mubr.f32.gmra.mrb[0].mxu0 %v106
    %v247 = vpop.f32.mrb[0].mxu0
    %v248 = vadd.f32 0.0, %v247
    %v249 = vpop.f32.mrb[0].mxu0
    %250 = vdwg.mxu0
    %v251 = vadd.f32 %v107, %v177
    %v252 = vadd.f32 %v108, %v179
    %v253 = vxor.u32 %v251, 2147483648
    %v254 = vxor.u32 %v252, 2147483648
    %v255 = vmul.f32 %v253, 1.442695
    %v256 = vpow.pop %v255
    %v257 = vmul.f32 %v254, 1.442695
    %v258 = vpow.pop %v257
    %v259 = vadd.f32 %v256, 1.0
    %v260 = vadd.f32 %v258, 1.0
    %v261 = vrcp.pop %v259
    %v262 = vmul.f32 1.0, %v261
    %v263 = vrcp.pop %v260
    %v264 = vmul.f32 1.0, %v263
    %v265 = vadd.f32 %v248, %v104
    %v266 = vmul.f32 %v262, %v265
    %v267 = vadd.f32 %v109, %v266
    %v268 = vtanh.pop %v267
    %v269 = vsub.f32 1.0, %v264
    %v270 = vmul.f32 %v269, %v268
    %v271 = vmul.f32 %v264, %v106
    %v272 = vadd.f32 %v270, %v271
    %273 = vst [vmem:[#allocation8] sm:$0xff] %v272
    %s274 = scalar_lea.vmem [#allocation3], 24
    %v275 = vld [vmem:[%s274] sm:$0xff]
    %v276 = vld [vmem:[%s274 + $0x8] sm:$0xff]
    %v277 = vld [vmem:[%s274 + $0x10] sm:$0xff]
    %278 = vmatprep.subr.mxu0 %v52
    %279 = vmatpush1.msra.mxu0 %v51
    %280 = vmatprep.subr.mxu0 %v55
    %281 = vmatpush1.msra.mxu0 %v54
    %282 = vmatprep.subr.mxu0 %v58
    %283 = vmatpush1.msra.mxu0 %v57
    %284 = vmatprep.subr.mxu0 %v61
    %285 = vmatpush1.msra.mxu0 %v60
    %286 = vmatprep.subr.mxu0 %v64
    %287 = vmatpush1.msra.mxu0 %v63
    %288 = vmatprep.subr.mxu0 %v67
    %289 = vmatpush1.msra.mxu0 %v66
    %290 = vmatprep.subr.mxu0 %v70
    %291 = vmatpush1.msra.mxu0 %v69
    %292 = vmatprep.subr.mxu0 %v73
    %293 = vmatpush1.msra.mxu0 %v72
    %294 = vmatprep.subr.mxu0 %v76
    %295 = vmatpush1.msra.mxu0 %v75
    %296 = vmatprep.subr.mxu0 %v79
    %297 = vmatpush1.msra.mxu0 %v78
    %298 = vmatprep.subr.mxu0 %v82
    %299 = vmatpush1.msra.mxu0 %v81
    %300 = vmatprep.subr.mxu0 %v85
    %301 = vmatpush1.msra.mxu0 %v84
    %302 = vmatprep.subr.mxu0 %v88
    %303 = vmatpush1.msra.mxu0 %v87
    %304 = vmatprep.subr.mxu0 %v91
    %305 = vmatpush1.msra.mxu0 %v90
    %306 = vmatprep.subr.mxu0 %v94
    %307 = vmatpush1.msra.mxu0 %v93
    %308 = vmatprep.subr.mxu0 %v97
    %309 = vmatpush1.msra.mxu0 %v96
    %310 = vmatprep.subr.mxu0 0.0
    %311 = vmatpush1.msra.mxu0 0.0
    %312 = vmatprep.subr.mxu0 0.0
    %313 = vmatpush1.msra.mxu0 0.0
    %314 = vmatprep.subr.mxu0 0.0
    %315 = vmatpush1.msra.mxu0 0.0
    %316 = vmatprep.subr.mxu0 0.0
    %317 = vmatpush1.msra.mxu0 0.0
    %318 = vmatprep.subr.mxu0 0.0
    %319 = vmatpush1.msra.mxu0 0.0
    %320 = vmatprep.subr.mxu0 0.0
    %321 = vmatpush1.msra.mxu0 0.0
    %322 = vmatprep.subr.mxu0 0.0
    %323 = vmatpush1.msra.mxu0 0.0
    %324 = vmatprep.subr.mxu0 0.0
    %325 = vmatpush1.msra.mxu0 0.0
    %326 = vmatprep.subr.mxu0 0.0
    %327 = vmatpush1.msra.mxu0 0.0
    %328 = vmatprep.subr.mxu0 0.0
    %329 = vmatpush1.msra.mxu0 0.0
    %330 = vmatprep.subr.mxu0 0.0
    %331 = vmatpush1.msra.mxu0 0.0
    %332 = vmatprep.subr.mxu0 0.0
    %333 = vmatpush1.msra.mxu0 0.0
    %334 = vmatprep.subr.mxu0 0.0
    %335 = vmatpush1.msra.mxu0 0.0
    %336 = vmatprep.subr.mxu0 0.0
    %337 = vmatpush1.msra.mxu0 0.0
    %338 = vmatprep.subr.mxu0 0.0
    %339 = vmatpush1.msra.mxu0 0.0
    %340 = vmatprep.subr.mxu0 0.0
    %341 = vmatpush1.msra.mxu0 0.0
    %342 = vmatprep.mubr.f32.mxu0 0.0
    %343 = vmatmul.mubr.f32.gmra.mrb[0].mxu0 %v272
    %v344 = vpop.f32.mrb[0].mxu0
    %v345 = vadd.f32 0.0, %v344
    %v346 = vpop.f32.mrb[0].mxu0
    %v347 = vadd.f32 0.0, %v346
    %348 = vdwg.mxu0
    %349 = vmatprep.subr.mxu0 0.0
    %350 = vmatpush1.msra.mxu0 %v53
    %351 = vmatprep.subr.mxu0 0.0
    %352 = vmatpush1.msra.mxu0 %v56
    %353 = vmatprep.subr.mxu0 0.0
    %354 = vmatpush1.msra.mxu0 %v59
    %355 = vmatprep.subr.mxu0 0.0
    %356 = vmatpush1.msra.mxu0 %v62
    %357 = vmatprep.subr.mxu0 0.0
    %358 = vmatpush1.msra.mxu0 %v65
    %359 = vmatprep.subr.mxu0 0.0
    %360 = vmatpush1.msra.mxu0 %v68
    %361 = vmatprep.subr.mxu0 0.0
    %362 = vmatpush1.msra.mxu0 %v71
    %363 = vmatprep.subr.mxu0 0.0
    %364 = vmatpush1.msra.mxu0 %v74
    %365 = vmatprep.subr.mxu0 0.0
    %366 = vmatpush1.msra.mxu0 %v77
    %367 = vmatprep.subr.mxu0 0.0
    %368 = vmatpush1.msra.mxu0 %v80
    %369 = vmatprep.subr.mxu0 0.0
    %370 = vmatpush1.msra.mxu0 %v83
    %371 = vmatprep.subr.mxu0 0.0
    %372 = vmatpush1.msra.mxu0 %v86
    %373 = vmatprep.subr.mxu0 0.0
    %374 = vmatpush1.msra.mxu0 %v89
    %375 = vmatprep.subr.mxu0 0.0
    %376 = vmatpush1.msra.mxu0 %v92
    %377 = vmatprep.subr.mxu0 0.0
    %378 = vmatpush1.msra.mxu0 %v95
    %379 = vmatprep.subr.mxu0 0.0
    %380 = vmatpush1.msra.mxu0 %v98
    %381 = vmatprep.subr.mxu0 0.0
    %382 = vmatpush1.msra.mxu0 0.0
    %383 = vmatprep.subr.mxu0 0.0
    %384 = vmatpush1.msra.mxu0 0.0
    %385 = vmatprep.subr.mxu0 0.0
    %386 = vmatpush1.msra.mxu0 0.0
    %387 = vmatprep.subr.mxu0 0.0
    %388 = vmatpush1.msra.mxu0 0.0
    %389 = vmatprep.subr.mxu0 0.0
    %390 = vmatpush1.msra.mxu0 0.0
    %391 = vmatprep.subr.mxu0 0.0
    %392 = vmatpush1.msra.mxu0 0.0
    %393 = vmatprep.subr.mxu0 0.0
    %394 = vmatpush1.msra.mxu0 0.0
    %395 = vmatprep.subr.mxu0 0.0
    %396 = vmatpush1.msra.mxu0 0.0
    %397 = vmatprep.subr.mxu0 0.0
    %398 = vmatpush1.msra.mxu0 0.0
    %399 = vmatprep.subr.mxu0 0.0
    %400 = vmatpush1.msra.mxu0 0.0
    %401 = vmatprep.subr.mxu0 0.0
    %402 = vmatpush1.msra.mxu0 0.0
    %403 = vmatprep.subr.mxu0 0.0
    %404 = vmatpush1.msra.mxu0 0.0
    %405 = vmatprep.subr.mxu0 0.0
    %406 = vmatpush1.msra.mxu0 0.0
    %407 = vmatprep.subr.mxu0 0.0
    %408 = vmatpush1.msra.mxu0 0.0
    %409 = vmatprep.subr.mxu0 0.0
    %410 = vmatpush1.msra.mxu0 0.0
    %411 = vmatprep.subr.mxu0 0.0
    %412 = vmatpush1.msra.mxu0 0.0
    %413 = vmatprep.mubr.f32.mxu0 0.0
    %414 = vmatmul.mubr.f32.gmra.mrb[0].mxu0 %v272
    %v415 = vpop.f32.mrb[0].mxu0
    %v416 = vadd.f32 0.0, %v415
    %v417 = vpop.f32.mrb[0].mxu0
    %418 = vdwg.mxu0
    %v419 = vadd.f32 %v275, %v345
    %v420 = vadd.f32 %v276, %v347
    %v421 = vxor.u32 %v419, 2147483648
    %v422 = vxor.u32 %v420, 2147483648
    %v423 = vmul.f32 %v421, 1.442695
    %v424 = vpow.pop %v423
    %v425 = vmul.f32 %v422, 1.442695
    %v426 = vpow.pop %v425
    %v427 = vadd.f32 %v424, 1.0
    %v428 = vadd.f32 %v426, 1.0
    %v429 = vrcp.pop %v427
    %v430 = vmul.f32 1.0, %v429
    %v431 = vrcp.pop %v428
    %v432 = vmul.f32 1.0, %v431
    %v433 = vadd.f32 %v416, %v104
    %v434 = vmul.f32 %v430, %v433
    %v435 = vadd.f32 %v277, %v434
    %v436 = vtanh.pop %v435
    %v437 = vsub.f32 1.0, %v432
    %v438 = vmul.f32 %v437, %v436
    %v439 = vmul.f32 %v432, %v272
    %v440 = vadd.f32 %v438, %v439
    %s441 = scalar_lea.vmem [#allocation8], 8
    %442 = vst [vmem:[%s441] sm:$0xff] %v440
    %s443 = scalar_lea.vmem [#allocation3], 48
    %v444 = vld [vmem:[%s443] sm:$0xff]
    %v445 = vld [vmem:[%s443 + $0x8] sm:$0xff]
    %v446 = vld [vmem:[%s443 + $0x10] sm:$0xff]
    %447 = vmatprep.subr.mxu0 %v52
    %448 = vmatpush1.msra.mxu0 %v51
    %449 = vmatprep.subr.mxu0 %v55
    %450 = vmatpush1.msra.mxu0 %v54
    %451 = vmatprep.subr.mxu0 %v58
    %452 = vmatpush1.msra.mxu0 %v57
    %453 = vmatprep.subr.mxu0 %v61
    %454 = vmatpush1.msra.mxu0 %v60
    %455 = vmatprep.subr.mxu0 %v64
    %456 = vmatpush1.msra.mxu0 %v63
    %457 = vmatprep.subr.mxu0 %v67
    %458 = vmatpush1.msra.mxu0 %v66
    %459 = vmatprep.subr.mxu0 %v70
    %460 = vmatpush1.msra.mxu0 %v69
    %461 = vmatprep.subr.mxu0 %v73
    %462 = vmatpush1.msra.mxu0 %v72
    %463 = vmatprep.subr.mxu0 %v76
    %464 = vmatpush1.msra.mxu0 %v75
    %465 = vmatprep.subr.mxu0 %v79
    %466 = vmatpush1.msra.mxu0 %v78
    %467 = vmatprep.subr.mxu0 %v82
    %468 = vmatpush1.msra.mxu0 %v81
    %469 = vmatprep.subr.mxu0 %v85
    %470 = vmatpush1.msra.mxu0 %v84
    %471 = vmatprep.subr.mxu0 %v88
    %472 = vmatpush1.msra.mxu0 %v87
    %473 = vmatprep.subr.mxu0 %v91
    %474 = vmatpush1.msra.mxu0 %v90
    %475 = vmatprep.subr.mxu0 %v94
    %476 = vmatpush1.msra.mxu0 %v93
    %477 = vmatprep.subr.mxu0 %v97
    %478 = vmatpush1.msra.mxu0 %v96
    %479 = vmatprep.subr.mxu0 0.0
    %480 = vmatpush1.msra.mxu0 0.0
    %481 = vmatprep.subr.mxu0 0.0
    %482 = vmatpush1.msra.mxu0 0.0
    %483 = vmatprep.subr.mxu0 0.0
    %484 = vmatpush1.msra.mxu0 0.0
    %485 = vmatprep.subr.mxu0 0.0
    %486 = vmatpush1.msra.mxu0 0.0
    %487 = vmatprep.subr.mxu0 0.0
    %488 = vmatpush1.msra.mxu0 0.0
    %489 = vmatprep.subr.mxu0 0.0
    %490 = vmatpush1.msra.mxu0 0.0
    %491 = vmatprep.subr.mxu0 0.0
    %492 = vmatpush1.msra.mxu0 0.0
    %493 = vmatprep.subr.mxu0 0.0
    %494 = vmatpush1.msra.mxu0 0.0
    %495 = vmatprep.subr.mxu0 0.0
    %496 = vmatpush1.msra.mxu0 0.0
    %497 = vmatprep.subr.mxu0 0.0
    %498 = vmatpush1.msra.mxu0 0.0
    %499 = vmatprep.subr.mxu0 0.0
    %500 = vmatpush1.msra.mxu0 0.0
    %501 = vmatprep.subr.mxu0 0.0
    %502 = vmatpush1.msra.mxu0 0.0
    %503 = vmatprep.subr.mxu0 0.0
    %504 = vmatpush1.msra.mxu0 0.0
    %505 = vmatprep.subr.mxu0 0.0
    %506 = vmatpush1.msra.mxu0 0.0
    %507 = vmatprep.subr.mxu0 0.0
    %508 = vmatpush1.msra.mxu0 0.0
    %509 = vmatprep.subr.mxu0 0.0
    %510 = vmatpush1.msra.mxu0 0.0
    %511 = vmatprep.mubr.f32.mxu0 0.0
    %512 = vmatmul.mubr.f32.gmra.mrb[0].mxu0 %v440
    %v513 = vpop.f32.mrb[0].mxu0
    %v514 = vadd.f32 0.0, %v513
    %v515 = vpop.f32.mrb[0].mxu0
    %v516 = vadd.f32 0.0, %v515
    %517 = vdwg.mxu0
    %518 = vmatprep.subr.mxu0 0.0
    %519 = vmatpush1.msra.mxu0 %v53
    %520 = vmatprep.subr.mxu0 0.0
    %521 = vmatpush1.msra.mxu0 %v56
    %522 = vmatprep.subr.mxu0 0.0
    %523 = vmatpush1.msra.mxu0 %v59
    %524 = vmatprep.subr.mxu0 0.0
    %525 = vmatpush1.msra.mxu0 %v62
    %526 = vmatprep.subr.mxu0 0.0
    %527 = vmatpush1.msra.mxu0 %v65
    %528 = vmatprep.subr.mxu0 0.0
    %529 = vmatpush1.msra.mxu0 %v68
    %530 = vmatprep.subr.mxu0 0.0
    %531 = vmatpush1.msra.mxu0 %v71
    %532 = vmatprep.subr.mxu0 0.0
    %533 = vmatpush1.msra.mxu0 %v74
    %534 = vmatprep.subr.mxu0 0.0
    %535 = vmatpush1.msra.mxu0 %v77
    %536 = vmatprep.subr.mxu0 0.0
    %537 = vmatpush1.msra.mxu0 %v80
    %538 = vmatprep.subr.mxu0 0.0
    %539 = vmatpush1.msra.mxu0 %v83
    %540 = vmatprep.subr.mxu0 0.0
    %541 = vmatpush1.msra.mxu0 %v86
    %542 = vmatprep.subr.mxu0 0.0
    %543 = vmatpush1.msra.mxu0 %v89
    %544 = vmatprep.subr.mxu0 0.0
    %545 = vmatpush1.msra.mxu0 %v92
    %546 = vmatprep.subr.mxu0 0.0
    %547 = vmatpush1.msra.mxu0 %v95
    %548 = vmatprep.subr.mxu0 0.0
    %549 = vmatpush1.msra.mxu0 %v98
    %550 = vmatprep.subr.mxu0 0.0
    %551 = vmatpush1.msra.mxu0 0.0
    %552 = vmatprep.subr.mxu0 0.0
    %553 = vmatpush1.msra.mxu0 0.0
    %554 = vmatprep.subr.mxu0 0.0
    %555 = vmatpush1.msra.mxu0 0.0
    %556 = vmatprep.subr.mxu0 0.0
    %557 = vmatpush1.msra.mxu0 0.0
    %558 = vmatprep.subr.mxu0 0.0
    %559 = vmatpush1.msra.mxu0 0.0
    %560 = vmatprep.subr.mxu0 0.0
    %561 = vmatpush1.msra.mxu0 0.0
    %562 = vmatprep.subr.mxu0 0.0
    %563 = vmatpush1.msra.mxu0 0.0
    %564 = vmatprep.subr.mxu0 0.0
    %565 = vmatpush1.msra.mxu0 0.0
    %566 = vmatprep.subr.mxu0 0.0
    %567 = vmatpush1.msra.mxu0 0.0
    %568 = vmatprep.subr.mxu0 0.0
    %569 = vmatpush1.msra.mxu0 0.0
    %570 = vmatprep.subr.mxu0 0.0
    %571 = vmatpush1.msra.mxu0 0.0
    %572 = vmatprep.subr.mxu0 0.0
    %573 = vmatpush1.msra.mxu0 0.0
    %574 = vmatprep.subr.mxu0 0.0
    %575 = vmatpush1.msra.mxu0 0.0
    %576 = vmatprep.subr.mxu0 0.0
    %577 = vmatpush1.msra.mxu0 0.0
    %578 = vmatprep.subr.mxu0 0.0
    %579 = vmatpush1.msra.mxu0 0.0
    %580 = vmatprep.subr.mxu0 0.0
    %581 = vmatpush1.msra.mxu0 0.0
    %582 = vmatprep.mubr.f32.mxu0 0.0
    %583 = vmatmul.mubr.f32.gmra.mrb[0].mxu0 %v440
    %v584 = vpop.f32.mrb[0].mxu0
    %v585 = vadd.f32 0.0, %v584
    %v586 = vpop.f32.mrb[0].mxu0
    %587 = vdwg.mxu0
    %v588 = vadd.f32 %v444, %v514
    %v589 = vadd.f32 %v445, %v516
    %v590 = vxor.u32 %v588, 2147483648
    %v591 = vxor.u32 %v589, 2147483648
    %v592 = vmul.f32 %v590, 1.442695
    %v593 = vpow.pop %v592
    %v594 = vmul.f32 %v591, 1.442695
    %v595 = vpow.pop %v594
    %v596 = vadd.f32 %v593, 1.0
    %v597 = vadd.f32 %v595, 1.0
    %v598 = vrcp.pop %v596
    %v599 = vmul.f32 1.0, %v598
    %v600 = vrcp.pop %v597
    %v601 = vmul.f32 1.0, %v600
    %v602 = vadd.f32 %v585, %v104
    %v603 = vmul.f32 %v599, %v602
    %v604 = vadd.f32 %v446, %v603
    %v605 = vtanh.pop %v604
    %v606 = vsub.f32 1.0, %v601
    %v607 = vmul.f32 %v606, %v605
    %v608 = vmul.f32 %v601, %v440
    %v609 = vadd.f32 %v607, %v608
    %s610 = scalar_lea.vmem [#allocation8], 16
    %611 = vst [vmem:[%s610] sm:$0xff] %v609
    %s612 = scalar_lea.vmem [#allocation3], 72
    %v613 = vld [vmem:[%s612] sm:$0xff]
    %v614 = vld [vmem:[%s612 + $0x8] sm:$0xff]
    %v615 = vld [vmem:[%s612 + $0x10] sm:$0xff]
    %616 = vmatprep.subr.mxu0 %v52
    %617 = vmatpush1.msra.mxu0 %v51
    %618 = vmatprep.subr.mxu0 %v55
    %619 = vmatpush1.msra.mxu0 %v54
    %620 = vmatprep.subr.mxu0 %v58
    %621 = vmatpush1.msra.mxu0 %v57
    %622 = vmatprep.subr.mxu0 %v61
    %623 = vmatpush1.msra.mxu0 %v60
    %624 = vmatprep.subr.mxu0 %v64
    %625 = vmatpush1.msra.mxu0 %v63
    %626 = vmatprep.subr.mxu0 %v67
    %627 = vmatpush1.msra.mxu0 %v66
    %628 = vmatprep.subr.mxu0 %v70
    %629 = vmatpush1.msra.mxu0 %v69
    %630 = vmatprep.subr.mxu0 %v73
    %631 = vmatpush1.msra.mxu0 %v72
    %632 = vmatprep.subr.mxu0 %v76
    %633 = vmatpush1.msra.mxu0 %v75
    %634 = vmatprep.subr.mxu0 %v79
    %635 = vmatpush1.msra.mxu0 %v78
    %636 = vmatprep.subr.mxu0 %v82
    %637 = vmatpush1.msra.mxu0 %v81
    %638 = vmatprep.subr.mxu0 %v85
    %639 = vmatpush1.msra.mxu0 %v84
    %640 = vmatprep.subr.mxu0 %v88
    %641 = vmatpush1.msra.mxu0 %v87
    %642 = vmatprep.subr.mxu0 %v91
    %643 = vmatpush1.msra.mxu0 %v90
    %644 = vmatprep.subr.mxu0 %v94
    %645 = vmatpush1.msra.mxu0 %v93
    %646 = vmatprep.subr.mxu0 %v97
    %647 = vmatpush1.msra.mxu0 %v96
    %648 = vmatprep.subr.mxu0 0.0
    %649 = vmatpush1.msra.mxu0 0.0
    %650 = vmatprep.subr.mxu0 0.0
    %651 = vmatpush1.msra.mxu0 0.0
    %652 = vmatprep.subr.mxu0 0.0
    %653 = vmatpush1.msra.mxu0 0.0
    %654 = vmatprep.subr.mxu0 0.0
    %655 = vmatpush1.msra.mxu0 0.0
    %656 = vmatprep.subr.mxu0 0.0
    %657 = vmatpush1.msra.mxu0 0.0
    %658 = vmatprep.subr.mxu0 0.0
    %659 = vmatpush1.msra.mxu0 0.0
    %660 = vmatprep.subr.mxu0 0.0
    %661 = vmatpush1.msra.mxu0 0.0
    %662 = vmatprep.subr.mxu0 0.0
    %663 = vmatpush1.msra.mxu0 0.0
    %664 = vmatprep.subr.mxu0 0.0
    %665 = vmatpush1.msra.mxu0 0.0
    %666 = vmatprep.subr.mxu0 0.0
    %667 = vmatpush1.msra.mxu0 0.0
    %668 = vmatprep.subr.mxu0 0.0
    %669 = vmatpush1.msra.mxu0 0.0
    %670 = vmatprep.subr.mxu0 0.0
    %671 = vmatpush1.msra.mxu0 0.0
    %672 = vmatprep.subr.mxu0 0.0
    %673 = vmatpush1.msra.mxu0 0.0
    %674 = vmatprep.subr.mxu0 0.0
    %675 = vmatpush1.msra.mxu0 0.0
    %676 = vmatprep.subr.mxu0 0.0
    %677 = vmatpush1.msra.mxu0 0.0
    %678 = vmatprep.subr.mxu0 0.0
    %679 = vmatpush1.msra.mxu0 0.0
    %680 = vmatprep.mubr.f32.mxu0 0.0
    %681 = vmatmul.mubr.f32.gmra.mrb[0].mxu0 %v609
    %v682 = vpop.f32.mrb[0].mxu0
    %v683 = vadd.f32 0.0, %v682
    %v684 = vpop.f32.mrb[0].mxu0
    %v685 = vadd.f32 0.0, %v684
    %686 = vdwg.mxu0
    %687 = vmatprep.subr.mxu0 0.0
    %688 = vmatpush1.msra.mxu0 %v53
    %689 = vmatprep.subr.mxu0 0.0
    %690 = vmatpush1.msra.mxu0 %v56
    %691 = vmatprep.subr.mxu0 0.0
    %692 = vmatpush1.msra.mxu0 %v59
    %693 = vmatprep.subr.mxu0 0.0
    %694 = vmatpush1.msra.mxu0 %v62
    %695 = vmatprep.subr.mxu0 0.0
    %696 = vmatpush1.msra.mxu0 %v65
    %697 = vmatprep.subr.mxu0 0.0
    %698 = vmatpush1.msra.mxu0 %v68
    %699 = vmatprep.subr.mxu0 0.0
    %700 = vmatpush1.msra.mxu0 %v71
    %701 = vmatprep.subr.mxu0 0.0
    %702 = vmatpush1.msra.mxu0 %v74
    %703 = vmatprep.subr.mxu0 0.0
    %704 = vmatpush1.msra.mxu0 %v77
    %705 = vmatprep.subr.mxu0 0.0
    %706 = vmatpush1.msra.mxu0 %v80
    %707 = vmatprep.subr.mxu0 0.0
    %708 = vmatpush1.msra.mxu0 %v83
    %709 = vmatprep.subr.mxu0 0.0
    %710 = vmatpush1.msra.mxu0 %v86
    %711 = vmatprep.subr.mxu0 0.0
    %712 = vmatpush1.msra.mxu0 %v89
    %713 = vmatprep.subr.mxu0 0.0
    %714 = vmatpush1.msra.mxu0 %v92
    %715 = vmatprep.subr.mxu0 0.0
    %716 = vmatpush1.msra.mxu0 %v95
    %717 = vmatprep.subr.mxu0 0.0
    %718 = vmatpush1.msra.mxu0 %v98
    %719 = vmatprep.subr.mxu0 0.0
    %720 = vmatpush1.msra.mxu0 0.0
    %721 = vmatprep.subr.mxu0 0.0
    %722 = vmatpush1.msra.mxu0 0.0
    %723 = vmatprep.subr.mxu0 0.0
    %724 = vmatpush1.msra.mxu0 0.0
    %725 = vmatprep.subr.mxu0 0.0
    %726 = vmatpush1.msra.mxu0 0.0
    %727 = vmatprep.subr.mxu0 0.0
    %728 = vmatpush1.msra.mxu0 0.0
    %729 = vmatprep.subr.mxu0 0.0
    %730 = vmatpush1.msra.mxu0 0.0
    %731 = vmatprep.subr.mxu0 0.0
    %732 = vmatpush1.msra.mxu0 0.0
    %733 = vmatprep.subr.mxu0 0.0
    %734 = vmatpush1.msra.mxu0 0.0
    %735 = vmatprep.subr.mxu0 0.0
    %736 = vmatpush1.msra.mxu0 0.0
    %737 = vmatprep.subr.mxu0 0.0
    %738 = vmatpush1.msra.mxu0 0.0
    %739 = vmatprep.subr.mxu0 0.0
    %740 = vmatpush1.msra.mxu0 0.0
    %741 = vmatprep.subr.mxu0 0.0
    %742 = vmatpush1.msra.mxu0 0.0
    %743 = vmatprep.subr.mxu0 0.0
    %744 = vmatpush1.msra.mxu0 0.0
    %745 = vmatprep.subr.mxu0 0.0
    %746 = vmatpush1.msra.mxu0 0.0
    %747 = vmatprep.subr.mxu0 0.0
    %748 = vmatpush1.msra.mxu0 0.0
    %749 = vmatprep.subr.mxu0 0.0
    %750 = vmatpush1.msra.mxu0 0.0
    %751 = vmatprep.mubr.f32.mxu0 0.0
    %752 = vmatmul.mubr.f32.gmra.mrb[0].mxu0 %v609
    %v753 = vpop.f32.mrb[0].mxu0
    %v754 = vadd.f32 0.0, %v753
    %v755 = vpop.f32.mrb[0].mxu0
    %756 = vdwg.mxu0
    %v757 = vadd.f32 %v613, %v683
    %v758 = vadd.f32 %v614, %v685
    %v759 = vxor.u32 %v757, 2147483648
    %v760 = vxor.u32 %v758, 2147483648
    %v761 = vmul.f32 %v759, 1.442695
    %v762 = vpow.pop %v761
    %v763 = vmul.f32 %v760, 1.442695
    %v764 = vpow.pop %v763
    %v765 = vadd.f32 %v762, 1.0
    %v766 = vadd.f32 %v764, 1.0
    %v767 = vrcp.pop %v765
    %v768 = vmul.f32 1.0, %v767
    %v769 = vrcp.pop %v766
    %v770 = vmul.f32 1.0, %v769
    %v771 = vadd.f32 %v754, %v104
    %v772 = vmul.f32 %v768, %v771
    %v773 = vadd.f32 %v615, %v772
    %v774 = vtanh.pop %v773
    %v775 = vsub.f32 1.0, %v770
    %v776 = vmul.f32 %v775, %v774
    %v777 = vmul.f32 %v770, %v609
    %v778 = vadd.f32 %v776, %v777
    %s779 = scalar_lea.vmem [#allocation8], 24
    %780 = vst [vmem:[%s779] sm:$0xff] %v778
    %s781 = scalar_lea.vmem [#allocation3], 96
    %v782 = vld [vmem:[%s781] sm:$0xff]
    %v783 = vld [vmem:[%s781 + $0x8] sm:$0xff]
    %v784 = vld [vmem:[%s781 + $0x10] sm:$0xff]
    %785 = vmatprep.subr.mxu0 %v52
    %786 = vmatpush1.msra.mxu0 %v51
    %787 = vmatprep.subr.mxu0 %v55
    %788 = vmatpush1.msra.mxu0 %v54
    %789 = vmatprep.subr.mxu0 %v58
    %790 = vmatpush1.msra.mxu0 %v57
    %791 = vmatprep.subr.mxu0 %v61
    %792 = vmatpush1.msra.mxu0 %v60
    %793 = vmatprep.subr.mxu0 %v64
    %794 = vmatpush1.msra.mxu0 %v63
    %795 = vmatprep.subr.mxu0 %v67
    %796 = vmatpush1.msra.mxu0 %v66
    %797 = vmatprep.subr.mxu0 %v70
    %798 = vmatpush1.msra.mxu0 %v69
    %799 = vmatprep.subr.mxu0 %v73
    %800 = vmatpush1.msra.mxu0 %v72
    %801 = vmatprep.subr.mxu0 %v76
    %802 = vmatpush1.msra.mxu0 %v75
    %803 = vmatprep.subr.mxu0 %v79
    %804 = vmatpush1.msra.mxu0 %v78
    %805 = vmatprep.subr.mxu0 %v82
    %806 = vmatpush1.msra.mxu0 %v81
    %807 = vmatprep.subr.mxu0 %v85
    %808 = vmatpush1.msra.mxu0 %v84
    %809 = vmatprep.subr.mxu0 %v88
    %810 = vmatpush1.msra.mxu0 %v87
    %811 = vmatprep.subr.mxu0 %v91
    %812 = vmatpush1.msra.mxu0 %v90
    %813 = vmatprep.subr.mxu0 %v94
    %814 = vmatpush1.msra.mxu0 %v93
    %815 = vmatprep.subr.mxu0 %v97
    %816 = vmatpush1.msra.mxu0 %v96
    %817 = vmatprep.subr.mxu0 0.0
    %818 = vmatpush1.msra.mxu0 0.0
    %819 = vmatprep.subr.mxu0 0.0
    %820 = vmatpush1.msra.mxu0 0.0
    %821 = vmatprep.subr.mxu0 0.0
    %822 = vmatpush1.msra.mxu0 0.0
    %823 = vmatprep.subr.mxu0 0.0
    %824 = vmatpush1.msra.mxu0 0.0
    %825 = vmatprep.subr.mxu0 0.0
    %826 = vmatpush1.msra.mxu0 0.0
    %827 = vmatprep.subr.mxu0 0.0
    %828 = vmatpush1.msra.mxu0 0.0
    %829 = vmatprep.subr.mxu0 0.0
    %830 = vmatpush1.msra.mxu0 0.0
    %831 = vmatprep.subr.mxu0 0.0
    %832 = vmatpush1.msra.mxu0 0.0
    %833 = vmatprep.subr.mxu0 0.0
    %834 = vmatpush1.msra.mxu0 0.0
    %835 = vmatprep.subr.mxu0 0.0
    %836 = vmatpush1.msra.mxu0 0.0
    %837 = vmatprep.subr.mxu0 0.0
    %838 = vmatpush1.msra.mxu0 0.0
    %839 = vmatprep.subr.mxu0 0.0
    %840 = vmatpush1.msra.mxu0 0.0
    %841 = vmatprep.subr.mxu0 0.0
    %842 = vmatpush1.msra.mxu0 0.0
    %843 = vmatprep.subr.mxu0 0.0
    %844 = vmatpush1.msra.mxu0 0.0
    %845 = vmatprep.subr.mxu0 0.0
    %846 = vmatpush1.msra.mxu0 0.0
    %847 = vmatprep.subr.mxu0 0.0
    %848 = vmatpush1.msra.mxu0 0.0
    %849 = vmatprep.mubr.f32.mxu0 0.0
    %850 = vmatmul.mubr.f32.gmra.mrb[0].mxu0 %v778
    %v851 = vpop.f32.mrb[0].mxu0
    %v852 = vadd.f32 0.0, %v851
    %v853 = vpop.f32.mrb[0].mxu0
    %v854 = vadd.f32 0.0, %v853
    %855 = vdwg.mxu0
    %856 = vmatprep.subr.mxu0 0.0
    %857 = vmatpush1.msra.mxu0 %v53
    %858 = vmatprep.subr.mxu0 0.0
    %859 = vmatpush1.msra.mxu0 %v56
    %860 = vmatprep.subr.mxu0 0.0
    %861 = vmatpush1.msra.mxu0 %v59
    %862 = vmatprep.subr.mxu0 0.0
    %863 = vmatpush1.msra.mxu0 %v62
    %864 = vmatprep.subr.mxu0 0.0
    %865 = vmatpush1.msra.mxu0 %v65
    %866 = vmatprep.subr.mxu0 0.0
    %867 = vmatpush1.msra.mxu0 %v68
    %868 = vmatprep.subr.mxu0 0.0
    %869 = vmatpush1.msra.mxu0 %v71
    %870 = vmatprep.subr.mxu0 0.0
    %871 = vmatpush1.msra.mxu0 %v74
    %872 = vmatprep.subr.mxu0 0.0
    %873 = vmatpush1.msra.mxu0 %v77
    %874 = vmatprep.subr.mxu0 0.0
    %875 = vmatpush1.msra.mxu0 %v80
    %876 = vmatprep.subr.mxu0 0.0
    %877 = vmatpush1.msra.mxu0 %v83
    %878 = vmatprep.subr.mxu0 0.0
    %879 = vmatpush1.msra.mxu0 %v86
    %880 = vmatprep.subr.mxu0 0.0
    %881 = vmatpush1.msra.mxu0 %v89
    %882 = vmatprep.subr.mxu0 0.0
    %883 = vmatpush1.msra.mxu0 %v92
    %884 = vmatprep.subr.mxu0 0.0
    %885 = vmatpush1.msra.mxu0 %v95
    %886 = vmatprep.subr.mxu0 0.0
    %887 = vmatpush1.msra.mxu0 %v98
    %888 = vmatprep.subr.mxu0 0.0
    %889 = vmatpush1.msra.mxu0 0.0
    %890 = vmatprep.subr.mxu0 0.0
    %891 = vmatpush1.msra.mxu0 0.0
    %892 = vmatprep.subr.mxu0 0.0
    %893 = vmatpush1.msra.mxu0 0.0
    %894 = vmatprep.subr.mxu0 0.0
    %895 = vmatpush1.msra.mxu0 0.0
    %896 = vmatprep.subr.mxu0 0.0
    %897 = vmatpush1.msra.mxu0 0.0
    %898 = vmatprep.subr.mxu0 0.0
    %899 = vmatpush1.msra.mxu0 0.0
    %900 = vmatprep.subr.mxu0 0.0
    %901 = vmatpush1.msra.mxu0 0.0
    %902 = vmatprep.subr.mxu0 0.0
    %903 = vmatpush1.msra.mxu0 0.0
    %904 = vmatprep.subr.mxu0 0.0
    %905 = vmatpush1.msra.mxu0 0.0
    %906 = vmatprep.subr.mxu0 0.0
    %907 = vmatpush1.msra.mxu0 0.0
    %908 = vmatprep.subr.mxu0 0.0
    %909 = vmatpush1.msra.mxu0 0.0
    %910 = vmatprep.subr.mxu0 0.0
    %911 = vmatpush1.msra.mxu0 0.0
    %912 = vmatprep.subr.mxu0 0.0
    %913 = vmatpush1.msra.mxu0 0.0
    %914 = vmatprep.subr.mxu0 0.0
    %915 = vmatpush1.msra.mxu0 0.0
    %916 = vmatprep.subr.mxu0 0.0
    %917 = vmatpush1.msra.mxu0 0.0
    %918 = vmatprep.subr.mxu0 0.0
    %919 = vmatpush1.msra.mxu0 0.0
    %920 = vmatprep.mubr.f32.mxu0 0.0
    %921 = vmatmul.mubr.f32.gmra.mrb[0].mxu0 %v778
    %v922 = vpop.f32.mrb[0].mxu0
    %v923 = vadd.f32 0.0, %v922
    %v924 = vpop.f32.mrb[0].mxu0
    %925 = vdwg.mxu0
    %v926 = vadd.f32 %v782, %v852
    %v927 = vadd.f32 %v783, %v854
    %v928 = vxor.u32 %v926, 2147483648
    %v929 = vxor.u32 %v927, 2147483648
    %v930 = vmul.f32 %v928, 1.442695
    %v931 = vpow.pop %v930
    %v932 = vmul.f32 %v929, 1.442695
    %v933 = vpow.pop %v932
    %v934 = vadd.f32 %v931, 1.0
    %v935 = vadd.f32 %v933, 1.0
    %v936 = vrcp.pop %v934
    %v937 = vmul.f32 1.0, %v936
    %v938 = vrcp.pop %v935
    %v939 = vmul.f32 1.0, %v938
    %v940 = vadd.f32 %v923, %v104
    %v941 = vmul.f32 %v937, %v940
    %v942 = vadd.f32 %v784, %v941
    %v943 = vtanh.pop %v942
    %v944 = vsub.f32 1.0, %v939
    %v945 = vmul.f32 %v944, %v943
    %v946 = vmul.f32 %v939, %v778
    %v947 = vadd.f32 %v945, %v946
    %s948 = scalar_lea.vmem [#allocation8], 32
    %949 = vst [vmem:[%s948] sm:$0xff] %v947
    %s950 = scalar_lea.vmem [#allocation3], 120
    %v951 = vld [vmem:[%s950] sm:$0xff]
    %v952 = vld [vmem:[%s950 + $0x8] sm:$0xff]
    %v953 = vld [vmem:[%s950 + $0x10] sm:$0xff]
    %954 = vmatprep.subr.mxu0 %v52
    %955 = vmatpush1.msra.mxu0 %v51
    %956 = vmatprep.subr.mxu0 %v55
    %957 = vmatpush1.msra.mxu0 %v54
    %958 = vmatprep.subr.mxu0 %v58
    %959 = vmatpush1.msra.mxu0 %v57
    %960 = vmatprep.subr.mxu0 %v61
    %961 = vmatpush1.msra.mxu0 %v60
    %962 = vmatprep.subr.mxu0 %v64
    %963 = vmatpush1.msra.mxu0 %v63
    %964 = vmatprep.subr.mxu0 %v67
    %965 = vmatpush1.msra.mxu0 %v66
    %966 = vmatprep.subr.mxu0 %v70
    %967 = vmatpush1.msra.mxu0 %v69
    %968 = vmatprep.subr.mxu0 %v73
    %969 = vmatpush1.msra.mxu0 %v72
    %970 = vmatprep.subr.mxu0 %v76
    %971 = vmatpush1.msra.mxu0 %v75
    %972 = vmatprep.subr.mxu0 %v79
    %973 = vmatpush1.msra.mxu0 %v78
    %974 = vmatprep.subr.mxu0 %v82
    %975 = vmatpush1.msra.mxu0 %v81
    %976 = vmatprep.subr.mxu0 %v85
    %977 = vmatpush1.msra.mxu0 %v84
    %978 = vmatprep.subr.mxu0 %v88
    %979 = vmatpush1.msra.mxu0 %v87
    %980 = vmatprep.subr.mxu0 %v91
    %981 = vmatpush1.msra.mxu0 %v90
    %982 = vmatprep.subr.mxu0 %v94
    %983 = vmatpush1.msra.mxu0 %v93
    %984 = vmatprep.subr.mxu0 %v97
    %985 = vmatpush1.msra.mxu0 %v96
    %986 = vmatprep.subr.mxu0 0.0
    %987 = vmatpush1.msra.mxu0 0.0
    %988 = vmatprep.subr.mxu0 0.0
    %989 = vmatpush1.msra.mxu0 0.0
    %990 = vmatprep.subr.mxu0 0.0
    %991 = vmatpush1.msra.mxu0 0.0
    %992 = vmatprep.subr.mxu0 0.0
    %993 = vmatpush1.msra.mxu0 0.0
    %994 = vmatprep.subr.mxu0 0.0
    %995 = vmatpush1.msra.mxu0 0.0
    %996 = vmatprep.subr.mxu0 0.0
    %997 = vmatpush1.msra.mxu0 0.0
    %998 = vmatprep.subr.mxu0 0.0
    %999 = vmatpush1.msra.mxu0 0.0
    %1000 = vmatprep.subr.mxu0 0.0
    %1001 = vmatpush1.msra.mxu0 0.0
    %1002 = vmatprep.subr.mxu0 0.0
    %1003 = vmatpush1.msra.mxu0 0.0
    %1004 = vmatprep.subr.mxu0 0.0
    %1005 = vmatpush1.msra.mxu0 0.0
    %1006 = vmatprep.subr.mxu0 0.0
    %1007 = vmatpush1.msra.mxu0 0.0
    %1008 = vmatprep.subr.mxu0 0.0
    %1009 = vmatpush1.msra.mxu0 0.0
    %1010 = vmatprep.subr.mxu0 0.0
    %1011 = vmatpush1.msra.mxu0 0.0
    %1012 = vmatprep.subr.mxu0 0.0
    %1013 = vmatpush1.msra.mxu0 0.0
    %1014 = vmatprep.subr.mxu0 0.0
    %1015 = vmatpush1.msra.mxu0 0.0
    %1016 = vmatprep.subr.mxu0 0.0
    %1017 = vmatpush1.msra.mxu0 0.0
    %1018 = vmatprep.mubr.f32.mxu0 0.0
    %1019 = vmatmul.mubr.f32.gmra.mrb[0].mxu0 %v947
    %v1020 = vpop.f32.mrb[0].mxu0
    %v1021 = vadd.f32 0.0, %v1020
    %v1022 = vpop.f32.mrb[0].mxu0
    %v1023 = vadd.f32 0.0, %v1022
    %1024 = vdwg.mxu0
    %1025 = vmatprep.subr.mxu0 0.0
    %1026 = vmatpush1.msra.mxu0 %v53
    %1027 = vmatprep.subr.mxu0 0.0
    %1028 = vmatpush1.msra.mxu0 %v56
    %1029 = vmatprep.subr.mxu0 0.0
    %1030 = vmatpush1.msra.mxu0 %v59
    %1031 = vmatprep.subr.mxu0 0.0
    %1032 = vmatpush1.msra.mxu0 %v62
    %1033 = vmatprep.subr.mxu0 0.0
    %1034 = vmatpush1.msra.mxu0 %v65
    %1035 = vmatprep.subr.mxu0 0.0
    %1036 = vmatpush1.msra.mxu0 %v68
    %1037 = vmatprep.subr.mxu0 0.0
    %1038 = vmatpush1.msra.mxu0 %v71
    %1039 = vmatprep.subr.mxu0 0.0
    %1040 = vmatpush1.msra.mxu0 %v74
    %1041 = vmatprep.subr.mxu0 0.0
    %1042 = vmatpush1.msra.mxu0 %v77
    %1043 = vmatprep.subr.mxu0 0.0
    %1044 = vmatpush1.msra.mxu0 %v80
    %1045 = vmatprep.subr.mxu0 0.0
    %1046 = vmatpush1.msra.mxu0 %v83
    %1047 = vmatprep.subr.mxu0 0.0
    %1048 = vmatpush1.msra.mxu0 %v86
    %1049 = vmatprep.subr.mxu0 0.0
    %1050 = vmatpush1.msra.mxu0 %v89
    %1051 = vmatprep.subr.mxu0 0.0
    %1052 = vmatpush1.msra.mxu0 %v92
    %1053 = vmatprep.subr.mxu0 0.0
    %1054 = vmatpush1.msra.mxu0 %v95
    %1055 = vmatprep.subr.mxu0 0.0
    %1056 = vmatpush1.msra.mxu0 %v98
    %1057 = vmatprep.subr.mxu0 0.0
    %1058 = vmatpush1.msra.mxu0 0.0
    %1059 = vmatprep.subr.mxu0 0.0
    %1060 = vmatpush1.msra.mxu0 0.0
    %1061 = vmatprep.subr.mxu0 0.0
    %1062 = vmatpush1.msra.mxu0 0.0
    %1063 = vmatprep.subr.mxu0 0.0
    %1064 = vmatpush1.msra.mxu0 0.0
    %1065 = vmatprep.subr.mxu0 0.0
    %1066 = vmatpush1.msra.mxu0 0.0
    %1067 = vmatprep.subr.mxu0 0.0
    %1068 = vmatpush1.msra.mxu0 0.0
    %1069 = vmatprep.subr.mxu0 0.0
    %1070 = vmatpush1.msra.mxu0 0.0
    %1071 = vmatprep.subr.mxu0 0.0
    %1072 = vmatpush1.msra.mxu0 0.0
    %1073 = vmatprep.subr.mxu0 0.0
    %1074 = vmatpush1.msra.mxu0 0.0
    %1075 = vmatprep.subr.mxu0 0.0
    %1076 = vmatpush1.msra.mxu0 0.0
    %1077 = vmatprep.subr.mxu0 0.0
    %1078 = vmatpush1.msra.mxu0 0.0
    %1079 = vmatprep.subr.mxu0 0.0
    %1080 = vmatpush1.msra.mxu0 0.0
    %1081 = vmatprep.subr.mxu0 0.0
    %1082 = vmatpush1.msra.mxu0 0.0
    %1083 = vmatprep.subr.mxu0 0.0
    %1084 = vmatpush1.msra.mxu0 0.0
    %1085 = vmatprep.subr.mxu0 0.0
    %1086 = vmatpush1.msra.mxu0 0.0
    %1087 = vmatprep.subr.mxu0 0.0
    %1088 = vmatpush1.msra.mxu0 0.0
    %1089 = vmatprep.mubr.f32.mxu0 0.0
    %1090 = vmatmul.mubr.f32.gmra.mrb[0].mxu0 %v947
    %v1091 = vpop.f32.mrb[0].mxu0
    %v1092 = vadd.f32 0.0, %v1091
    %v1093 = vpop.f32.mrb[0].mxu0
    %1094 = vdwg.mxu0
    %v1095 = vadd.f32 %v951, %v1021
    %v1096 = vadd.f32 %v952, %v1023
    %v1097 = vxor.u32 %v1095, 2147483648
    %v1098 = vxor.u32 %v1096, 2147483648
    %v1099 = vmul.f32 %v1097, 1.442695
    %v1100 = vpow.pop %v1099
    %v1101 = vmul.f32 %v1098, 1.442695
    %v1102 = vpow.pop %v1101
    %v1103 = vadd.f32 %v1100, 1.0
    %v1104 = vadd.f32 %v1102, 1.0
    %v1105 = vrcp.pop %v1103
    %v1106 = vmul.f32 1.0, %v1105
    %v1107 = vrcp.pop %v1104
    %v1108 = vmul.f32 1.0, %v1107
    %v1109 = vadd.f32 %v1092, %v104
    %v1110 = vmul.f32 %v1106, %v1109
    %v1111 = vadd.f32 %v953, %v1110
    %v1112 = vtanh.pop %v1111
    %v1113 = vsub.f32 1.0, %v1108
    %v1114 = vmul.f32 %v1113, %v1112
    %v1115 = vmul.f32 %v1108, %v947
    %v1116 = vadd.f32 %v1114, %v1115
    %s1117 = scalar_lea.vmem [#allocation8], 40
    %1118 = vst [vmem:[%s1117] sm:$0xff] %v1116
    %s1119 = scalar_lea.vmem [#allocation3], 144
    %v1120 = vld [vmem:[%s1119] sm:$0xff]
    %v1121 = vld [vmem:[%s1119 + $0x8] sm:$0xff]
    %v1122 = vld [vmem:[%s1119 + $0x10] sm:$0xff]
    %1123 = vmatprep.subr.mxu0 %v52
    %1124 = vmatpush1.msra.mxu0 %v51
    %1125 = vmatprep.subr.mxu0 %v55
    %1126 = vmatpush1.msra.mxu0 %v54
    %1127 = vmatprep.subr.mxu0 %v58
    %1128 = vmatpush1.msra.mxu0 %v57
    %1129 = vmatprep.subr.mxu0 %v61
    %1130 = vmatpush1.msra.mxu0 %v60
    %1131 = vmatprep.subr.mxu0 %v64
    %1132 = vmatpush1.msra.mxu0 %v63
    %1133 = vmatprep.subr.mxu0 %v67
    %1134 = vmatpush1.msra.mxu0 %v66
    %1135 = vmatprep.subr.mxu0 %v70
    %1136 = vmatpush1.msra.mxu0 %v69
    %1137 = vmatprep.subr.mxu0 %v73
    %1138 = vmatpush1.msra.mxu0 %v72
    %1139 = vmatprep.subr.mxu0 %v76
    %1140 = vmatpush1.msra.mxu0 %v75
    %1141 = vmatprep.subr.mxu0 %v79
    %1142 = vmatpush1.msra.mxu0 %v78
    %1143 = vmatprep.subr.mxu0 %v82
    %1144 = vmatpush1.msra.mxu0 %v81
    %1145 = vmatprep.subr.mxu0 %v85
    %1146 = vmatpush1.msra.mxu0 %v84
    %1147 = vmatprep.subr.mxu0 %v88
    %1148 = vmatpush1.msra.mxu0 %v87
    %1149 = vmatprep.subr.mxu0 %v91
    %1150 = vmatpush1.msra.mxu0 %v90
    %1151 = vmatprep.subr.mxu0 %v94
    %1152 = vmatpush1.msra.mxu0 %v93
    %1153 = vmatprep.subr.mxu0 %v97
    %1154 = vmatpush1.msra.mxu0 %v96
    %1155 = vmatprep.subr.mxu0 0.0
    %1156 = vmatpush1.msra.mxu0 0.0
    %1157 = vmatprep.subr.mxu0 0.0
    %1158 = vmatpush1.msra.mxu0 0.0
    %1159 = vmatprep.subr.mxu0 0.0
    %1160 = vmatpush1.msra.mxu0 0.0
    %1161 = vmatprep.subr.mxu0 0.0
    %1162 = vmatpush1.msra.mxu0 0.0
    %1163 = vmatprep.subr.mxu0 0.0
    %1164 = vmatpush1.msra.mxu0 0.0
    %1165 = vmatprep.subr.mxu0 0.0
    %1166 = vmatpush1.msra.mxu0 0.0
    %1167 = vmatprep.subr.mxu0 0.0
    %1168 = vmatpush1.msra.mxu0 0.0
    %1169 = vmatprep.subr.mxu0 0.0
    %1170 = vmatpush1.msra.mxu0 0.0
    %1171 = vmatprep.subr.mxu0 0.0
    %1172 = vmatpush1.msra.mxu0 0.0
    %1173 = vmatprep.subr.mxu0 0.0
    %1174 = vmatpush1.msra.mxu0 0.0
    %1175 = vmatprep.subr.mxu0 0.0
    %1176 = vmatpush1.msra.mxu0 0.0
    %1177 = vmatprep.subr.mxu0 0.0
    %1178 = vmatpush1.msra.mxu0 0.0
    %1179 = vmatprep.subr.mxu0 0.0
    %1180 = vmatpush1.msra.mxu0 0.0
    %1181 = vmatprep.subr.mxu0 0.0
    %1182 = vmatpush1.msra.mxu0 0.0
    %1183 = vmatprep.subr.mxu0 0.0
    %1184 = vmatpush1.msra.mxu0 0.0
    %1185 = vmatprep.subr.mxu0 0.0
    %1186 = vmatpush1.msra.mxu0 0.0
    %1187 = vmatprep.mubr.f32.mxu0 0.0
    %1188 = vmatmul.mubr.f32.gmra.mrb[0].mxu0 %v1116
    %v1189 = vpop.f32.mrb[0].mxu0
    %v1190 = vadd.f32 0.0, %v1189
    %v1191 = vpop.f32.mrb[0].mxu0
    %v1192 = vadd.f32 0.0, %v1191
    %1193 = vdwg.mxu0
    %1194 = vmatprep.subr.mxu0 0.0
    %1195 = vmatpush1.msra.mxu0 %v53
    %1196 = vmatprep.subr.mxu0 0.0
    %1197 = vmatpush1.msra.mxu0 %v56
    %1198 = vmatprep.subr.mxu0 0.0
    %1199 = vmatpush1.msra.mxu0 %v59
    %1200 = vmatprep.subr.mxu0 0.0
    %1201 = vmatpush1.msra.mxu0 %v62
    %1202 = vmatprep.subr.mxu0 0.0
    %1203 = vmatpush1.msra.mxu0 %v65
    %1204 = vmatprep.subr.mxu0 0.0
    %1205 = vmatpush1.msra.mxu0 %v68
    %1206 = vmatprep.subr.mxu0 0.0
    %1207 = vmatpush1.msra.mxu0 %v71
    %1208 = vmatprep.subr.mxu0 0.0
    %1209 = vmatpush1.msra.mxu0 %v74
    %1210 = vmatprep.subr.mxu0 0.0
    %1211 = vmatpush1.msra.mxu0 %v77
    %1212 = vmatprep.subr.mxu0 0.0
    %1213 = vmatpush1.msra.mxu0 %v80
    %1214 = vmatprep.subr.mxu0 0.0
    %1215 = vmatpush1.msra.mxu0 %v83
    %1216 = vmatprep.subr.mxu0 0.0
    %1217 = vmatpush1.msra.mxu0 %v86
    %1218 = vmatprep.subr.mxu0 0.0
    %1219 = vmatpush1.msra.mxu0 %v89
    %1220 = vmatprep.subr.mxu0 0.0
    %1221 = vmatpush1.msra.mxu0 %v92
    %1222 = vmatprep.subr.mxu0 0.0
    %1223 = vmatpush1.msra.mxu0 %v95
    %1224 = vmatprep.subr.mxu0 0.0
    %1225 = vmatpush1.msra.mxu0 %v98
    %1226 = vmatprep.subr.mxu0 0.0
    %1227 = vmatpush1.msra.mxu0 0.0
    %1228 = vmatprep.subr.mxu0 0.0
    %1229 = vmatpush1.msra.mxu0 0.0
    %1230 = vmatprep.subr.mxu0 0.0
    %1231 = vmatpush1.msra.mxu0 0.0
    %1232 = vmatprep.subr.mxu0 0.0
    %1233 = vmatpush1.msra.mxu0 0.0
    %1234 = vmatprep.subr.mxu0 0.0
    %1235 = vmatpush1.msra.mxu0 0.0
    %1236 = vmatprep.subr.mxu0 0.0
    %1237 = vmatpush1.msra.mxu0 0.0
    %1238 = vmatprep.subr.mxu0 0.0
    %1239 = vmatpush1.msra.mxu0 0.0
    %1240 = vmatprep.subr.mxu0 0.0
    %1241 = vmatpush1.msra.mxu0 0.0
    %1242 = vmatprep.subr.mxu0 0.0
    %1243 = vmatpush1.msra.mxu0 0.0
    %1244 = vmatprep.subr.mxu0 0.0
    %1245 = vmatpush1.msra.mxu0 0.0
    %1246 = vmatprep.subr.mxu0 0.0
    %1247 = vmatpush1.msra.mxu0 0.0
    %1248 = vmatprep.subr.mxu0 0.0
    %1249 = vmatpush1.msra.mxu0 0.0
    %1250 = vmatprep.subr.mxu0 0.0
    %1251 = vmatpush1.msra.mxu0 0.0
    %1252 = vmatprep.subr.mxu0 0.0
    %1253 = vmatpush1.msra.mxu0 0.0
    %1254 = vmatprep.subr.mxu0 0.0
    %1255 = vmatpush1.msra.mxu0 0.0
    %1256 = vmatprep.subr.mxu0 0.0
    %1257 = vmatpush1.msra.mxu0 0.0
    %1258 = vmatprep.mubr.f32.mxu0 0.0
    %1259 = vmatmul.mubr.f32.gmra.mrb[0].mxu0 %v1116
    %v1260 = vpop.f32.mrb[0].mxu0
    %v1261 = vadd.f32 0.0, %v1260
    %v1262 = vpop.f32.mrb[0].mxu0
    %1263 = vdwg.mxu0
    %v1264 = vadd.f32 %v1120, %v1190
    %v1265 = vadd.f32 %v1121, %v1192
    %v1266 = vxor.u32 %v1264, 2147483648
    %v1267 = vxor.u32 %v1265, 2147483648
    %v1268 = vmul.f32 %v1266, 1.442695
    %v1269 = vpow.pop %v1268
    %v1270 = vmul.f32 %v1267, 1.442695
    %v1271 = vpow.pop %v1270
    %v1272 = vadd.f32 %v1269, 1.0
    %v1273 = vadd.f32 %v1271, 1.0
    %v1274 = vrcp.pop %v1272
    %v1275 = vmul.f32 1.0, %v1274
    %v1276 = vrcp.pop %v1273
    %v1277 = vmul.f32 1.0, %v1276
    %v1278 = vadd.f32 %v1261, %v104
    %v1279 = vmul.f32 %v1275, %v1278
    %v1280 = vadd.f32 %v1122, %v1279
    %v1281 = vtanh.pop %v1280
    %v1282 = vsub.f32 1.0, %v1277
    %v1283 = vmul.f32 %v1282, %v1281
    %v1284 = vmul.f32 %v1277, %v1116
    %v1285 = vadd.f32 %v1283, %v1284
    %s1286 = scalar_lea.vmem [#allocation8], 48
    %1287 = vst [vmem:[%s1286] sm:$0xff] %v1285
    %s1288 = scalar_lea.vmem [#allocation3], 168
    %v1289 = vld [vmem:[%s1288] sm:$0xff]
    %v1290 = vld [vmem:[%s1288 + $0x8] sm:$0xff]
    %v1291 = vld [vmem:[%s1288 + $0x10] sm:$0xff]
    %1292 = vmatprep.subr.mxu0 %v52
    %1293 = vmatpush1.msra.mxu0 %v51
    %1294 = vmatprep.subr.mxu0 %v55
    %1295 = vmatpush1.msra.mxu0 %v54
    %1296 = vmatprep.subr.mxu0 %v58
    %1297 = vmatpush1.msra.mxu0 %v57
    %1298 = vmatprep.subr.mxu0 %v61
    %1299 = vmatpush1.msra.mxu0 %v60
    %1300 = vmatprep.subr.mxu0 %v64
    %1301 = vmatpush1.msra.mxu0 %v63
    %1302 = vmatprep.subr.mxu0 %v67
    %1303 = vmatpush1.msra.mxu0 %v66
    %1304 = vmatprep.subr.mxu0 %v70
    %1305 = vmatpush1.msra.mxu0 %v69
    %1306 = vmatprep.subr.mxu0 %v73
    %1307 = vmatpush1.msra.mxu0 %v72
    %1308 = vmatprep.subr.mxu0 %v76
    %1309 = vmatpush1.msra.mxu0 %v75
    %1310 = vmatprep.subr.mxu0 %v79
    %1311 = vmatpush1.msra.mxu0 %v78
    %1312 = vmatprep.subr.mxu0 %v82
    %1313 = vmatpush1.msra.mxu0 %v81
    %1314 = vmatprep.subr.mxu0 %v85
    %1315 = vmatpush1.msra.mxu0 %v84
    %1316 = vmatprep.subr.mxu0 %v88
    %1317 = vmatpush1.msra.mxu0 %v87
    %1318 = vmatprep.subr.mxu0 %v91
    %1319 = vmatpush1.msra.mxu0 %v90
    %1320 = vmatprep.subr.mxu0 %v94
    %1321 = vmatpush1.msra.mxu0 %v93
    %1322 = vmatprep.subr.mxu0 %v97
    %1323 = vmatpush1.msra.mxu0 %v96
    %1324 = vmatprep.subr.mxu0 0.0
    %1325 = vmatpush1.msra.mxu0 0.0
    %1326 = vmatprep.subr.mxu0 0.0
    %1327 = vmatpush1.msra.mxu0 0.0
    %1328 = vmatprep.subr.mxu0 0.0
    %1329 = vmatpush1.msra.mxu0 0.0
    %1330 = vmatprep.subr.mxu0 0.0
    %1331 = vmatpush1.msra.mxu0 0.0
    %1332 = vmatprep.subr.mxu0 0.0
    %1333 = vmatpush1.msra.mxu0 0.0
    %1334 = vmatprep.subr.mxu0 0.0
    %1335 = vmatpush1.msra.mxu0 0.0
    %1336 = vmatprep.subr.mxu0 0.0
    %1337 = vmatpush1.msra.mxu0 0.0
    %1338 = vmatprep.subr.mxu0 0.0
    %1339 = vmatpush1.msra.mxu0 0.0
    %1340 = vmatprep.subr.mxu0 0.0
    %1341 = vmatpush1.msra.mxu0 0.0
    %1342 = vmatprep.subr.mxu0 0.0
    %1343 = vmatpush1.msra.mxu0 0.0
    %1344 = vmatprep.subr.mxu0 0.0
    %1345 = vmatpush1.msra.mxu0 0.0
    %1346 = vmatprep.subr.mxu0 0.0
    %1347 = vmatpush1.msra.mxu0 0.0
    %1348 = vmatprep.subr.mxu0 0.0
    %1349 = vmatpush1.msra.mxu0 0.0
    %1350 = vmatprep.subr.mxu0 0.0
    %1351 = vmatpush1.msra.mxu0 0.0
    %1352 = vmatprep.subr.mxu0 0.0
    %1353 = vmatpush1.msra.mxu0 0.0
    %1354 = vmatprep.subr.mxu0 0.0
    %1355 = vmatpush1.msra.mxu0 0.0
    %1356 = vmatprep.mubr.f32.mxu0 0.0
    %1357 = vmatmul.mubr.f32.gmra.mrb[0].mxu0 %v1285
    %v1358 = vpop.f32.mrb[0].mxu0
    %v1359 = vadd.f32 0.0, %v1358
    %v1360 = vpop.f32.mrb[0].mxu0
    %v1361 = vadd.f32 0.0, %v1360
    %1362 = vdwg.mxu0
    %1363 = vmatprep.subr.mxu0 0.0
    %1364 = vmatpush1.msra.mxu0 %v53
    %1365 = vmatprep.subr.mxu0 0.0
    %1366 = vmatpush1.msra.mxu0 %v56
    %1367 = vmatprep.subr.mxu0 0.0
    %1368 = vmatpush1.msra.mxu0 %v59
    %1369 = vmatprep.subr.mxu0 0.0
    %1370 = vmatpush1.msra.mxu0 %v62
    %1371 = vmatprep.subr.mxu0 0.0
    %1372 = vmatpush1.msra.mxu0 %v65
    %1373 = vmatprep.subr.mxu0 0.0
    %1374 = vmatpush1.msra.mxu0 %v68
    %1375 = vmatprep.subr.mxu0 0.0
    %1376 = vmatpush1.msra.mxu0 %v71
    %1377 = vmatprep.subr.mxu0 0.0
    %1378 = vmatpush1.msra.mxu0 %v74
    %1379 = vmatprep.subr.mxu0 0.0
    %1380 = vmatpush1.msra.mxu0 %v77
    %1381 = vmatprep.subr.mxu0 0.0
    %1382 = vmatpush1.msra.mxu0 %v80
    %1383 = vmatprep.subr.mxu0 0.0
    %1384 = vmatpush1.msra.mxu0 %v83
    %1385 = vmatprep.subr.mxu0 0.0
    %1386 = vmatpush1.msra.mxu0 %v86
    %1387 = vmatprep.subr.mxu0 0.0
    %1388 = vmatpush1.msra.mxu0 %v89
    %1389 = vmatprep.subr.mxu0 0.0
    %1390 = vmatpush1.msra.mxu0 %v92
    %1391 = vmatprep.subr.mxu0 0.0
    %1392 = vmatpush1.msra.mxu0 %v95
    %1393 = vmatprep.subr.mxu0 0.0
    %1394 = vmatpush1.msra.mxu0 %v98
    %1395 = vmatprep.subr.mxu0 0.0
    %1396 = vmatpush1.msra.mxu0 0.0
    %1397 = vmatprep.subr.mxu0 0.0
    %1398 = vmatpush1.msra.mxu0 0.0
    %1399 = vmatprep.subr.mxu0 0.0
    %1400 = vmatpush1.msra.mxu0 0.0
    %1401 = vmatprep.subr.mxu0 0.0
    %1402 = vmatpush1.msra.mxu0 0.0
    %1403 = vmatprep.subr.mxu0 0.0
    %1404 = vmatpush1.msra.mxu0 0.0
    %1405 = vmatprep.subr.mxu0 0.0
    %1406 = vmatpush1.msra.mxu0 0.0
    %1407 = vmatprep.subr.mxu0 0.0
    %1408 = vmatpush1.msra.mxu0 0.0
    %1409 = vmatprep.subr.mxu0 0.0
    %1410 = vmatpush1.msra.mxu0 0.0
    %1411 = vmatprep.subr.mxu0 0.0
    %1412 = vmatpush1.msra.mxu0 0.0
    %1413 = vmatprep.subr.mxu0 0.0
    %1414 = vmatpush1.msra.mxu0 0.0
    %1415 = vmatprep.subr.mxu0 0.0
    %1416 = vmatpush1.msra.mxu0 0.0
    %1417 = vmatprep.subr.mxu0 0.0
    %1418 = vmatpush1.msra.mxu0 0.0
    %1419 = vmatprep.subr.mxu0 0.0
    %1420 = vmatpush1.msra.mxu0 0.0
    %1421 = vmatprep.subr.mxu0 0.0
    %1422 = vmatpush1.msra.mxu0 0.0
    %1423 = vmatprep.subr.mxu0 0.0
    %1424 = vmatpush1.msra.mxu0 0.0
    %1425 = vmatprep.subr.mxu0 0.0
    %1426 = vmatpush1.msra.mxu0 0.0
    %1427 = vmatprep.mubr.f32.mxu0 0.0
    %1428 = vmatmul.mubr.f32.gmra.mrb[0].mxu0 %v1285
    %v1429 = vpop.f32.mrb[0].mxu0
    %v1430 = vadd.f32 0.0, %v1429
    %v1431 = vpop.f32.mrb[0].mxu0
    %1432 = vdwg.mxu0
    %v1433 = vadd.f32 %v1289, %v1359
    %v1434 = vadd.f32 %v1290, %v1361
    %v1435 = vxor.u32 %v1433, 2147483648
    %v1436 = vxor.u32 %v1434, 2147483648
    %v1437 = vmul.f32 %v1435, 1.442695
    %v1438 = vpow.pop %v1437
    %v1439 = vmul.f32 %v1436, 1.442695
    %v1440 = vpow.pop %v1439
    %v1441 = vadd.f32 %v1438, 1.0
    %v1442 = vadd.f32 %v1440, 1.0
    %v1443 = vrcp.pop %v1441
    %v1444 = vmul.f32 1.0, %v1443
    %v1445 = vrcp.pop %v1442
    %v1446 = vmul.f32 1.0, %v1445
    %v1447 = vadd.f32 %v1430, %v104
    %v1448 = vmul.f32 %v1444, %v1447
    %v1449 = vadd.f32 %v1291, %v1448
    %v1450 = vtanh.pop %v1449
    %v1451 = vsub.f32 1.0, %v1446
    %v1452 = vmul.f32 %v1451, %v1450
    %v1453 = vmul.f32 %v1446, %v1285
    %v1454 = vadd.f32 %v1452, %v1453
    %s1455 = scalar_lea.vmem [#allocation8], 56
    %1456 = vst [vmem:[%s1455] sm:$0xff] %v1454
    %1457 = vst [vmem:[#allocation2] sm:$0xff] %v1454
    // Predicated region
    $region26: #{tpu_custom_call.1} parent=1 // pred_check
      %p1458 = pneg %p46
    $region27: #{tpu_custom_call.1} parent=1 // pred_check_branch
      %1460 = sbr.rel (%p1458) target = $region29
    $region28: #{tpu_custom_call.1} parent=1 // pred_region
      %v1461 = vld [vmem:[#allocation2] sm:$0xff]
      %1462 = vst [vmem:[#allocation9] sm:$0xff] %v1461
    $region29: #{tpu_custom_call.1} parent=1 // pred_fallthru
      _
    // Predicated region
    $region30: #{tpu_custom_call.1} parent=1 // pred_check
      _
    $region31: #{tpu_custom_call.1} parent=1 // pred_check_branch
      %1464 = sbr.rel (0) target = $region33
    $region32: #{tpu_custom_call.1} parent=1 // pred_region
      %s1466 = ssub.s32 1024, 1024
      %1467 = vsyncadd [#allocation5], %s1466
      %s1468 = sshll.u32 [#allocation8], 4
      %s1469 = int_to_ptr.vmem [resolvable:$true] %s1468
      %1474 = dma.vmem_to_hbm [thread:$0]  %s1469, 1024, %s3, [#allocation5], 128, 128, 8
    $region33: #{tpu_custom_call.1} parent=1 // pred_fallthru
      _
    // Predicated region
    $region34: #{tpu_custom_call.1} parent=1 // pred_check
      _
    $region35: #{tpu_custom_call.1} parent=1 // pred_check_branch
      %1476 = sbr.rel (0) target = $region37
    $region36: #{tpu_custom_call.1} parent=1 // pred_region
      %s1478 = ssub.s32 128, 128
      %1479 = vsyncadd [#allocation10], %s1478
      %s1481 = sshll.u32 [#allocation9], 4
      %s1482 = int_to_ptr.vmem [resolvable:$true] %s1481
      %1484 = dma.vmem_to_hbm [thread:$0]  %s1482, 128, %s4, [#allocation10]
    $region37: #{tpu_custom_call.1} parent=1 // pred_fallthru
      _
    // Predicated region
    $region38: #{tpu_custom_call.1} parent=1 // pred_check
      _
    $region39: #{tpu_custom_call.1} parent=1 // pred_check_branch
      %1486 = sbr.rel (0) target = $region41
    $region40: #{tpu_custom_call.1} parent=1 // pred_region
      %1487 = dma.done [#allocation5], 1024
    $region41: #{tpu_custom_call.1} parent=1 // pred_fallthru
      _
    // Predicated region
    $region42: #{tpu_custom_call.1} parent=1 // pred_check
      _
    $region43: #{tpu_custom_call.1} parent=1 // pred_check_branch
      %1489 = sbr.rel (0) target = $region45
    $region44: #{tpu_custom_call.1} parent=1 // pred_region
      %1490 = dma.done [#allocation10], 128
    $region45: #{tpu_custom_call.1} parent=1 // pred_fallthru
      _
    %1491 = vsyncpa [#allocation4], 1
    %1492 = vsyncpa [#allocation7], 1
    %1493 = vsyncpa [#allocation5], 1
    %1494 = vsyncpa [#allocation10], 1

// kernel: tpu_custom_call.1
$region0: #{tpu_custom_call.1}
  #allocation0 [shape = 'u32[]', space=smem, size = 0x4, offset = 0x4, fixed_abs, tag = 'smem constant byte address 0x4 - core index']
  #allocation1 [shape = 'u32[144,128]{1,0:T(1,128)}', space=vmem, size = 0x12000, scoped, tag = 'internal scratch']
  #allocation2 [shape = 'f32[8,128]{1,0:T(8,128)}', space=vmem, size = 0x1000, scoped, tag = 'scratch operand']
  %s0 = inlined_call_operand.hbm [shape: f32[8,8,384], index: 0, kind: input, shape index: {}]
  %s1 = inlined_call_operand.hbm [shape: f32[128,384], index: 1, kind: input, shape index: {}]
  %s2 = inlined_call_operand.vmem [shape: f32[1,128], index: 2, kind: input, shape index: {}]
  %s3 = inlined_call_operand.hbm [shape: f32[8,8,128], index: 3, kind: output, shape index: {0}]
  %s4 = inlined_call_operand.hbm [shape: f32[8,128], index: 4, kind: output, shape index: {1}]
  %5 = xla_tuple %s3, %s4
  %s6 = sld [smem:[#allocation0]]
  $region46: #{tpu_custom_call.1} parent=0
    _
  %s8 = ssub.s32 1, %s6
  %s9 = scalar_select 0, %s8, %s6
  $region1: #{tpu_custom_call.1} parent=0
    #allocation3 [shape = 'u8[98304]{0}', space=vmem, size = 0x18000, scoped, tag = 'input window, operand 0, single buffered']
    #allocation4 [shape = 's32[1]{0}', space=sflag, size = 0x4, scoped, tag = 'scoped memory for tpu_custom_call.1']
    #allocation5 [shape = 's32[1]{0}', space=sflag, size = 0x4, scoped, tag = 'scoped memory for tpu_custom_call.1']
    #allocation6 [shape = 'u8[196608]{0}', space=vmem, size = 0x30000, scoped, tag = 'input window, operand 1, single buffered']
    #allocation7 [shape = 's32[1]{0}', space=sflag, size = 0x4, scoped, tag = 'scoped memory for tpu_custom_call.1']
    #allocation8 [shape = 'u8[32768]{0}', space=vmem, size = 0x8000, scoped, tag = 'output window, operand 0, single buffered']
    #allocation9 [shape = 'u8[4096]{0}', space=vmem, size = 0x1000, scoped, tag = 'output window, operand 1, single buffered']
    #allocation10 [shape = 's32[1]{0}', space=sflag, size = 0x4, scoped, tag = 'scoped memory for tpu_custom_call.1']
    %10 = vsyncpa [#allocation4], 0
    %11 = vsyncpa [#allocation7], 0
    %12 = vsyncpa [#allocation5], 0
    %13 = vsyncpa [#allocation10], 0
    // Predicated region
    $region2: #{tpu_custom_call.1} parent=1 // pred_check
      _
    $region3: #{tpu_custom_call.1} parent=1 // pred_check_branch
      %15 = sbr.rel (0) target = $region5
    $region4: #{tpu_custom_call.1} parent=1 // pred_region
      %s17 = ssub.s32 3072, 3072
      %18 = vsyncadd [#allocation4], %s17
      %s19 = sshll.u32 [#allocation3], 4
      %s20 = int_to_ptr.vmem [resolvable:$true] %s19
      %25 = dma.hbm_to_vmem [thread:$0]  %s0, 3072, %s20, [#allocation4], 384, 384, 24
    $region5: #{tpu_custom_call.1} parent=1 // pred_fallthru
      _
    // Predicated region
    $region6: #{tpu_custom_call.1} parent=1 // pred_check
      _
    $region7: #{tpu_custom_call.1} parent=1 // pred_check_branch
      %27 = sbr.rel (0) target = $region9
    $region8: #{tpu_custom_call.1} parent=1 // pred_region
      %s29 = ssub.s32 6144, 6144
      %30 = vsyncadd [#allocation7], %s29
      %s31 = sshll.u32 [#allocation6], 4
      %s32 = int_to_ptr.vmem [resolvable:$true] %s31
      %37 = dma.hbm_to_vmem [thread:$0]  %s1, 6144, %s32, [#allocation7], 384, 384, 24
    $region9: #{tpu_custom_call.1} parent=1 // pred_fallthru
      _
    // Predicated region
    $region10: #{tpu_custom_call.1} parent=1 // pred_check
      _
    $region11: #{tpu_custom_call.1} parent=1 // pred_check_branch
      %39 = sbr.rel (0) target = $region13
    $region12: #{tpu_custom_call.1} parent=1 // pred_region
      _
    $region13: #{tpu_custom_call.1} parent=1 // pred_fallthru
      _
    // Predicated region
    $region14: #{tpu_custom_call.1} parent=1 // pred_check
      _
    $region15: #{tpu_custom_call.1} parent=1 // pred_check_branch
      %41 = sbr.rel (0) target = $region17
    $region16: #{tpu_custom_call.1} parent=1 // pred_region
      %42 = dma.done [#allocation4], 3072
    $region17: #{tpu_custom_call.1} parent=1 // pred_fallthru
      _
    // Predicated region
    $region18: #{tpu_custom_call.1} parent=1 // pred_check
      _
    $region19: #{tpu_custom_call.1} parent=1 // pred_check_branch
      %44 = sbr.rel (0) target = $region21
    $region20: #{tpu_custom_call.1} parent=1 // pred_region
      %45 = dma.done [#allocation7], 6144
    $region21: #{tpu_custom_call.1} parent=1 // pred_fallthru
      _
    %p46 = scmp.eq.s32.totalorder 0, 0
    // Predicated region
    $region22: #{tpu_custom_call.1} parent=1 // pred_check
      %p47 = pneg %p46
    $region23: #{tpu_custom_call.1} parent=1 // pred_check_branch
      %49 = sbr.rel (%p47) target = $region25
    $region24: #{tpu_custom_call.1} parent=1 // pred_region
      %50 = vst [vmem:[#allocation2] sm:$0xff] 0.0
    $region25: #{tpu_custom_call.1} parent=1 // pred_fallthru
      _
    %v51 = vld [vmem:[#allocation6] sm:$0xff]
    %v52 = vld [vmem:[#allocation6 + $0x8] sm:$0xff]
    %v53 = vld [vmem:[#allocation6 + $0x10] sm:$0xff]
    %v54 = vld [vmem:[#allocation6 + $0x18] sm:$0xff]
    %v55 = vld [vmem:[#allocation6 + $0x20] sm:$0xff]
    %v56 = vld [vmem:[#allocation6 + $0x28] sm:$0xff]
    %v57 = vld [vmem:[#allocation6 + $0x30] sm:$0xff]
    %v58 = vld [vmem:[#allocation6 + $0x38] sm:$0xff]
    %v59 = vld [vmem:[#allocation6 + $0x40] sm:$0xff]
    %v60 = vld [vmem:[#allocation6 + $0x48] sm:$0xff]
    %v61 = vld [vmem:[#allocation6 + $0x50] sm:$0xff]
    %v62 = vld [vmem:[#allocation6 + $0x58] sm:$0xff]
    %v63 = vld [vmem:[#allocation6 + $0x60] sm:$0xff]
    %v64 = vld [vmem:[#allocation6 + $0x68] sm:$0xff]
    %v65 = vld [vmem:[#allocation6 + $0x70] sm:$0xff]
    %v66 = vld [vmem:[#allocation6 + $0x78] sm:$0xff]
    %v67 = vld [vmem:[#allocation6 + $0x80] sm:$0xff]
    %v68 = vld [vmem:[#allocation6 + $0x88] sm:$0xff]
    %v69 = vld [vmem:[#allocation6 + $0x90] sm:$0xff]
    %v70 = vld [vmem:[#allocation6 + $0x98] sm:$0xff]
    %v71 = vld [vmem:[#allocation6 + $0xa0] sm:$0xff]
    %v72 = vld [vmem:[#allocation6 + $0xa8] sm:$0xff]
    %v73 = vld [vmem:[#allocation6 + $0xb0] sm:$0xff]
    %v74 = vld [vmem:[#allocation6 + $0xb8] sm:$0xff]
    %v75 = vld [vmem:[#allocation6 + $0xc0] sm:$0xff]
    %v76 = vld [vmem:[#allocation6 + $0xc8] sm:$0xff]
    %v77 = vld [vmem:[#allocation6 + $0xd0] sm:$0xff]
    %v78 = vld [vmem:[#allocation6 + $0xd8] sm:$0xff]
    %v79 = vld [vmem:[#allocation6 + $0xe0] sm:$0xff]
    %v80 = vld [vmem:[#allocation6 + $0xe8] sm:$0xff]
    %v81 = vld [vmem:[#allocation6 + $0xf0] sm:$0xff]
    %v82 = vld [vmem:[#allocation6 + $0xf8] sm:$0xff]
    %v83 = vld [vmem:[#allocation6 + $0x100] sm:$0xff]
    %v84 = vld [vmem:[#allocation6 + $0x108] sm:$0xff]
    %v85 = vld [vmem:[#allocation6 + $0x110] sm:$0xff]
    %v86 = vld [vmem:[#allocation6 + $0x118] sm:$0xff]
    %v87 = vld [vmem:[#allocation6 + $0x120] sm:$0xff]
    %v88 = vld [vmem:[#allocation6 + $0x128] sm:$0xff]
    %v89 = vld [vmem:[#allocation6 + $0x130] sm:$0xff]
    %v90 = vld [vmem:[#allocation6 + $0x138] sm:$0xff]
    %v91 = vld [vmem:[#allocation6 + $0x140] sm:$0xff]
    %v92 = vld [vmem:[#allocation6 + $0x148] sm:$0xff]
    %v93 = vld [vmem:[#allocation6 + $0x150] sm:$0xff]
    %v94 = vld [vmem:[#allocation6 + $0x158] sm:$0xff]
    %v95 = vld [vmem:[#allocation6 + $0x160] sm:$0xff]
    %v96 = vld [vmem:[#allocation6 + $0x168] sm:$0xff]
    %v97 = vld [vmem:[#allocation6 + $0x170] sm:$0xff]
    %v98 = vld [vmem:[#allocation6 + $0x178] sm:$0xff]
    %v99 = vld [vmem:[%s2] sm:$0x1]
    %v101 = vlaneseq
    %v102 = vshrl.u32 %v101, 7
    %v103 = vsub.s32 0, %v102
    %v104 = vrot.slane %v99, %v103
    %v106 = vld [vmem:[#allocation2] sm:$0xff]
    %v107 = vld [vmem:[#allocation3] sm:$0xff]
    %v108 = vld [vmem:[#allocation3 + $0x8] sm:$0xff]
    %v109 = vld [vmem:[#allocation3 + $0x10] sm:$0xff]
    %110 = vmatprep.subr.mxu0 %v52
    %111 = vmatpush1.msra.mxu0 %v51
    %112 = vmatprep.subr.mxu0 %v55
    %113 = vmatpush1.msra.mxu0 %v54
    %114 = vmatprep.subr.mxu0 %v58
    %115 = vmatpush1.msra.mxu0 %v57
    %116 = vmatprep.subr.mxu0 %v61
    %117 = vmatpush1.msra.mxu0 %v60
    %118 = vmatprep.subr.mxu0 %v64
    %119 = vmatpush1.msra.mxu0 %v63
    %120 = vmatprep.subr.mxu0 %v67
    %121 = vmatpush1.msra.mxu0 %v66
    %122 = vmatprep.subr.mxu0 %v70
    %123 = vmatpush1.msra.mxu0 %v69
    %124 = vmatprep.subr.mxu0 %v73
    %125 = vmatpush1.msra.mxu0 %v72
    %126 = vmatprep.subr.mxu0 %v76
    %127 = vmatpush1.msra.mxu0 %v75
    %128 = vmatprep.subr.mxu0 %v79
    %129 = vmatpush1.msra.mxu0 %v78
    %130 = vmatprep.subr.mxu0 %v82
    %131 = vmatpush1.msra.mxu0 %v81
    %132 = vmatprep.subr.mxu0 %v85
    %133 = vmatpush1.msra.mxu0 %v84
    %134 = vmatprep.subr.mxu0 %v88
    %135 = vmatpush1.msra.mxu0 %v87
    %136 = vmatprep.subr.mxu0 %v91
    %137 = vmatpush1.msra.mxu0 %v90
    %138 = vmatprep.subr.mxu0 %v94
    %139 = vmatpush1.msra.mxu0 %v93
    %140 = vmatprep.subr.mxu0 %v97
    %141 = vmatpush1.msra.mxu0 %v96
    %142 = vmatprep.subr.mxu0 0.0
    %143 = vmatpush1.msra.mxu0 0.0
    %144 = vmatprep.subr.mxu0 0.0
    %145 = vmatpush1.msra.mxu0 0.0
    %146 = vmatprep.subr.mxu0 0.0
    %147 = vmatpush1.msra.mxu0 0.0
    %148 = vmatprep.subr.mxu0 0.0
    %149 = vmatpush1.msra.mxu0 0.0
    %150 = vmatprep.subr.mxu0 0.0
    %151 = vmatpush1.msra.mxu0 0.0
    %152 = vmatprep.subr.mxu0 0.0
    %153 = vmatpush1.msra.mxu0 0.0
    %154 = vmatprep.subr.mxu0 0.0
    %155 = vmatpush1.msra.mxu0 0.0
    %156 = vmatprep.subr.mxu0 0.0
    %157 = vmatpush1.msra.mxu0 0.0
    %158 = vmatprep.subr.mxu0 0.0
    %159 = vmatpush1.msra.mxu0 0.0
    %160 = vmatprep.subr.mxu0 0.0
    %161 = vmatpush1.msra.mxu0 0.0
    %162 = vmatprep.subr.mxu0 0.0
    %163 = vmatpush1.msra.mxu0 0.0
    %164 = vmatprep.subr.mxu0 0.0
    %165 = vmatpush1.msra.mxu0 0.0
    %166 = vmatprep.subr.mxu0 0.0
    %167 = vmatpush1.msra.mxu0 0.0
    %168 = vmatprep.subr.mxu0 0.0
    %169 = vmatpush1.msra.mxu0 0.0
    %170 = vmatprep.subr.mxu0 0.0
    %171 = vmatpush1.msra.mxu0 0.0
    %172 = vmatprep.subr.mxu0 0.0
    %173 = vmatpush1.msra.mxu0 0.0
    %174 = vmatprep.mubr.f32.mxu0 0.0
    %175 = vmatmul.mubr.f32.gmra.mrb[0].mxu0 %v106
    %v176 = vpop.f32.mrb[0].mxu0
    %v177 = vadd.f32 0.0, %v176
    %v178 = vpop.f32.mrb[0].mxu0
    %v179 = vadd.f32 0.0, %v178
    %180 = vdwg.mxu0
    %181 = vmatprep.subr.mxu0 0.0
    %182 = vmatpush1.msra.mxu0 %v53
    %183 = vmatprep.subr.mxu0 0.0
    %184 = vmatpush1.msra.mxu0 %v56
    %185 = vmatprep.subr.mxu0 0.0
    %186 = vmatpush1.msra.mxu0 %v59
    %187 = vmatprep.subr.mxu0 0.0
    %188 = vmatpush1.msra.mxu0 %v62
    %189 = vmatprep.subr.mxu0 0.0
    %190 = vmatpush1.msra.mxu0 %v65
    %191 = vmatprep.subr.mxu0 0.0
    %192 = vmatpush1.msra.mxu0 %v68
    %193 = vmatprep.subr.mxu0 0.0
    %194 = vmatpush1.msra.mxu0 %v71
    %195 = vmatprep.subr.mxu0 0.0
    %196 = vmatpush1.msra.mxu0 %v74
    %197 = vmatprep.subr.mxu0 0.0
    %198 = vmatpush1.msra.mxu0 %v77
    %199 = vmatprep.subr.mxu0 0.0
    %200 = vmatpush1.msra.mxu0 %v80
    %201 = vmatprep.subr.mxu0 0.0
    %202 = vmatpush1.msra.mxu0 %v83
    %203 = vmatprep.subr.mxu0 0.0
    %204 = vmatpush1.msra.mxu0 %v86
    %205 = vmatprep.subr.mxu0 0.0
    %206 = vmatpush1.msra.mxu0 %v89
    %207 = vmatprep.subr.mxu0 0.0
    %208 = vmatpush1.msra.mxu0 %v92
    %209 = vmatprep.subr.mxu0 0.0
    %210 = vmatpush1.msra.mxu0 %v95
    %211 = vmatprep.subr.mxu0 0.0
    %212 = vmatpush1.msra.mxu0 %v98
    %213 = vmatprep.subr.mxu0 0.0
    %214 = vmatpush1.msra.mxu0 0.0
    %215 = vmatprep.subr.mxu0 0.0
    %216 = vmatpush1.msra.mxu0 0.0
    %217 = vmatprep.subr.mxu0 0.0
    %218 = vmatpush1.msra.mxu0 0.0
    %219 = vmatprep.subr.mxu0 0.0
    %220 = vmatpush1.msra.mxu0 0.0
    %221 = vmatprep.subr.mxu0 0.0
    %222 = vmatpush1.msra.mxu0 0.0
    %223 = vmatprep.subr.mxu0 0.0
    %224 = vmatpush1.msra.mxu0 0.0
    %225 = vmatprep.subr.mxu0 0.0
    %226 = vmatpush1.msra.mxu0 0.0
    %227 = vmatprep.subr.mxu0 0.0
    %228 = vmatpush1.msra.mxu0 0.0
    %229 = vmatprep.subr.mxu0 0.0
    %230 = vmatpush1.msra.mxu0 0.0
    %231 = vmatprep.subr.mxu0 0.0
    %232 = vmatpush1.msra.mxu0 0.0
    %233 = vmatprep.subr.mxu0 0.0
    %234 = vmatpush1.msra.mxu0 0.0
    %235 = vmatprep.subr.mxu0 0.0
    %236 = vmatpush1.msra.mxu0 0.0
    %237 = vmatprep.subr.mxu0 0.0
    %238 = vmatpush1.msra.mxu0 0.0
    %239 = vmatprep.subr.mxu0 0.0
    %240 = vmatpush1.msra.mxu0 0.0
    %241 = vmatprep.subr.mxu0 0.0
    %242 = vmatpush1.msra.mxu0 0.0
    %243 = vmatprep.subr.mxu0 0.0
    %244 = vmatpush1.msra.mxu0 0.0
    %245 = vmatprep.mubr.f32.mxu0 0.0
    %246 = vmatmul.mubr.f32.gmra.mrb[0].mxu0 %v106
    %v247 = vpop.f32.mrb[0].mxu0
    %v248 = vadd.f32 0.0, %v247
    %v249 = vpop.f32.mrb[0].mxu0
    %250 = vdwg.mxu0
    %v251 = vadd.f32 %v107, %v177
    %v252 = vadd.f32 %v108, %v179
    %v253 = vxor.u32 %v251, 2147483648
    %v254 = vxor.u32 %v252, 2147483648
    %v255 = vmul.f32 %v253, 1.442695
    %v256 = vpow.pop %v255
    %v257 = vmul.f32 %v254, 1.442695
    %v258 = vpow.pop %v257
    %v259 = vadd.f32 %v256, 1.0
    %v260 = vadd.f32 %v258, 1.0
    %v261 = vrcp.pop %v259
    %v262 = vmul.f32 1.0, %v261
    %v263 = vrcp.pop %v260
    %v264 = vmul.f32 1.0, %v263
    %v265 = vadd.f32 %v248, %v104
    %v266 = vmul.f32 %v262, %v265
    %v267 = vadd.f32 %v109, %v266
    %v268 = vtanh.pop %v267
    %v269 = vsub.f32 1.0, %v264
    %v270 = vmul.f32 %v269, %v268
    %v271 = vmul.f32 %v264, %v106
    %v272 = vadd.f32 %v270, %v271
    %273 = vst [vmem:[#allocation8] sm:$0xff] %v272
    %s274 = scalar_lea.vmem [#allocation3], 24
    %v275 = vld [vmem:[%s274] sm:$0xff]
    %v276 = vld [vmem:[%s274 + $0x8] sm:$0xff]
    %v277 = vld [vmem:[%s274 + $0x10] sm:$0xff]
    %278 = vmatprep.subr.mxu0 %v52
    %279 = vmatpush1.msra.mxu0 %v51
    %280 = vmatprep.subr.mxu0 %v55
    %281 = vmatpush1.msra.mxu0 %v54
    %282 = vmatprep.subr.mxu0 %v58
    %283 = vmatpush1.msra.mxu0 %v57
    %284 = vmatprep.subr.mxu0 %v61
    %285 = vmatpush1.msra.mxu0 %v60
    %286 = vmatprep.subr.mxu0 %v64
    %287 = vmatpush1.msra.mxu0 %v63
    %288 = vmatprep.subr.mxu0 %v67
    %289 = vmatpush1.msra.mxu0 %v66
    %290 = vmatprep.subr.mxu0 %v70
    %291 = vmatpush1.msra.mxu0 %v69
    %292 = vmatprep.subr.mxu0 %v73
    %293 = vmatpush1.msra.mxu0 %v72
    %294 = vmatprep.subr.mxu0 %v76
    %295 = vmatpush1.msra.mxu0 %v75
    %296 = vmatprep.subr.mxu0 %v79
    %297 = vmatpush1.msra.mxu0 %v78
    %298 = vmatprep.subr.mxu0 %v82
    %299 = vmatpush1.msra.mxu0 %v81
    %300 = vmatprep.subr.mxu0 %v85
    %301 = vmatpush1.msra.mxu0 %v84
    %302 = vmatprep.subr.mxu0 %v88
    %303 = vmatpush1.msra.mxu0 %v87
    %304 = vmatprep.subr.mxu0 %v91
    %305 = vmatpush1.msra.mxu0 %v90
    %306 = vmatprep.subr.mxu0 %v94
    %307 = vmatpush1.msra.mxu0 %v93
    %308 = vmatprep.subr.mxu0 %v97
    %309 = vmatpush1.msra.mxu0 %v96
    %310 = vmatprep.subr.mxu0 0.0
    %311 = vmatpush1.msra.mxu0 0.0
    %312 = vmatprep.subr.mxu0 0.0
    %313 = vmatpush1.msra.mxu0 0.0
    %314 = vmatprep.subr.mxu0 0.0
    %315 = vmatpush1.msra.mxu0 0.0
    %316 = vmatprep.subr.mxu0 0.0
    %317 = vmatpush1.msra.mxu0 0.0
    %318 = vmatprep.subr.mxu0 0.0
    %319 = vmatpush1.msra.mxu0 0.0
    %320 = vmatprep.subr.mxu0 0.0
    %321 = vmatpush1.msra.mxu0 0.0
    %322 = vmatprep.subr.mxu0 0.0
    %323 = vmatpush1.msra.mxu0 0.0
    %324 = vmatprep.subr.mxu0 0.0
    %325 = vmatpush1.msra.mxu0 0.0
    %326 = vmatprep.subr.mxu0 0.0
    %327 = vmatpush1.msra.mxu0 0.0
    %328 = vmatprep.subr.mxu0 0.0
    %329 = vmatpush1.msra.mxu0 0.0
    %330 = vmatprep.subr.mxu0 0.0
    %331 = vmatpush1.msra.mxu0 0.0
    %332 = vmatprep.subr.mxu0 0.0
    %333 = vmatpush1.msra.mxu0 0.0
    %334 = vmatprep.subr.mxu0 0.0
    %335 = vmatpush1.msra.mxu0 0.0
    %336 = vmatprep.subr.mxu0 0.0
    %337 = vmatpush1.msra.mxu0 0.0
    %338 = vmatprep.subr.mxu0 0.0
    %339 = vmatpush1.msra.mxu0 0.0
    %340 = vmatprep.subr.mxu0 0.0
    %341 = vmatpush1.msra.mxu0 0.0
    %342 = vmatprep.mubr.f32.mxu0 0.0
    %343 = vmatmul.mubr.f32.gmra.mrb[0].mxu0 %v272
    %v344 = vpop.f32.mrb[0].mxu0
    %v345 = vadd.f32 0.0, %v344
    %v346 = vpop.f32.mrb[0].mxu0
    %v347 = vadd.f32 0.0, %v346
    %348 = vdwg.mxu0
    %349 = vmatprep.subr.mxu0 0.0
    %350 = vmatpush1.msra.mxu0 %v53
    %351 = vmatprep.subr.mxu0 0.0
    %352 = vmatpush1.msra.mxu0 %v56
    %353 = vmatprep.subr.mxu0 0.0
    %354 = vmatpush1.msra.mxu0 %v59
    %355 = vmatprep.subr.mxu0 0.0
    %356 = vmatpush1.msra.mxu0 %v62
    %357 = vmatprep.subr.mxu0 0.0
    %358 = vmatpush1.msra.mxu0 %v65
    %359 = vmatprep.subr.mxu0 0.0
    %360 = vmatpush1.msra.mxu0 %v68
    %361 = vmatprep.subr.mxu0 0.0
    %362 = vmatpush1.msra.mxu0 %v71
    %363 = vmatprep.subr.mxu0 0.0
    %364 = vmatpush1.msra.mxu0 %v74
    %365 = vmatprep.subr.mxu0 0.0
    %366 = vmatpush1.msra.mxu0 %v77
    %367 = vmatprep.subr.mxu0 0.0
    %368 = vmatpush1.msra.mxu0 %v80
    %369 = vmatprep.subr.mxu0 0.0
    %370 = vmatpush1.msra.mxu0 %v83
    %371 = vmatprep.subr.mxu0 0.0
    %372 = vmatpush1.msra.mxu0 %v86
    %373 = vmatprep.subr.mxu0 0.0
    %374 = vmatpush1.msra.mxu0 %v89
    %375 = vmatprep.subr.mxu0 0.0
    %376 = vmatpush1.msra.mxu0 %v92
    %377 = vmatprep.subr.mxu0 0.0
    %378 = vmatpush1.msra.mxu0 %v95
    %379 = vmatprep.subr.mxu0 0.0
    %380 = vmatpush1.msra.mxu0 %v98
    %381 = vmatprep.subr.mxu0 0.0
    %382 = vmatpush1.msra.mxu0 0.0
    %383 = vmatprep.subr.mxu0 0.0
    %384 = vmatpush1.msra.mxu0 0.0
    %385 = vmatprep.subr.mxu0 0.0
    %386 = vmatpush1.msra.mxu0 0.0
    %387 = vmatprep.subr.mxu0 0.0
    %388 = vmatpush1.msra.mxu0 0.0
    %389 = vmatprep.subr.mxu0 0.0
    %390 = vmatpush1.msra.mxu0 0.0
    %391 = vmatprep.subr.mxu0 0.0
    %392 = vmatpush1.msra.mxu0 0.0
    %393 = vmatprep.subr.mxu0 0.0
    %394 = vmatpush1.msra.mxu0 0.0
    %395 = vmatprep.subr.mxu0 0.0
    %396 = vmatpush1.msra.mxu0 0.0
    %397 = vmatprep.subr.mxu0 0.0
    %398 = vmatpush1.msra.mxu0 0.0
    %399 = vmatprep.subr.mxu0 0.0
    %400 = vmatpush1.msra.mxu0 0.0
    %401 = vmatprep.subr.mxu0 0.0
    %402 = vmatpush1.msra.mxu0 0.0
    %403 = vmatprep.subr.mxu0 0.0
    %404 = vmatpush1.msra.mxu0 0.0
    %405 = vmatprep.subr.mxu0 0.0
    %406 = vmatpush1.msra.mxu0 0.0
    %407 = vmatprep.subr.mxu0 0.0
    %408 = vmatpush1.msra.mxu0 0.0
    %409 = vmatprep.subr.mxu0 0.0
    %410 = vmatpush1.msra.mxu0 0.0
    %411 = vmatprep.subr.mxu0 0.0
    %412 = vmatpush1.msra.mxu0 0.0
    %413 = vmatprep.mubr.f32.mxu0 0.0
    %414 = vmatmul.mubr.f32.gmra.mrb[0].mxu0 %v272
    %v415 = vpop.f32.mrb[0].mxu0
    %v416 = vadd.f32 0.0, %v415
    %v417 = vpop.f32.mrb[0].mxu0
    %418 = vdwg.mxu0
    %v419 = vadd.f32 %v275, %v345
    %v420 = vadd.f32 %v276, %v347
    %v421 = vxor.u32 %v419, 2147483648
    %v422 = vxor.u32 %v420, 2147483648
    %v423 = vmul.f32 %v421, 1.442695
    %v424 = vpow.pop %v423
    %v425 = vmul.f32 %v422, 1.442695
    %v426 = vpow.pop %v425
    %v427 = vadd.f32 %v424, 1.0
    %v428 = vadd.f32 %v426, 1.0
    %v429 = vrcp.pop %v427
    %v430 = vmul.f32 1.0, %v429
    %v431 = vrcp.pop %v428
    %v432 = vmul.f32 1.0, %v431
    %v433 = vadd.f32 %v416, %v104
    %v434 = vmul.f32 %v430, %v433
    %v435 = vadd.f32 %v277, %v434
    %v436 = vtanh.pop %v435
    %v437 = vsub.f32 1.0, %v432
    %v438 = vmul.f32 %v437, %v436
    %v439 = vmul.f32 %v432, %v272
    %v440 = vadd.f32 %v438, %v439
    %s441 = scalar_lea.vmem [#allocation8], 8
    %442 = vst [vmem:[%s441] sm:$0xff] %v440
    %s443 = scalar_lea.vmem [#allocation3], 48
    %v444 = vld [vmem:[%s443] sm:$0xff]
    %v445 = vld [vmem:[%s443 + $0x8] sm:$0xff]
    %v446 = vld [vmem:[%s443 + $0x10] sm:$0xff]
    %447 = vmatprep.subr.mxu0 %v52
    %448 = vmatpush1.msra.mxu0 %v51
    %449 = vmatprep.subr.mxu0 %v55
    %450 = vmatpush1.msra.mxu0 %v54
    %451 = vmatprep.subr.mxu0 %v58
    %452 = vmatpush1.msra.mxu0 %v57
    %453 = vmatprep.subr.mxu0 %v61
    %454 = vmatpush1.msra.mxu0 %v60
    %455 = vmatprep.subr.mxu0 %v64
    %456 = vmatpush1.msra.mxu0 %v63
    %457 = vmatprep.subr.mxu0 %v67
    %458 = vmatpush1.msra.mxu0 %v66
    %459 = vmatprep.subr.mxu0 %v70
    %460 = vmatpush1.msra.mxu0 %v69
    %461 = vmatprep.subr.mxu0 %v73
    %462 = vmatpush1.msra.mxu0 %v72
    %463 = vmatprep.subr.mxu0 %v76
    %464 = vmatpush1.msra.mxu0 %v75
    %465 = vmatprep.subr.mxu0 %v79
    %466 = vmatpush1.msra.mxu0 %v78
    %467 = vmatprep.subr.mxu0 %v82
    %468 = vmatpush1.msra.mxu0 %v81
    %469 = vmatprep.subr.mxu0 %v85
    %470 = vmatpush1.msra.mxu0 %v84
    %471 = vmatprep.subr.mxu0 %v88
    %472 = vmatpush1.msra.mxu0 %v87
    %473 = vmatprep.subr.mxu0 %v91
    %474 = vmatpush1.msra.mxu0 %v90
    %475 = vmatprep.subr.mxu0 %v94
    %476 = vmatpush1.msra.mxu0 %v93
    %477 = vmatprep.subr.mxu0 %v97
    %478 = vmatpush1.msra.mxu0 %v96
    %479 = vmatprep.subr.mxu0 0.0
    %480 = vmatpush1.msra.mxu0 0.0
    %481 = vmatprep.subr.mxu0 0.0
    %482 = vmatpush1.msra.mxu0 0.0
    %483 = vmatprep.subr.mxu0 0.0
    %484 = vmatpush1.msra.mxu0 0.0
    %485 = vmatprep.subr.mxu0 0.0
    %486 = vmatpush1.msra.mxu0 0.0
    %487 = vmatprep.subr.mxu0 0.0
    %488 = vmatpush1.msra.mxu0 0.0
    %489 = vmatprep.subr.mxu0 0.0
    %490 = vmatpush1.msra.mxu0 0.0
    %491 = vmatprep.subr.mxu0 0.0
    %492 = vmatpush1.msra.mxu0 0.0
    %493 = vmatprep.subr.mxu0 0.0
    %494 = vmatpush1.msra.mxu0 0.0
    %495 = vmatprep.subr.mxu0 0.0
    %496 = vmatpush1.msra.mxu0 0.0
    %497 = vmatprep.subr.mxu0 0.0
    %498 = vmatpush1.msra.mxu0 0.0
    %499 = vmatprep.subr.mxu0 0.0
    %500 = vmatpush1.msra.mxu0 0.0
    %501 = vmatprep.subr.mxu0 0.0
    %502 = vmatpush1.msra.mxu0 0.0
    %503 = vmatprep.subr.mxu0 0.0
    %504 = vmatpush1.msra.mxu0 0.0
    %505 = vmatprep.subr.mxu0 0.0
    %506 = vmatpush1.msra.mxu0 0.0
    %507 = vmatprep.subr.mxu0 0.0
    %508 = vmatpush1.msra.mxu0 0.0
    %509 = vmatprep.subr.mxu0 0.0
    %510 = vmatpush1.msra.mxu0 0.0
    %511 = vmatprep.mubr.f32.mxu0 0.0
    %512 = vmatmul.mubr.f32.gmra.mrb[0].mxu0 %v440
    %v513 = vpop.f32.mrb[0].mxu0
    %v514 = vadd.f32 0.0, %v513
    %v515 = vpop.f32.mrb[0].mxu0
    %v516 = vadd.f32 0.0, %v515
    %517 = vdwg.mxu0
    %518 = vmatprep.subr.mxu0 0.0
    %519 = vmatpush1.msra.mxu0 %v53
    %520 = vmatprep.subr.mxu0 0.0
    %521 = vmatpush1.msra.mxu0 %v56
    %522 = vmatprep.subr.mxu0 0.0
    %523 = vmatpush1.msra.mxu0 %v59
    %524 = vmatprep.subr.mxu0 0.0
    %525 = vmatpush1.msra.mxu0 %v62
    %526 = vmatprep.subr.mxu0 0.0
    %527 = vmatpush1.msra.mxu0 %v65
    %528 = vmatprep.subr.mxu0 0.0
    %529 = vmatpush1.msra.mxu0 %v68
    %530 = vmatprep.subr.mxu0 0.0
    %531 = vmatpush1.msra.mxu0 %v71
    %532 = vmatprep.subr.mxu0 0.0
    %533 = vmatpush1.msra.mxu0 %v74
    %534 = vmatprep.subr.mxu0 0.0
    %535 = vmatpush1.msra.mxu0 %v77
    %536 = vmatprep.subr.mxu0 0.0
    %537 = vmatpush1.msra.mxu0 %v80
    %538 = vmatprep.subr.mxu0 0.0
    %539 = vmatpush1.msra.mxu0 %v83
    %540 = vmatprep.subr.mxu0 0.0
    %541 = vmatpush1.msra.mxu0 %v86
    %542 = vmatprep.subr.mxu0 0.0
    %543 = vmatpush1.msra.mxu0 %v89
    %544 = vmatprep.subr.mxu0 0.0
    %545 = vmatpush1.msra.mxu0 %v92
    %546 = vmatprep.subr.mxu0 0.0
    %547 = vmatpush1.msra.mxu0 %v95
    %548 = vmatprep.subr.mxu0 0.0
    %549 = vmatpush1.msra.mxu0 %v98
    %550 = vmatprep.subr.mxu0 0.0
    %551 = vmatpush1.msra.mxu0 0.0
    %552 = vmatprep.subr.mxu0 0.0
    %553 = vmatpush1.msra.mxu0 0.0
    %554 = vmatprep.subr.mxu0 0.0
    %555 = vmatpush1.msra.mxu0 0.0
    %556 = vmatprep.subr.mxu0 0.0
    %557 = vmatpush1.msra.mxu0 0.0
    %558 = vmatprep.subr.mxu0 0.0
    %559 = vmatpush1.msra.mxu0 0.0
    %560 = vmatprep.subr.mxu0 0.0
    %561 = vmatpush1.msra.mxu0 0.0
    %562 = vmatprep.subr.mxu0 0.0
    %563 = vmatpush1.msra.mxu0 0.0
    %564 = vmatprep.subr.mxu0 0.0
    %565 = vmatpush1.msra.mxu0 0.0
    %566 = vmatprep.subr.mxu0 0.0
    %567 = vmatpush1.msra.mxu0 0.0
    %568 = vmatprep.subr.mxu0 0.0
    %569 = vmatpush1.msra.mxu0 0.0
    %570 = vmatprep.subr.mxu0 0.0
    %571 = vmatpush1.msra.mxu0 0.0
    %572 = vmatprep.subr.mxu0 0.0
    %573 = vmatpush1.msra.mxu0 0.0
    %574 = vmatprep.subr.mxu0 0.0
    %575 = vmatpush1.msra.mxu0 0.0
    %576 = vmatprep.subr.mxu0 0.0
    %577 = vmatpush1.msra.mxu0 0.0
    %578 = vmatprep.subr.mxu0 0.0
    %579 = vmatpush1.msra.mxu0 0.0
    %580 = vmatprep.subr.mxu0 0.0
    %581 = vmatpush1.msra.mxu0 0.0
    %582 = vmatprep.mubr.f32.mxu0 0.0
    %583 = vmatmul.mubr.f32.gmra.mrb[0].mxu0 %v440
    %v584 = vpop.f32.mrb[0].mxu0
    %v585 = vadd.f32 0.0, %v584
    %v586 = vpop.f32.mrb[0].mxu0
    %587 = vdwg.mxu0
    %v588 = vadd.f32 %v444, %v514
    %v589 = vadd.f32 %v445, %v516
    %v590 = vxor.u32 %v588, 2147483648
    %v591 = vxor.u32 %v589, 2147483648
    %v592 = vmul.f32 %v590, 1.442695
    %v593 = vpow.pop %v592
    %v594 = vmul.f32 %v591, 1.442695
    %v595 = vpow.pop %v594
    %v596 = vadd.f32 %v593, 1.0
    %v597 = vadd.f32 %v595, 1.0
    %v598 = vrcp.pop %v596
    %v599 = vmul.f32 1.0, %v598
    %v600 = vrcp.pop %v597
    %v601 = vmul.f32 1.0, %v600
    %v602 = vadd.f32 %v585, %v104
    %v603 = vmul.f32 %v599, %v602
    %v604 = vadd.f32 %v446, %v603
    %v605 = vtanh.pop %v604
    %v606 = vsub.f32 1.0, %v601
    %v607 = vmul.f32 %v606, %v605
    %v608 = vmul.f32 %v601, %v440
    %v609 = vadd.f32 %v607, %v608
    %s610 = scalar_lea.vmem [#allocation8], 16
    %611 = vst [vmem:[%s610] sm:$0xff] %v609
    %s612 = scalar_lea.vmem [#allocation3], 72
    %v613 = vld [vmem:[%s612] sm:$0xff]
    %v614 = vld [vmem:[%s612 + $0x8] sm:$0xff]
    %v615 = vld [vmem:[%s612 + $0x10] sm:$0xff]
    %616 = vmatprep.subr.mxu0 %v52
    %617 = vmatpush1.msra.mxu0 %v51
    %618 = vmatprep.subr.mxu0 %v55
    %619 = vmatpush1.msra.mxu0 %v54
    %620 = vmatprep.subr.mxu0 %v58
    %621 = vmatpush1.msra.mxu0 %v57
    %622 = vmatprep.subr.mxu0 %v61
    %623 = vmatpush1.msra.mxu0 %v60
    %624 = vmatprep.subr.mxu0 %v64
    %625 = vmatpush1.msra.mxu0 %v63
    %626 = vmatprep.subr.mxu0 %v67
    %627 = vmatpush1.msra.mxu0 %v66
    %628 = vmatprep.subr.mxu0 %v70
    %629 = vmatpush1.msra.mxu0 %v69
    %630 = vmatprep.subr.mxu0 %v73
    %631 = vmatpush1.msra.mxu0 %v72
    %632 = vmatprep.subr.mxu0 %v76
    %633 = vmatpush1.msra.mxu0 %v75
    %634 = vmatprep.subr.mxu0 %v79
    %635 = vmatpush1.msra.mxu0 %v78
    %636 = vmatprep.subr.mxu0 %v82
    %637 = vmatpush1.msra.mxu0 %v81
    %638 = vmatprep.subr.mxu0 %v85
    %639 = vmatpush1.msra.mxu0 %v84
    %640 = vmatprep.subr.mxu0 %v88
    %641 = vmatpush1.msra.mxu0 %v87
    %642 = vmatprep.subr.mxu0 %v91
    %643 = vmatpush1.msra.mxu0 %v90
    %644 = vmatprep.subr.mxu0 %v94
    %645 = vmatpush1.msra.mxu0 %v93
    %646 = vmatprep.subr.mxu0 %v97
    %647 = vmatpush1.msra.mxu0 %v96
    %648 = vmatprep.subr.mxu0 0.0
    %649 = vmatpush1.msra.mxu0 0.0
    %650 = vmatprep.subr.mxu0 0.0
    %651 = vmatpush1.msra.mxu0 0.0
    %652 = vmatprep.subr.mxu0 0.0
    %653 = vmatpush1.msra.mxu0 0.0
    %654 = vmatprep.subr.mxu0 0.0
    %655 = vmatpush1.msra.mxu0 0.0
    %656 = vmatprep.subr.mxu0 0.0
    %657 = vmatpush1.msra.mxu0 0.0
    %658 = vmatprep.subr.mxu0 0.0
    %659 = vmatpush1.msra.mxu0 0.0
    %660 = vmatprep.subr.mxu0 0.0
    %661 = vmatpush1.msra.mxu0 0.0
    %662 = vmatprep.subr.mxu0 0.0
    %663 = vmatpush1.msra.mxu0 0.0
    %664 = vmatprep.subr.mxu0 0.0
    %665 = vmatpush1.msra.mxu0 0.0
    %666 = vmatprep.subr.mxu0 0.0
    %667 = vmatpush1.msra.mxu0 0.0
    %668 = vmatprep.subr.mxu0 0.0
    %669 = vmatpush1.msra.mxu0 0.0
    %670 = vmatprep.subr.mxu0 0.0
    %671 = vmatpush1.msra.mxu0 0.0
    %672 = vmatprep.subr.mxu0 0.0
    %673 = vmatpush1.msra.mxu0 0.0
    %674 = vmatprep.subr.mxu0 0.0
    %675 = vmatpush1.msra.mxu0 0.0
    %676 = vmatprep.subr.mxu0 0.0
    %677 = vmatpush1.msra.mxu0 0.0
    %678 = vmatprep.subr.mxu0 0.0
    %679 = vmatpush1.msra.mxu0 0.0
    %680 = vmatprep.mubr.f32.mxu0 0.0
    %681 = vmatmul.mubr.f32.gmra.mrb[0].mxu0 %v609
    %v682 = vpop.f32.mrb[0].mxu0
    %v683 = vadd.f32 0.0, %v682
    %v684 = vpop.f32.mrb[0].mxu0
    %v685 = vadd.f32 0.0, %v684
    %686 = vdwg.mxu0
    %687 = vmatprep.subr.mxu0 0.0
    %688 = vmatpush1.msra.mxu0 %v53
    %689 = vmatprep.subr.mxu0 0.0
    %690 = vmatpush1.msra.mxu0 %v56
    %691 = vmatprep.subr.mxu0 0.0
    %692 = vmatpush1.msra.mxu0 %v59
    %693 = vmatprep.subr.mxu0 0.0
    %694 = vmatpush1.msra.mxu0 %v62
    %695 = vmatprep.subr.mxu0 0.0
    %696 = vmatpush1.msra.mxu0 %v65
    %697 = vmatprep.subr.mxu0 0.0
    %698 = vmatpush1.msra.mxu0 %v68
    %699 = vmatprep.subr.mxu0 0.0
    %700 = vmatpush1.msra.mxu0 %v71
    %701 = vmatprep.subr.mxu0 0.0
    %702 = vmatpush1.msra.mxu0 %v74
    %703 = vmatprep.subr.mxu0 0.0
    %704 = vmatpush1.msra.mxu0 %v77
    %705 = vmatprep.subr.mxu0 0.0
    %706 = vmatpush1.msra.mxu0 %v80
    %707 = vmatprep.subr.mxu0 0.0
    %708 = vmatpush1.msra.mxu0 %v83
    %709 = vmatprep.subr.mxu0 0.0
    %710 = vmatpush1.msra.mxu0 %v86
    %711 = vmatprep.subr.mxu0 0.0
    %712 = vmatpush1.msra.mxu0 %v89
    %713 = vmatprep.subr.mxu0 0.0
    %714 = vmatpush1.msra.mxu0 %v92
    %715 = vmatprep.subr.mxu0 0.0
    %716 = vmatpush1.msra.mxu0 %v95
    %717 = vmatprep.subr.mxu0 0.0
    %718 = vmatpush1.msra.mxu0 %v98
    %719 = vmatprep.subr.mxu0 0.0
    %720 = vmatpush1.msra.mxu0 0.0
    %721 = vmatprep.subr.mxu0 0.0
    %722 = vmatpush1.msra.mxu0 0.0
    %723 = vmatprep.subr.mxu0 0.0
    %724 = vmatpush1.msra.mxu0 0.0
    %725 = vmatprep.subr.mxu0 0.0
    %726 = vmatpush1.msra.mxu0 0.0
    %727 = vmatprep.subr.mxu0 0.0
    %728 = vmatpush1.msra.mxu0 0.0
    %729 = vmatprep.subr.mxu0 0.0
    %730 = vmatpush1.msra.mxu0 0.0
    %731 = vmatprep.subr.mxu0 0.0
    %732 = vmatpush1.msra.mxu0 0.0
    %733 = vmatprep.subr.mxu0 0.0
    %734 = vmatpush1.msra.mxu0 0.0
    %735 = vmatprep.subr.mxu0 0.0
    %736 = vmatpush1.msra.mxu0 0.0
    %737 = vmatprep.subr.mxu0 0.0
    %738 = vmatpush1.msra.mxu0 0.0
    %739 = vmatprep.subr.mxu0 0.0
    %740 = vmatpush1.msra.mxu0 0.0
    %741 = vmatprep.subr.mxu0 0.0
    %742 = vmatpush1.msra.mxu0 0.0
    %743 = vmatprep.subr.mxu0 0.0
    %744 = vmatpush1.msra.mxu0 0.0
    %745 = vmatprep.subr.mxu0 0.0
    %746 = vmatpush1.msra.mxu0 0.0
    %747 = vmatprep.subr.mxu0 0.0
    %748 = vmatpush1.msra.mxu0 0.0
    %749 = vmatprep.subr.mxu0 0.0
    %750 = vmatpush1.msra.mxu0 0.0
    %751 = vmatprep.mubr.f32.mxu0 0.0
    %752 = vmatmul.mubr.f32.gmra.mrb[0].mxu0 %v609
    %v753 = vpop.f32.mrb[0].mxu0
    %v754 = vadd.f32 0.0, %v753
    %v755 = vpop.f32.mrb[0].mxu0
    %756 = vdwg.mxu0
    %v757 = vadd.f32 %v613, %v683
    %v758 = vadd.f32 %v614, %v685
    %v759 = vxor.u32 %v757, 2147483648
    %v760 = vxor.u32 %v758, 2147483648
    %v761 = vmul.f32 %v759, 1.442695
    %v762 = vpow.pop %v761
    %v763 = vmul.f32 %v760, 1.442695
    %v764 = vpow.pop %v763
    %v765 = vadd.f32 %v762, 1.0
    %v766 = vadd.f32 %v764, 1.0
    %v767 = vrcp.pop %v765
    %v768 = vmul.f32 1.0, %v767
    %v769 = vrcp.pop %v766
    %v770 = vmul.f32 1.0, %v769
    %v771 = vadd.f32 %v754, %v104
    %v772 = vmul.f32 %v768, %v771
    %v773 = vadd.f32 %v615, %v772
    %v774 = vtanh.pop %v773
    %v775 = vsub.f32 1.0, %v770
    %v776 = vmul.f32 %v775, %v774
    %v777 = vmul.f32 %v770, %v609
    %v778 = vadd.f32 %v776, %v777
    %s779 = scalar_lea.vmem [#allocation8], 24
    %780 = vst [vmem:[%s779] sm:$0xff] %v778
    %s781 = scalar_lea.vmem [#allocation3], 96
    %v782 = vld [vmem:[%s781] sm:$0xff]
    %v783 = vld [vmem:[%s781 + $0x8] sm:$0xff]
    %v784 = vld [vmem:[%s781 + $0x10] sm:$0xff]
    %785 = vmatprep.subr.mxu0 %v52
    %786 = vmatpush1.msra.mxu0 %v51
    %787 = vmatprep.subr.mxu0 %v55
    %788 = vmatpush1.msra.mxu0 %v54
    %789 = vmatprep.subr.mxu0 %v58
    %790 = vmatpush1.msra.mxu0 %v57
    %791 = vmatprep.subr.mxu0 %v61
    %792 = vmatpush1.msra.mxu0 %v60
    %793 = vmatprep.subr.mxu0 %v64
    %794 = vmatpush1.msra.mxu0 %v63
    %795 = vmatprep.subr.mxu0 %v67
    %796 = vmatpush1.msra.mxu0 %v66
    %797 = vmatprep.subr.mxu0 %v70
    %798 = vmatpush1.msra.mxu0 %v69
    %799 = vmatprep.subr.mxu0 %v73
    %800 = vmatpush1.msra.mxu0 %v72
    %801 = vmatprep.subr.mxu0 %v76
    %802 = vmatpush1.msra.mxu0 %v75
    %803 = vmatprep.subr.mxu0 %v79
    %804 = vmatpush1.msra.mxu0 %v78
    %805 = vmatprep.subr.mxu0 %v82
    %806 = vmatpush1.msra.mxu0 %v81
    %807 = vmatprep.subr.mxu0 %v85
    %808 = vmatpush1.msra.mxu0 %v84
    %809 = vmatprep.subr.mxu0 %v88
    %810 = vmatpush1.msra.mxu0 %v87
    %811 = vmatprep.subr.mxu0 %v91
    %812 = vmatpush1.msra.mxu0 %v90
    %813 = vmatprep.subr.mxu0 %v94
    %814 = vmatpush1.msra.mxu0 %v93
    %815 = vmatprep.subr.mxu0 %v97
    %816 = vmatpush1.msra.mxu0 %v96
    %817 = vmatprep.subr.mxu0 0.0
    %818 = vmatpush1.msra.mxu0 0.0
    %819 = vmatprep.subr.mxu0 0.0
    %820 = vmatpush1.msra.mxu0 0.0
    %821 = vmatprep.subr.mxu0 0.0
    %822 = vmatpush1.msra.mxu0 0.0
    %823 = vmatprep.subr.mxu0 0.0
    %824 = vmatpush1.msra.mxu0 0.0
    %825 = vmatprep.subr.mxu0 0.0
    %826 = vmatpush1.msra.mxu0 0.0
    %827 = vmatprep.subr.mxu0 0.0
    %828 = vmatpush1.msra.mxu0 0.0
    %829 = vmatprep.subr.mxu0 0.0
    %830 = vmatpush1.msra.mxu0 0.0
    %831 = vmatprep.subr.mxu0 0.0
    %832 = vmatpush1.msra.mxu0 0.0
    %833 = vmatprep.subr.mxu0 0.0
    %834 = vmatpush1.msra.mxu0 0.0
    %835 = vmatprep.subr.mxu0 0.0
    %836 = vmatpush1.msra.mxu0 0.0
    %837 = vmatprep.subr.mxu0 0.0
    %838 = vmatpush1.msra.mxu0 0.0
    %839 = vmatprep.subr.mxu0 0.0
    %840 = vmatpush1.msra.mxu0 0.0
    %841 = vmatprep.subr.mxu0 0.0
    %842 = vmatpush1.msra.mxu0 0.0
    %843 = vmatprep.subr.mxu0 0.0
    %844 = vmatpush1.msra.mxu0 0.0
    %845 = vmatprep.subr.mxu0 0.0
    %846 = vmatpush1.msra.mxu0 0.0
    %847 = vmatprep.subr.mxu0 0.0
    %848 = vmatpush1.msra.mxu0 0.0
    %849 = vmatprep.mubr.f32.mxu0 0.0
    %850 = vmatmul.mubr.f32.gmra.mrb[0].mxu0 %v778
    %v851 = vpop.f32.mrb[0].mxu0
    %v852 = vadd.f32 0.0, %v851
    %v853 = vpop.f32.mrb[0].mxu0
    %v854 = vadd.f32 0.0, %v853
    %855 = vdwg.mxu0
    %856 = vmatprep.subr.mxu0 0.0
    %857 = vmatpush1.msra.mxu0 %v53
    %858 = vmatprep.subr.mxu0 0.0
    %859 = vmatpush1.msra.mxu0 %v56
    %860 = vmatprep.subr.mxu0 0.0
    %861 = vmatpush1.msra.mxu0 %v59
    %862 = vmatprep.subr.mxu0 0.0
    %863 = vmatpush1.msra.mxu0 %v62
    %864 = vmatprep.subr.mxu0 0.0
    %865 = vmatpush1.msra.mxu0 %v65
    %866 = vmatprep.subr.mxu0 0.0
    %867 = vmatpush1.msra.mxu0 %v68
    %868 = vmatprep.subr.mxu0 0.0
    %869 = vmatpush1.msra.mxu0 %v71
    %870 = vmatprep.subr.mxu0 0.0
    %871 = vmatpush1.msra.mxu0 %v74
    %872 = vmatprep.subr.mxu0 0.0
    %873 = vmatpush1.msra.mxu0 %v77
    %874 = vmatprep.subr.mxu0 0.0
    %875 = vmatpush1.msra.mxu0 %v80
    %876 = vmatprep.subr.mxu0 0.0
    %877 = vmatpush1.msra.mxu0 %v83
    %878 = vmatprep.subr.mxu0 0.0
    %879 = vmatpush1.msra.mxu0 %v86
    %880 = vmatprep.subr.mxu0 0.0
    %881 = vmatpush1.msra.mxu0 %v89
    %882 = vmatprep.subr.mxu0 0.0
    %883 = vmatpush1.msra.mxu0 %v92
    %884 = vmatprep.subr.mxu0 0.0
    %885 = vmatpush1.msra.mxu0 %v95
    %886 = vmatprep.subr.mxu0 0.0
    %887 = vmatpush1.msra.mxu0 %v98
    %888 = vmatprep.subr.mxu0 0.0
    %889 = vmatpush1.msra.mxu0 0.0
    %890 = vmatprep.subr.mxu0 0.0
    %891 = vmatpush1.msra.mxu0 0.0
    %892 = vmatprep.subr.mxu0 0.0
    %893 = vmatpush1.msra.mxu0 0.0
    %894 = vmatprep.subr.mxu0 0.0
    %895 = vmatpush1.msra.mxu0 0.0
    %896 = vmatprep.subr.mxu0 0.0
    %897 = vmatpush1.msra.mxu0 0.0
    %898 = vmatprep.subr.mxu0 0.0
    %899 = vmatpush1.msra.mxu0 0.0
    %900 = vmatprep.subr.mxu0 0.0
    %901 = vmatpush1.msra.mxu0 0.0
    %902 = vmatprep.subr.mxu0 0.0
    %903 = vmatpush1.msra.mxu0 0.0
    %904 = vmatprep.subr.mxu0 0.0
    %905 = vmatpush1.msra.mxu0 0.0
    %906 = vmatprep.subr.mxu0 0.0
    %907 = vmatpush1.msra.mxu0 0.0
    %908 = vmatprep.subr.mxu0 0.0
    %909 = vmatpush1.msra.mxu0 0.0
    %910 = vmatprep.subr.mxu0 0.0
    %911 = vmatpush1.msra.mxu0 0.0
    %912 = vmatprep.subr.mxu0 0.0
    %913 = vmatpush1.msra.mxu0 0.0
    %914 = vmatprep.subr.mxu0 0.0
    %915 = vmatpush1.msra.mxu0 0.0
    %916 = vmatprep.subr.mxu0 0.0
    %917 = vmatpush1.msra.mxu0 0.0
    %918 = vmatprep.subr.mxu0 0.0
    %919 = vmatpush1.msra.mxu0 0.0
    %920 = vmatprep.mubr.f32.mxu0 0.0
    %921 = vmatmul.mubr.f32.gmra.mrb[0].mxu0 %v778
    %v922 = vpop.f32.mrb[0].mxu0
    %v923 = vadd.f32 0.0, %v922
    %v924 = vpop.f32.mrb[0].mxu0
    %925 = vdwg.mxu0
    %v926 = vadd.f32 %v782, %v852
    %v927 = vadd.f32 %v783, %v854
    %v928 = vxor.u32 %v926, 2147483648
    %v929 = vxor.u32 %v927, 2147483648
    %v930 = vmul.f32 %v928, 1.442695
    %v931 = vpow.pop %v930
    %v932 = vmul.f32 %v929, 1.442695
    %v933 = vpow.pop %v932
    %v934 = vadd.f32 %v931, 1.0
    %v935 = vadd.f32 %v933, 1.0
    %v936 = vrcp.pop %v934
    %v937 = vmul.f32 1.0, %v936
    %v938 = vrcp.pop %v935
    %v939 = vmul.f32 1.0, %v938
    %v940 = vadd.f32 %v923, %v104
    %v941 = vmul.f32 %v937, %v940
    %v942 = vadd.f32 %v784, %v941
    %v943 = vtanh.pop %v942
    %v944 = vsub.f32 1.0, %v939
    %v945 = vmul.f32 %v944, %v943
    %v946 = vmul.f32 %v939, %v778
    %v947 = vadd.f32 %v945, %v946
    %s948 = scalar_lea.vmem [#allocation8], 32
    %949 = vst [vmem:[%s948] sm:$0xff] %v947
    %s950 = scalar_lea.vmem [#allocation3], 120
    %v951 = vld [vmem:[%s950] sm:$0xff]
    %v952 = vld [vmem:[%s950 + $0x8] sm:$0xff]
    %v953 = vld [vmem:[%s950 + $0x10] sm:$0xff]
    %954 = vmatprep.subr.mxu0 %v52
    %955 = vmatpush1.msra.mxu0 %v51
    %956 = vmatprep.subr.mxu0 %v55
    %957 = vmatpush1.msra.mxu0 %v54
    %958 = vmatprep.subr.mxu0 %v58
    %959 = vmatpush1.msra.mxu0 %v57
    %960 = vmatprep.subr.mxu0 %v61
    %961 = vmatpush1.msra.mxu0 %v60
    %962 = vmatprep.subr.mxu0 %v64
    %963 = vmatpush1.msra.mxu0 %v63
    %964 = vmatprep.subr.mxu0 %v67
    %965 = vmatpush1.msra.mxu0 %v66
    %966 = vmatprep.subr.mxu0 %v70
    %967 = vmatpush1.msra.mxu0 %v69
    %968 = vmatprep.subr.mxu0 %v73
    %969 = vmatpush1.msra.mxu0 %v72
    %970 = vmatprep.subr.mxu0 %v76
    %971 = vmatpush1.msra.mxu0 %v75
    %972 = vmatprep.subr.mxu0 %v79
    %973 = vmatpush1.msra.mxu0 %v78
    %974 = vmatprep.subr.mxu0 %v82
    %975 = vmatpush1.msra.mxu0 %v81
    %976 = vmatprep.subr.mxu0 %v85
    %977 = vmatpush1.msra.mxu0 %v84
    %978 = vmatprep.subr.mxu0 %v88
    %979 = vmatpush1.msra.mxu0 %v87
    %980 = vmatprep.subr.mxu0 %v91
    %981 = vmatpush1.msra.mxu0 %v90
    %982 = vmatprep.subr.mxu0 %v94
    %983 = vmatpush1.msra.mxu0 %v93
    %984 = vmatprep.subr.mxu0 %v97
    %985 = vmatpush1.msra.mxu0 %v96
    %986 = vmatprep.subr.mxu0 0.0
    %987 = vmatpush1.msra.mxu0 0.0
    %988 = vmatprep.subr.mxu0 0.0
    %989 = vmatpush1.msra.mxu0 0.0
    %990 = vmatprep.subr.mxu0 0.0
    %991 = vmatpush1.msra.mxu0 0.0
    %992 = vmatprep.subr.mxu0 0.0
    %993 = vmatpush1.msra.mxu0 0.0
    %994 = vmatprep.subr.mxu0 0.0
    %995 = vmatpush1.msra.mxu0 0.0
    %996 = vmatprep.subr.mxu0 0.0
    %997 = vmatpush1.msra.mxu0 0.0
    %998 = vmatprep.subr.mxu0 0.0
    %999 = vmatpush1.msra.mxu0 0.0
    %1000 = vmatprep.subr.mxu0 0.0
    %1001 = vmatpush1.msra.mxu0 0.0
    %1002 = vmatprep.subr.mxu0 0.0
    %1003 = vmatpush1.msra.mxu0 0.0
    %1004 = vmatprep.subr.mxu0 0.0
    %1005 = vmatpush1.msra.mxu0 0.0
    %1006 = vmatprep.subr.mxu0 0.0
    %1007 = vmatpush1.msra.mxu0 0.0
    %1008 = vmatprep.subr.mxu0 0.0
    %1009 = vmatpush1.msra.mxu0 0.0
    %1010 = vmatprep.subr.mxu0 0.0
    %1011 = vmatpush1.msra.mxu0 0.0
    %1012 = vmatprep.subr.mxu0 0.0
    %1013 = vmatpush1.msra.mxu0 0.0
    %1014 = vmatprep.subr.mxu0 0.0
    %1015 = vmatpush1.msra.mxu0 0.0
    %1016 = vmatprep.subr.mxu0 0.0
    %1017 = vmatpush1.msra.mxu0 0.0
    %1018 = vmatprep.mubr.f32.mxu0 0.0
    %1019 = vmatmul.mubr.f32.gmra.mrb[0].mxu0 %v947
    %v1020 = vpop.f32.mrb[0].mxu0
    %v1021 = vadd.f32 0.0, %v1020
    %v1022 = vpop.f32.mrb[0].mxu0
    %v1023 = vadd.f32 0.0, %v1022
    %1024 = vdwg.mxu0
    %1025 = vmatprep.subr.mxu0 0.0
    %1026 = vmatpush1.msra.mxu0 %v53
    %1027 = vmatprep.subr.mxu0 0.0
    %1028 = vmatpush1.msra.mxu0 %v56
    %1029 = vmatprep.subr.mxu0 0.0
    %1030 = vmatpush1.msra.mxu0 %v59
    %1031 = vmatprep.subr.mxu0 0.0
    %1032 = vmatpush1.msra.mxu0 %v62
    %1033 = vmatprep.subr.mxu0 0.0
    %1034 = vmatpush1.msra.mxu0 %v65
    %1035 = vmatprep.subr.mxu0 0.0
    %1036 = vmatpush1.msra.mxu0 %v68
    %1037 = vmatprep.subr.mxu0 0.0
    %1038 = vmatpush1.msra.mxu0 %v71
    %1039 = vmatprep.subr.mxu0 0.0
    %1040 = vmatpush1.msra.mxu0 %v74
    %1041 = vmatprep.subr.mxu0 0.0
    %1042 = vmatpush1.msra.mxu0 %v77
    %1043 = vmatprep.subr.mxu0 0.0
    %1044 = vmatpush1.msra.mxu0 %v80
    %1045 = vmatprep.subr.mxu0 0.0
    %1046 = vmatpush1.msra.mxu0 %v83
    %1047 = vmatprep.subr.mxu0 0.0
    %1048 = vmatpush1.msra.mxu0 %v86
    %1049 = vmatprep.subr.mxu0 0.0
    %1050 = vmatpush1.msra.mxu0 %v89
    %1051 = vmatprep.subr.mxu0 0.0
    %1052 = vmatpush1.msra.mxu0 %v92
    %1053 = vmatprep.subr.mxu0 0.0
    %1054 = vmatpush1.msra.mxu0 %v95
    %1055 = vmatprep.subr.mxu0 0.0
    %1056 = vmatpush1.msra.mxu0 %v98
    %1057 = vmatprep.subr.mxu0 0.0
    %1058 = vmatpush1.msra.mxu0 0.0
    %1059 = vmatprep.subr.mxu0 0.0
    %1060 = vmatpush1.msra.mxu0 0.0
    %1061 = vmatprep.subr.mxu0 0.0
    %1062 = vmatpush1.msra.mxu0 0.0
    %1063 = vmatprep.subr.mxu0 0.0
    %1064 = vmatpush1.msra.mxu0 0.0
    %1065 = vmatprep.subr.mxu0 0.0
    %1066 = vmatpush1.msra.mxu0 0.0
    %1067 = vmatprep.subr.mxu0 0.0
    %1068 = vmatpush1.msra.mxu0 0.0
    %1069 = vmatprep.subr.mxu0 0.0
    %1070 = vmatpush1.msra.mxu0 0.0
    %1071 = vmatprep.subr.mxu0 0.0
    %1072 = vmatpush1.msra.mxu0 0.0
    %1073 = vmatprep.subr.mxu0 0.0
    %1074 = vmatpush1.msra.mxu0 0.0
    %1075 = vmatprep.subr.mxu0 0.0
    %1076 = vmatpush1.msra.mxu0 0.0
    %1077 = vmatprep.subr.mxu0 0.0
    %1078 = vmatpush1.msra.mxu0 0.0
    %1079 = vmatprep.subr.mxu0 0.0
    %1080 = vmatpush1.msra.mxu0 0.0
    %1081 = vmatprep.subr.mxu0 0.0
    %1082 = vmatpush1.msra.mxu0 0.0
    %1083 = vmatprep.subr.mxu0 0.0
    %1084 = vmatpush1.msra.mxu0 0.0
    %1085 = vmatprep.subr.mxu0 0.0
    %1086 = vmatpush1.msra.mxu0 0.0
    %1087 = vmatprep.subr.mxu0 0.0
    %1088 = vmatpush1.msra.mxu0 0.0
    %1089 = vmatprep.mubr.f32.mxu0 0.0
    %1090 = vmatmul.mubr.f32.gmra.mrb[0].mxu0 %v947
    %v1091 = vpop.f32.mrb[0].mxu0
    %v1092 = vadd.f32 0.0, %v1091
    %v1093 = vpop.f32.mrb[0].mxu0
    %1094 = vdwg.mxu0
    %v1095 = vadd.f32 %v951, %v1021
    %v1096 = vadd.f32 %v952, %v1023
    %v1097 = vxor.u32 %v1095, 2147483648
    %v1098 = vxor.u32 %v1096, 2147483648
    %v1099 = vmul.f32 %v1097, 1.442695
    %v1100 = vpow.pop %v1099
    %v1101 = vmul.f32 %v1098, 1.442695
    %v1102 = vpow.pop %v1101
    %v1103 = vadd.f32 %v1100, 1.0
    %v1104 = vadd.f32 %v1102, 1.0
    %v1105 = vrcp.pop %v1103
    %v1106 = vmul.f32 1.0, %v1105
    %v1107 = vrcp.pop %v1104
    %v1108 = vmul.f32 1.0, %v1107
    %v1109 = vadd.f32 %v1092, %v104
    %v1110 = vmul.f32 %v1106, %v1109
    %v1111 = vadd.f32 %v953, %v1110
    %v1112 = vtanh.pop %v1111
    %v1113 = vsub.f32 1.0, %v1108
    %v1114 = vmul.f32 %v1113, %v1112
    %v1115 = vmul.f32 %v1108, %v947
    %v1116 = vadd.f32 %v1114, %v1115
    %s1117 = scalar_lea.vmem [#allocation8], 40
    %1118 = vst [vmem:[%s1117] sm:$0xff] %v1116
    %s1119 = scalar_lea.vmem [#allocation3], 144
    %v1120 = vld [vmem:[%s1119] sm:$0xff]
    %v1121 = vld [vmem:[%s1119 + $0x8] sm:$0xff]
    %v1122 = vld [vmem:[%s1119 + $0x10] sm:$0xff]
    %1123 = vmatprep.subr.mxu0 %v52
    %1124 = vmatpush1.msra.mxu0 %v51
    %1125 = vmatprep.subr.mxu0 %v55
    %1126 = vmatpush1.msra.mxu0 %v54
    %1127 = vmatprep.subr.mxu0 %v58
    %1128 = vmatpush1.msra.mxu0 %v57
    %1129 = vmatprep.subr.mxu0 %v61
    %1130 = vmatpush1.msra.mxu0 %v60
    %1131 = vmatprep.subr.mxu0 %v64
    %1132 = vmatpush1.msra.mxu0 %v63
    %1133 = vmatprep.subr.mxu0 %v67
    %1134 = vmatpush1.msra.mxu0 %v66
    %1135 = vmatprep.subr.mxu0 %v70
    %1136 = vmatpush1.msra.mxu0 %v69
    %1137 = vmatprep.subr.mxu0 %v73
    %1138 = vmatpush1.msra.mxu0 %v72
    %1139 = vmatprep.subr.mxu0 %v76
    %1140 = vmatpush1.msra.mxu0 %v75
    %1141 = vmatprep.subr.mxu0 %v79
    %1142 = vmatpush1.msra.mxu0 %v78
    %1143 = vmatprep.subr.mxu0 %v82
    %1144 = vmatpush1.msra.mxu0 %v81
    %1145 = vmatprep.subr.mxu0 %v85
    %1146 = vmatpush1.msra.mxu0 %v84
    %1147 = vmatprep.subr.mxu0 %v88
    %1148 = vmatpush1.msra.mxu0 %v87
    %1149 = vmatprep.subr.mxu0 %v91
    %1150 = vmatpush1.msra.mxu0 %v90
    %1151 = vmatprep.subr.mxu0 %v94
    %1152 = vmatpush1.msra.mxu0 %v93
    %1153 = vmatprep.subr.mxu0 %v97
    %1154 = vmatpush1.msra.mxu0 %v96
    %1155 = vmatprep.subr.mxu0 0.0
    %1156 = vmatpush1.msra.mxu0 0.0
    %1157 = vmatprep.subr.mxu0 0.0
    %1158 = vmatpush1.msra.mxu0 0.0
    %1159 = vmatprep.subr.mxu0 0.0
    %1160 = vmatpush1.msra.mxu0 0.0
    %1161 = vmatprep.subr.mxu0 0.0
    %1162 = vmatpush1.msra.mxu0 0.0
    %1163 = vmatprep.subr.mxu0 0.0
    %1164 = vmatpush1.msra.mxu0 0.0
    %1165 = vmatprep.subr.mxu0 0.0
    %1166 = vmatpush1.msra.mxu0 0.0
    %1167 = vmatprep.subr.mxu0 0.0
    %1168 = vmatpush1.msra.mxu0 0.0
    %1169 = vmatprep.subr.mxu0 0.0
    %1170 = vmatpush1.msra.mxu0 0.0
    %1171 = vmatprep.subr.mxu0 0.0
    %1172 = vmatpush1.msra.mxu0 0.0
    %1173 = vmatprep.subr.mxu0 0.0
    %1174 = vmatpush1.msra.mxu0 0.0
    %1175 = vmatprep.subr.mxu0 0.0
    %1176 = vmatpush1.msra.mxu0 0.0
    %1177 = vmatprep.subr.mxu0 0.0
    %1178 = vmatpush1.msra.mxu0 0.0
    %1179 = vmatprep.subr.mxu0 0.0
    %1180 = vmatpush1.msra.mxu0 0.0
    %1181 = vmatprep.subr.mxu0 0.0
    %1182 = vmatpush1.msra.mxu0 0.0
    %1183 = vmatprep.subr.mxu0 0.0
    %1184 = vmatpush1.msra.mxu0 0.0
    %1185 = vmatprep.subr.mxu0 0.0
    %1186 = vmatpush1.msra.mxu0 0.0
    %1187 = vmatprep.mubr.f32.mxu0 0.0
    %1188 = vmatmul.mubr.f32.gmra.mrb[0].mxu0 %v1116
    %v1189 = vpop.f32.mrb[0].mxu0
    %v1190 = vadd.f32 0.0, %v1189
    %v1191 = vpop.f32.mrb[0].mxu0
    %v1192 = vadd.f32 0.0, %v1191
    %1193 = vdwg.mxu0
    %1194 = vmatprep.subr.mxu0 0.0
    %1195 = vmatpush1.msra.mxu0 %v53
    %1196 = vmatprep.subr.mxu0 0.0
    %1197 = vmatpush1.msra.mxu0 %v56
    %1198 = vmatprep.subr.mxu0 0.0
    %1199 = vmatpush1.msra.mxu0 %v59
    %1200 = vmatprep.subr.mxu0 0.0
    %1201 = vmatpush1.msra.mxu0 %v62
    %1202 = vmatprep.subr.mxu0 0.0
    %1203 = vmatpush1.msra.mxu0 %v65
    %1204 = vmatprep.subr.mxu0 0.0
    %1205 = vmatpush1.msra.mxu0 %v68
    %1206 = vmatprep.subr.mxu0 0.0
    %1207 = vmatpush1.msra.mxu0 %v71
    %1208 = vmatprep.subr.mxu0 0.0
    %1209 = vmatpush1.msra.mxu0 %v74
    %1210 = vmatprep.subr.mxu0 0.0
    %1211 = vmatpush1.msra.mxu0 %v77
    %1212 = vmatprep.subr.mxu0 0.0
    %1213 = vmatpush1.msra.mxu0 %v80
    %1214 = vmatprep.subr.mxu0 0.0
    %1215 = vmatpush1.msra.mxu0 %v83
    %1216 = vmatprep.subr.mxu0 0.0
    %1217 = vmatpush1.msra.mxu0 %v86
    %1218 = vmatprep.subr.mxu0 0.0
    %1219 = vmatpush1.msra.mxu0 %v89
    %1220 = vmatprep.subr.mxu0 0.0
    %1221 = vmatpush1.msra.mxu0 %v92
    %1222 = vmatprep.subr.mxu0 0.0
    %1223 = vmatpush1.msra.mxu0 %v95
    %1224 = vmatprep.subr.mxu0 0.0
    %1225 = vmatpush1.msra.mxu0 %v98
    %1226 = vmatprep.subr.mxu0 0.0
    %1227 = vmatpush1.msra.mxu0 0.0
    %1228 = vmatprep.subr.mxu0 0.0
    %1229 = vmatpush1.msra.mxu0 0.0
    %1230 = vmatprep.subr.mxu0 0.0
    %1231 = vmatpush1.msra.mxu0 0.0
    %1232 = vmatprep.subr.mxu0 0.0
    %1233 = vmatpush1.msra.mxu0 0.0
    %1234 = vmatprep.subr.mxu0 0.0
    %1235 = vmatpush1.msra.mxu0 0.0
    %1236 = vmatprep.subr.mxu0 0.0
    %1237 = vmatpush1.msra.mxu0 0.0
    %1238 = vmatprep.subr.mxu0 0.0
    %1239 = vmatpush1.msra.mxu0 0.0
    %1240 = vmatprep.subr.mxu0 0.0
    %1241 = vmatpush1.msra.mxu0 0.0
    %1242 = vmatprep.subr.mxu0 0.0
    %1243 = vmatpush1.msra.mxu0 0.0
    %1244 = vmatprep.subr.mxu0 0.0
    %1245 = vmatpush1.msra.mxu0 0.0
    %1246 = vmatprep.subr.mxu0 0.0
    %1247 = vmatpush1.msra.mxu0 0.0
    %1248 = vmatprep.subr.mxu0 0.0
    %1249 = vmatpush1.msra.mxu0 0.0
    %1250 = vmatprep.subr.mxu0 0.0
    %1251 = vmatpush1.msra.mxu0 0.0
    %1252 = vmatprep.subr.mxu0 0.0
    %1253 = vmatpush1.msra.mxu0 0.0
    %1254 = vmatprep.subr.mxu0 0.0
    %1255 = vmatpush1.msra.mxu0 0.0
    %1256 = vmatprep.subr.mxu0 0.0
    %1257 = vmatpush1.msra.mxu0 0.0
    %1258 = vmatprep.mubr.f32.mxu0 0.0
    %1259 = vmatmul.mubr.f32.gmra.mrb[0].mxu0 %v1116
    %v1260 = vpop.f32.mrb[0].mxu0
    %v1261 = vadd.f32 0.0, %v1260
    %v1262 = vpop.f32.mrb[0].mxu0
    %1263 = vdwg.mxu0
    %v1264 = vadd.f32 %v1120, %v1190
    %v1265 = vadd.f32 %v1121, %v1192
    %v1266 = vxor.u32 %v1264, 2147483648
    %v1267 = vxor.u32 %v1265, 2147483648
    %v1268 = vmul.f32 %v1266, 1.442695
    %v1269 = vpow.pop %v1268
    %v1270 = vmul.f32 %v1267, 1.442695
    %v1271 = vpow.pop %v1270
    %v1272 = vadd.f32 %v1269, 1.0
    %v1273 = vadd.f32 %v1271, 1.0
    %v1274 = vrcp.pop %v1272
    %v1275 = vmul.f32 1.0, %v1274
    %v1276 = vrcp.pop %v1273
    %v1277 = vmul.f32 1.0, %v1276
    %v1278 = vadd.f32 %v1261, %v104
    %v1279 = vmul.f32 %v1275, %v1278
    %v1280 = vadd.f32 %v1122, %v1279
    %v1281 = vtanh.pop %v1280
    %v1282 = vsub.f32 1.0, %v1277
    %v1283 = vmul.f32 %v1282, %v1281
    %v1284 = vmul.f32 %v1277, %v1116
    %v1285 = vadd.f32 %v1283, %v1284
    %s1286 = scalar_lea.vmem [#allocation8], 48
    %1287 = vst [vmem:[%s1286] sm:$0xff] %v1285
    %s1288 = scalar_lea.vmem [#allocation3], 168
    %v1289 = vld [vmem:[%s1288] sm:$0xff]
    %v1290 = vld [vmem:[%s1288 + $0x8] sm:$0xff]
    %v1291 = vld [vmem:[%s1288 + $0x10] sm:$0xff]
    %1292 = vmatprep.subr.mxu0 %v52
    %1293 = vmatpush1.msra.mxu0 %v51
    %1294 = vmatprep.subr.mxu0 %v55
    %1295 = vmatpush1.msra.mxu0 %v54
    %1296 = vmatprep.subr.mxu0 %v58
    %1297 = vmatpush1.msra.mxu0 %v57
    %1298 = vmatprep.subr.mxu0 %v61
    %1299 = vmatpush1.msra.mxu0 %v60
    %1300 = vmatprep.subr.mxu0 %v64
    %1301 = vmatpush1.msra.mxu0 %v63
    %1302 = vmatprep.subr.mxu0 %v67
    %1303 = vmatpush1.msra.mxu0 %v66
    %1304 = vmatprep.subr.mxu0 %v70
    %1305 = vmatpush1.msra.mxu0 %v69
    %1306 = vmatprep.subr.mxu0 %v73
    %1307 = vmatpush1.msra.mxu0 %v72
    %1308 = vmatprep.subr.mxu0 %v76
    %1309 = vmatpush1.msra.mxu0 %v75
    %1310 = vmatprep.subr.mxu0 %v79
    %1311 = vmatpush1.msra.mxu0 %v78
    %1312 = vmatprep.subr.mxu0 %v82
    %1313 = vmatpush1.msra.mxu0 %v81
    %1314 = vmatprep.subr.mxu0 %v85
    %1315 = vmatpush1.msra.mxu0 %v84
    %1316 = vmatprep.subr.mxu0 %v88
    %1317 = vmatpush1.msra.mxu0 %v87
    %1318 = vmatprep.subr.mxu0 %v91
    %1319 = vmatpush1.msra.mxu0 %v90
    %1320 = vmatprep.subr.mxu0 %v94
    %1321 = vmatpush1.msra.mxu0 %v93
    %1322 = vmatprep.subr.mxu0 %v97
    %1323 = vmatpush1.msra.mxu0 %v96
    %1324 = vmatprep.subr.mxu0 0.0
    %1325 = vmatpush1.msra.mxu0 0.0
    %1326 = vmatprep.subr.mxu0 0.0
    %1327 = vmatpush1.msra.mxu0 0.0
    %1328 = vmatprep.subr.mxu0 0.0
    %1329 = vmatpush1.msra.mxu0 0.0
    %1330 = vmatprep.subr.mxu0 0.0
    %1331 = vmatpush1.msra.mxu0 0.0
    %1332 = vmatprep.subr.mxu0 0.0
    %1333 = vmatpush1.msra.mxu0 0.0
    %1334 = vmatprep.subr.mxu0 0.0
    %1335 = vmatpush1.msra.mxu0 0.0
    %1336 = vmatprep.subr.mxu0 0.0
    %1337 = vmatpush1.msra.mxu0 0.0
    %1338 = vmatprep.subr.mxu0 0.0
    %1339 = vmatpush1.msra.mxu0 0.0
    %1340 = vmatprep.subr.mxu0 0.0
    %1341 = vmatpush1.msra.mxu0 0.0
    %1342 = vmatprep.subr.mxu0 0.0
    %1343 = vmatpush1.msra.mxu0 0.0
    %1344 = vmatprep.subr.mxu0 0.0
    %1345 = vmatpush1.msra.mxu0 0.0
    %1346 = vmatprep.subr.mxu0 0.0
    %1347 = vmatpush1.msra.mxu0 0.0
    %1348 = vmatprep.subr.mxu0 0.0
    %1349 = vmatpush1.msra.mxu0 0.0
    %1350 = vmatprep.subr.mxu0 0.0
    %1351 = vmatpush1.msra.mxu0 0.0
    %1352 = vmatprep.subr.mxu0 0.0
    %1353 = vmatpush1.msra.mxu0 0.0
    %1354 = vmatprep.subr.mxu0 0.0
    %1355 = vmatpush1.msra.mxu0 0.0
    %1356 = vmatprep.mubr.f32.mxu0 0.0
    %1357 = vmatmul.mubr.f32.gmra.mrb[0].mxu0 %v1285
    %v1358 = vpop.f32.mrb[0].mxu0
    %v1359 = vadd.f32 0.0, %v1358
    %v1360 = vpop.f32.mrb[0].mxu0
    %v1361 = vadd.f32 0.0, %v1360
    %1362 = vdwg.mxu0
    %1363 = vmatprep.subr.mxu0 0.0
    %1364 = vmatpush1.msra.mxu0 %v53
    %1365 = vmatprep.subr.mxu0 0.0
    %1366 = vmatpush1.msra.mxu0 %v56
    %1367 = vmatprep.subr.mxu0 0.0
    %1368 = vmatpush1.msra.mxu0 %v59
    %1369 = vmatprep.subr.mxu0 0.0
    %1370 = vmatpush1.msra.mxu0 %v62
    %1371 = vmatprep.subr.mxu0 0.0
    %1372 = vmatpush1.msra.mxu0 %v65
    %1373 = vmatprep.subr.mxu0 0.0
    %1374 = vmatpush1.msra.mxu0 %v68
    %1375 = vmatprep.subr.mxu0 0.0
    %1376 = vmatpush1.msra.mxu0 %v71
    %1377 = vmatprep.subr.mxu0 0.0
    %1378 = vmatpush1.msra.mxu0 %v74
    %1379 = vmatprep.subr.mxu0 0.0
    %1380 = vmatpush1.msra.mxu0 %v77
    %1381 = vmatprep.subr.mxu0 0.0
    %1382 = vmatpush1.msra.mxu0 %v80
    %1383 = vmatprep.subr.mxu0 0.0
    %1384 = vmatpush1.msra.mxu0 %v83
    %1385 = vmatprep.subr.mxu0 0.0
    %1386 = vmatpush1.msra.mxu0 %v86
    %1387 = vmatprep.subr.mxu0 0.0
    %1388 = vmatpush1.msra.mxu0 %v89
    %1389 = vmatprep.subr.mxu0 0.0
    %1390 = vmatpush1.msra.mxu0 %v92
    %1391 = vmatprep.subr.mxu0 0.0
    %1392 = vmatpush1.msra.mxu0 %v95
    %1393 = vmatprep.subr.mxu0 0.0
    %1394 = vmatpush1.msra.mxu0 %v98
    %1395 = vmatprep.subr.mxu0 0.0
    %1396 = vmatpush1.msra.mxu0 0.0
    %1397 = vmatprep.subr.mxu0 0.0
    %1398 = vmatpush1.msra.mxu0 0.0
    %1399 = vmatprep.subr.mxu0 0.0
    %1400 = vmatpush1.msra.mxu0 0.0
    %1401 = vmatprep.subr.mxu0 0.0
    %1402 = vmatpush1.msra.mxu0 0.0
    %1403 = vmatprep.subr.mxu0 0.0
    %1404 = vmatpush1.msra.mxu0 0.0
    %1405 = vmatprep.subr.mxu0 0.0
    %1406 = vmatpush1.msra.mxu0 0.0
    %1407 = vmatprep.subr.mxu0 0.0
    %1408 = vmatpush1.msra.mxu0 0.0
    %1409 = vmatprep.subr.mxu0 0.0
    %1410 = vmatpush1.msra.mxu0 0.0
    %1411 = vmatprep.subr.mxu0 0.0
    %1412 = vmatpush1.msra.mxu0 0.0
    %1413 = vmatprep.subr.mxu0 0.0
    %1414 = vmatpush1.msra.mxu0 0.0
    %1415 = vmatprep.subr.mxu0 0.0
    %1416 = vmatpush1.msra.mxu0 0.0
    %1417 = vmatprep.subr.mxu0 0.0
    %1418 = vmatpush1.msra.mxu0 0.0
    %1419 = vmatprep.subr.mxu0 0.0
    %1420 = vmatpush1.msra.mxu0 0.0
    %1421 = vmatprep.subr.mxu0 0.0
    %1422 = vmatpush1.msra.mxu0 0.0
    %1423 = vmatprep.subr.mxu0 0.0
    %1424 = vmatpush1.msra.mxu0 0.0
    %1425 = vmatprep.subr.mxu0 0.0
    %1426 = vmatpush1.msra.mxu0 0.0
    %1427 = vmatprep.mubr.f32.mxu0 0.0
    %1428 = vmatmul.mubr.f32.gmra.mrb[0].mxu0 %v1285
    %v1429 = vpop.f32.mrb[0].mxu0
    %v1430 = vadd.f32 0.0, %v1429
    %v1431 = vpop.f32.mrb[0].mxu0
    %1432 = vdwg.mxu0
    %v1433 = vadd.f32 %v1289, %v1359
    %v1434 = vadd.f32 %v1290, %v1361
    %v1435 = vxor.u32 %v1433, 2147483648
    %v1436 = vxor.u32 %v1434, 2147483648
    %v1437 = vmul.f32 %v1435, 1.442695
    %v1438 = vpow.pop %v1437
    %v1439 = vmul.f32 %v1436, 1.442695
    %v1440 = vpow.pop %v1439
    %v1441 = vadd.f32 %v1438, 1.0
    %v1442 = vadd.f32 %v1440, 1.0
    %v1443 = vrcp.pop %v1441
    %v1444 = vmul.f32 1.0, %v1443
    %v1445 = vrcp.pop %v1442
    %v1446 = vmul.f32 1.0, %v1445
    %v1447 = vadd.f32 %v1430, %v104
    %v1448 = vmul.f32 %v1444, %v1447
    %v1449 = vadd.f32 %v1291, %v1448
    %v1450 = vtanh.pop %v1449
    %v1451 = vsub.f32 1.0, %v1446
    %v1452 = vmul.f32 %v1451, %v1450
    %v1453 = vmul.f32 %v1446, %v1285
    %v1454 = vadd.f32 %v1452, %v1453
    %s1455 = scalar_lea.vmem [#allocation8], 56
    %1456 = vst [vmem:[%s1455] sm:$0xff] %v1454
    %1457 = vst [vmem:[#allocation2] sm:$0xff] %v1454
    // Predicated region
    $region26: #{tpu_custom_call.1} parent=1 // pred_check
      %p1458 = pneg %p46
    $region27: #{tpu_custom_call.1} parent=1 // pred_check_branch
      %1460 = sbr.rel (%p1458) target = $region29
    $region28: #{tpu_custom_call.1} parent=1 // pred_region
      %v1461 = vld [vmem:[#allocation2] sm:$0xff]
      %1462 = vst [vmem:[#allocation9] sm:$0xff] %v1461
    $region29: #{tpu_custom_call.1} parent=1 // pred_fallthru
      _
    // Predicated region
    $region30: #{tpu_custom_call.1} parent=1 // pred_check
      _
    $region31: #{tpu_custom_call.1} parent=1 // pred_check_branch
      %1464 = sbr.rel (0) target = $region33
    $region32: #{tpu_custom_call.1} parent=1 // pred_region
      %s1466 = ssub.s32 1024, 1024
      %1467 = vsyncadd [#allocation5], %s1466
      %s1468 = sshll.u32 [#allocation8], 4
      %s1469 = int_to_ptr.vmem [resolvable:$true] %s1468
      %1474 = dma.vmem_to_hbm [thread:$0]  %s1469, 1024, %s3, [#allocation5], 128, 128, 8
    $region33: #{tpu_custom_call.1} parent=1 // pred_fallthru
      _
    // Predicated region
    $region34: #{tpu_custom_call.1} parent=1 // pred_check
      _
    $region35: #{tpu_custom_call.1} parent=1 // pred_check_branch
      %1476 = sbr.rel (0) target = $region37
    $region36: #{tpu_custom_call.1} parent=1 // pred_region
      %s1478 = ssub.s32 128, 128
      %1479 = vsyncadd [#allocation10], %s1478
      %s1481 = sshll.u32 [#allocation9], 4
      %s1482 = int_to_ptr.vmem [resolvable:$true] %s1481
      %1484 = dma.vmem_to_hbm [thread:$0]  %s1482, 128, %s4, [#allocation10]
    $region37: #{tpu_custom_call.1} parent=1 // pred_fallthru
      _
    // Predicated region
    $region38: #{tpu_custom_call.1} parent=1 // pred_check
      _
    $region39: #{tpu_custom_call.1} parent=1 // pred_check_branch
      %1486 = sbr.rel (0) target = $region41
    $region40: #{tpu_custom_call.1} parent=1 // pred_region
      %1487 = dma.done [#allocation5], 1024
    $region41: #{tpu_custom_call.1} parent=1 // pred_fallthru
      _
    // Predicated region
    $region42: #{tpu_custom_call.1} parent=1 // pred_check
      _
    $region43: #{tpu_custom_call.1} parent=1 // pred_check_branch
      %1489 = sbr.rel (0) target = $region45
    $region44: #{tpu_custom_call.1} parent=1 // pred_region
      %1490 = dma.done [#allocation10], 128
    $region45: #{tpu_custom_call.1} parent=1 // pred_fallthru
      _
    %1491 = vsyncpa [#allocation4], 1
    %1492 = vsyncpa [#allocation7], 1
    %1493 = vsyncpa [#allocation5], 1
    %1494 = vsyncpa [#allocation10], 1

</llo_original>
